<compile_context>
chip_gen: v7x
topology: tpu7x:2x2x1
jax: 0.10.0
libtpu: 0.0.40
codegen_flags: <defaults>
</compile_context>

<pallas_src>
import jax
import jax.numpy as jnp
from jax import lax
from jax.experimental import pallas as pl
from jax.experimental.pallas import tpu as pltpu

SUBLANE = 8
OUT_PAD = 128  # lane-dense padding for the tiny head outputs (6 and 1)


def _round_up(x, m):
    return (x + m - 1) // m * m


def _fc_decoder_kernel(x_ref, *refs):
    """Fused trunk-MLP + token max-pool + (tanh, sigmoid) MLP heads.

    x_ref: (Nb, L, Din) block of input features.
    Outputs: actions (Nb, OUT_PAD), gripper (Nb, OUT_PAD) — lane-padded.
    """
    (w1, b1, w2, b2,
     wa1, ba1, wa2, ba2, wa3, ba3, wa4, ba4,
     wg1, bg1, wg2, bg2, wg3, bg3, wg4, bg4,
     act_ref, grip_ref) = refs

    Nb, L, Din = x_ref.shape
    H = w2.shape[-1]

    # ---- trunk MLP over all Nb*L tokens at once (Dropout = identity in eval) ----
    x = x_ref[...].astype(jnp.float32).reshape(Nb * L, Din)
    h1 = jnp.maximum(
        jnp.dot(x, w1[...], preferred_element_type=jnp.float32) + b1[...], 0.0)
    h2 = jnp.dot(h1, w2[...], preferred_element_type=jnp.float32) + b2[...]

    # ---- AdaptiveMaxPool1d(1) over the token axis ----
    pooled = jnp.max(h2.reshape(Nb, L, H), axis=1)          # (Nb, H)

    # ---- MLP heads (hidden dims 1024 -> 512 -> 256, no layernorm, eval dropout) ----
    def head(p, wA, bA, wB, bB, wC, bC, wD, bD):
        h = jnp.maximum(
            jnp.dot(p, wA[...], preferred_element_type=jnp.float32) + bA[...], 0.0)
        h = jnp.maximum(
            jnp.dot(h, wB[...], preferred_element_type=jnp.float32) + bB[...], 0.0)
        h = jnp.maximum(
            jnp.dot(h, wC[...], preferred_element_type=jnp.float32) + bC[...], 0.0)
        return jnp.dot(h, wD[...], preferred_element_type=jnp.float32) + bD[...]

    act = jnp.tanh(head(pooled, wa1, ba1, wa2, ba2, wa3, ba3, wa4, ba4))
    grip = jax.nn.sigmoid(head(pooled, wg1, bg1, wg2, bg2, wg3, bg3, wg4, bg4))

    act_ref[...] = act.astype(act_ref.dtype)
    grip_ref[...] = grip.astype(grip_ref.dtype)


def fc_decoder_forward(x, params, window_size):
    """FCDecoder.forward (eval mode, defaults).

    x: (N, L, in_features) with N = batch * window_size (the "(b*w, tokens, feat)"
       input the PyTorch module receives).
    Returns (actions (B, W, out_features), gripper (B, W, 1)).
    """
    # TODO(synk): state_tensor / use_state (MLPNohHead), use_diff early-return and
    # return_feature deepcopy branches not implemented (all off by default).
    N, L, Din = x.shape
    dtype = x.dtype
    out_features = params["actions"]["w4"].shape[0]

    # Pad batch rows to a sublane-friendly block size.
    Nb = min(128, _round_up(N, SUBLANE))
    N_pad = _round_up(N, Nb)
    if N_pad != N:
        x = jnp.concatenate([x, jnp.zeros((N_pad - N, L, Din), dtype)], axis=0)

    # Weights -> (in, out) layout; biases -> (1, out). Final layers lane-padded.
    def prep(w, b):
        return jnp.transpose(w), b.reshape(1, -1)

    def prep_pad(w, b, out_pad):
        wt = jnp.transpose(w)
        o = wt.shape[1]
        return (jnp.pad(wt, ((0, 0), (0, out_pad - o))),
                jnp.pad(b, (0, out_pad - o)).reshape(1, -1))

    t, a, g = params["trunk"], params["actions"], params["gripper"]
    w1, b1 = prep(t["w1"], t["b1"])
    w2, b2 = prep(t["w2"], t["b2"])
    wa1, ba1 = prep(a["w1"], a["b1"])
    wa2, ba2 = prep(a["w2"], a["b2"])
    wa3, ba3 = prep(a["w3"], a["b3"])
    wa4, ba4 = prep_pad(a["w4"], a["b4"], OUT_PAD)
    wg1, bg1 = prep(g["w1"], g["b1"])
    wg2, bg2 = prep(g["w2"], g["b2"])
    wg3, bg3 = prep(g["w3"], g["b3"])
    wg4, bg4 = prep_pad(g["w4"], g["b4"], OUT_PAD)

    consts = [w1, b1, w2, b2,
              wa1, ba1, wa2, ba2, wa3, ba3, wa4, ba4,
              wg1, bg1, wg2, bg2, wg3, bg3, wg4, bg4]

    def const_spec(arr):
        # Full-array constant block (all 2-D); index never changes across the grid.
        return pl.BlockSpec(arr.shape, lambda n: (0, 0))

    grid = (N_pad // Nb,)
    in_specs = ([pl.BlockSpec((Nb, L, Din), lambda n: (n, 0, 0))]
                + [const_spec(c) for c in consts])
    out_specs = [pl.BlockSpec((Nb, OUT_PAD), lambda n: (n, 0)),
                 pl.BlockSpec((Nb, OUT_PAD), lambda n: (n, 0))]
    out_shape = (jax.ShapeDtypeStruct((N_pad, OUT_PAD), dtype),
                 jax.ShapeDtypeStruct((N_pad, OUT_PAD), dtype))

    act_pad, grip_pad = pl.pallas_call(
        _fc_decoder_kernel,
        out_shape=out_shape,
        grid_spec=pltpu.PrefetchScalarGridSpec(
            num_scalar_prefetch=0,
            grid=grid,
            in_specs=in_specs,
            out_specs=out_specs),
        compiler_params=pltpu.CompilerParams(
            dimension_semantics=("parallel",)),
    )(x, *consts)

    actions = act_pad[:N, :out_features].reshape(-1, window_size, out_features)
    gripper = grip_pad[:N, :1].reshape(-1, window_size, 1)
    return actions, gripper


def init_params(key, in_features, hidden_size, out_features, dtype=jnp.float32):
    """PyTorch-style Linear init (uniform ±1/sqrt(fan_in)) for all layers."""
    def linear(k, fin, fout):
        kw, kb = jax.random.split(k)
        bound = float(fin) ** -0.5
        w = jax.random.uniform(kw, (fout, fin), dtype, -bound, bound)
        b = jax.random.uniform(kb, (fout,), dtype, -bound, bound)
        return w, b

    ks = jax.random.split(key, 10)
    w1, b1 = linear(ks[0], in_features, in_features // 2)
    w2, b2 = linear(ks[1], in_features // 2, hidden_size)
    # MLPTanhHead(hidden_size, out_features): hidden dims [1024, 512, 256]
    wa1, ba1 = linear(ks[2], hidden_size, 1024)
    wa2, ba2 = linear(ks[3], 1024, 512)
    wa3, ba3 = linear(ks[4], 512, 256)
    wa4, ba4 = linear(ks[5], 256, out_features)
    # MLPSigmoidHead(hidden_size, 1): hidden dims [1024, 512, 256]
    wg1, bg1 = linear(ks[6], hidden_size, 1024)
    wg2, bg2 = linear(ks[7], 1024, 512)
    wg3, bg3 = linear(ks[8], 512, 256)
    wg4, bg4 = linear(ks[9], 256, 1)
    return {
        "trunk": dict(w1=w1, b1=b1, w2=w2, b2=b2),
        "actions": dict(w1=wa1, b1=ba1, w2=wa2, b2=ba2,
                        w3=wa3, b3=ba3, w4=wa4, b4=ba4),
        "gripper": dict(w1=wg1, b1=bg1, w2=wg2, b2=bg2,
                        w3=wg3, b3=bg3, w4=wg4, b4=bg4),
    }


# ---------------- pure-JAX reference (for correctness check) ----------------
def _reference_forward(x, params, window_size):
    P = lax.Precision.HIGHEST

    def lin(h, w, b):
        return jnp.dot(h, w.T, precision=P) + b

    t = params["trunk"]
    h = jax.nn.relu(lin(x, t["w1"], t["b1"]))
    h = lin(h, t["w2"], t["b2"])
    pooled = jnp.max(h, axis=1)                       # AdaptiveMaxPool1d(1)

    def head(p, q):
        h = jax.nn.relu(lin(p, q["w1"], q["b1"]))
        h = jax.nn.relu(lin(h, q["w2"], q["b2"]))
        h = jax.nn.relu(lin(h, q["w3"], q["b3"]))
        return lin(h, q["w4"], q["b4"])

    out_f = params["actions"]["w4"].shape[0]
    actions = jnp.tanh(head(pooled, params["actions"])).reshape(-1, window_size, out_f)
    gripper = jax.nn.sigmoid(head(pooled, params["gripper"])).reshape(-1, window_size, 1)
    return actions, gripper


if __name__ == "__main__":
    # Small shapes consistent with the module: batch=2, window_size=4 (N=8 rows),
    # 16 visual tokens, in_features=256 (-> trunk 256 -> 128 -> hidden=128), 6 actions.
    B, W, L = 2, 4, 16
    in_features, hidden_size, out_features = 256, 128, 6

    key = jax.random.PRNGKey(0)
    kx, kp = jax.random.split(key)
    x = jax.random.normal(kx, (B * W, L, in_features), jnp.float32)
    params = init_params(kp, in_features, hidden_size, out_features)

    actions, gripper = fc_decoder_forward(x, params, window_size=W)
    jax.block_until_ready((actions, gripper))

    a_ref, g_ref = _reference_forward(x, params, W)
    assert actions.shape == (B, W, out_features)
    assert gripper.shape == (B, W, 1)
    assert jnp.allclose(actions, a_ref, atol=2e-3, rtol=2e-3)
    assert jnp.allclose(gripper, g_ref, atol=2e-3, rtol=2e-3)

    print("KERNEL_OK")
</pallas_src>

<mosaic_0001>
module attributes {stable_mosaic.version = 11 : i64} {
  func.func @_fc_decoder_kernel(%arg0: i32, %arg1: memref<8x16x256xf32, #tpu.memory_space<vmem>>, %arg2: memref<256x128xf32, #tpu.memory_space<vmem>>, %arg3: memref<1x128xf32, #tpu.memory_space<vmem>>, %arg4: memref<128x128xf32, #tpu.memory_space<vmem>>, %arg5: memref<1x128xf32, #tpu.memory_space<vmem>>, %arg6: memref<128x1024xf32, #tpu.memory_space<vmem>>, %arg7: memref<1x1024xf32, #tpu.memory_space<vmem>>, %arg8: memref<1024x512xf32, #tpu.memory_space<vmem>>, %arg9: memref<1x512xf32, #tpu.memory_space<vmem>>, %arg10: memref<512x256xf32, #tpu.memory_space<vmem>>, %arg11: memref<1x256xf32, #tpu.memory_space<vmem>>, %arg12: memref<256x128xf32, #tpu.memory_space<vmem>>, %arg13: memref<1x128xf32, #tpu.memory_space<vmem>>, %arg14: memref<128x1024xf32, #tpu.memory_space<vmem>>, %arg15: memref<1x1024xf32, #tpu.memory_space<vmem>>, %arg16: memref<1024x512xf32, #tpu.memory_space<vmem>>, %arg17: memref<1x512xf32, #tpu.memory_space<vmem>>, %arg18: memref<512x256xf32, #tpu.memory_space<vmem>>, %arg19: memref<1x256xf32, #tpu.memory_space<vmem>>, %arg20: memref<256x128xf32, #tpu.memory_space<vmem>>, %arg21: memref<1x128xf32, #tpu.memory_space<vmem>>, %arg22: memref<8x128xf32, #tpu.memory_space<vmem>>, %arg23: memref<8x128xf32, #tpu.memory_space<vmem>>) attributes {dimension_semantics = [#tpu.dimension_semantics<parallel>], iteration_bounds = array<i64: 1>, scalar_prefetch = 0 : i64, scratch_operands = 0 : i64, tpu.core_type = #tpu.core_type<tc>, window_params = [{transform_indices = @transform_0, window_bounds = array<i64: 8, 16, 256>}, {pipeline_mode = #tpu.pipeline_mode<synchronous>, transform_indices = @transform_1, window_bounds = array<i64: 256, 128>}, {pipeline_mode = #tpu.pipeline_mode<synchronous>, transform_indices = @transform_2, window_bounds = array<i64: 1, 128>}, {pipeline_mode = #tpu.pipeline_mode<synchronous>, transform_indices = @transform_3, window_bounds = array<i64: 128, 128>}, {pipeline_mode = #tpu.pipeline_mode<synchronous>, transform_indices = @transform_4, window_bounds = array<i64: 1, 128>}, {pipeline_mode = #tpu.pipeline_mode<synchronous>, transform_indices = @transform_5, window_bounds = array<i64: 128, 1024>}, {pipeline_mode = #tpu.pipeline_mode<synchronous>, transform_indices = @transform_6, window_bounds = array<i64: 1, 1024>}, {pipeline_mode = #tpu.pipeline_mode<synchronous>, transform_indices = @transform_7, window_bounds = array<i64: 1024, 512>}, {pipeline_mode = #tpu.pipeline_mode<synchronous>, transform_indices = @transform_8, window_bounds = array<i64: 1, 512>}, {pipeline_mode = #tpu.pipeline_mode<synchronous>, transform_indices = @transform_9, window_bounds = array<i64: 512, 256>}, {pipeline_mode = #tpu.pipeline_mode<synchronous>, transform_indices = @transform_10, window_bounds = array<i64: 1, 256>}, {pipeline_mode = #tpu.pipeline_mode<synchronous>, transform_indices = @transform_11, window_bounds = array<i64: 256, 128>}, {pipeline_mode = #tpu.pipeline_mode<synchronous>, transform_indices = @transform_12, window_bounds = array<i64: 1, 128>}, {pipeline_mode = #tpu.pipeline_mode<synchronous>, transform_indices = @transform_13, window_bounds = array<i64: 128, 1024>}, {pipeline_mode = #tpu.pipeline_mode<synchronous>, transform_indices = @transform_14, window_bounds = array<i64: 1, 1024>}, {pipeline_mode = #tpu.pipeline_mode<synchronous>, transform_indices = @transform_15, window_bounds = array<i64: 1024, 512>}, {pipeline_mode = #tpu.pipeline_mode<synchronous>, transform_indices = @transform_16, window_bounds = array<i64: 1, 512>}, {pipeline_mode = #tpu.pipeline_mode<synchronous>, transform_indices = @transform_17, window_bounds = array<i64: 512, 256>}, {pipeline_mode = #tpu.pipeline_mode<synchronous>, transform_indices = @transform_18, window_bounds = array<i64: 1, 256>}, {pipeline_mode = #tpu.pipeline_mode<synchronous>, transform_indices = @transform_19, window_bounds = array<i64: 256, 128>}, {pipeline_mode = #tpu.pipeline_mode<synchronous>, transform_indices = @transform_20, window_bounds = array<i64: 1, 128>}, {transform_indices = @transform_21, window_bounds = array<i64: 8, 128>}, {transform_indices = @transform_22, window_bounds = array<i64: 8, 128>}]} {
    %c0 = arith.constant 0 : index
    %c0_0 = arith.constant 0 : index
    %c0_1 = arith.constant 0 : index
    %0 = vector.load %arg1[%c0, %c0_0, %c0_1] : memref<8x16x256xf32, #tpu.memory_space<vmem>>, vector<8x16x256xf32>
    %1 = vector.shape_cast %0 : vector<8x16x256xf32> to vector<128x256xf32>
    %c0_2 = arith.constant 0 : index
    %c0_3 = arith.constant 0 : index
    %2 = vector.load %arg2[%c0_2, %c0_3] : memref<256x128xf32, #tpu.memory_space<vmem>>, vector<256x128xf32>
    %cst = arith.constant dense<0.000000e+00> : vector<128x128xf32>
    %3 = tpu.matmul %1, %2, %cst {dimension_numbers = #tpu.dot_dimension_numbers<[1], [0], [0], [1], [0, 0, 1, 1], [], []>} : vector<128x256xf32>, vector<256x128xf32>, vector<128x128xf32> -> vector<128x128xf32>
    %c0_4 = arith.constant 0 : index
    %c0_5 = arith.constant 0 : index
    %4 = vector.load %arg3[%c0_4, %c0_5] : memref<1x128xf32, #tpu.memory_space<vmem>>, vector<1x128xf32>
    %5 = vector.broadcast %4 : vector<1x128xf32> to vector<128x128xf32>
    %6 = arith.addf %3, %5 : vector<128x128xf32>
    %cst_6 = arith.constant 0.000000e+00 : f32
    %7 = vector.broadcast %cst_6 : f32 to vector<128x128xf32>
    %8 = arith.maximumf %6, %7 : vector<128x128xf32>
    %c0_7 = arith.constant 0 : index
    %c0_8 = arith.constant 0 : index
    %9 = vector.load %arg4[%c0_7, %c0_8] : memref<128x128xf32, #tpu.memory_space<vmem>>, vector<128x128xf32>
    %cst_9 = arith.constant dense<0.000000e+00> : vector<128x128xf32>
    %10 = tpu.matmul %8, %9, %cst_9 {dimension_numbers = #tpu.dot_dimension_numbers<[1], [0], [0], [1], [0, 0, 1, 1], [], []>} : vector<128x128xf32>, vector<128x128xf32>, vector<128x128xf32> -> vector<128x128xf32>
    %c0_10 = arith.constant 0 : index
    %c0_11 = arith.constant 0 : index
    %11 = vector.load %arg5[%c0_10, %c0_11] : memref<1x128xf32, #tpu.memory_space<vmem>>, vector<1x128xf32>
    %12 = vector.broadcast %11 : vector<1x128xf32> to vector<128x128xf32>
    %13 = arith.addf %10, %12 : vector<128x128xf32>
    %14 = vector.shape_cast %13 : vector<128x128xf32> to vector<8x16x128xf32>
    %cst_12 = arith.constant dense<0xFF800000> : vector<8x128xf32>
    %15 = vector.multi_reduction <maximumf>, %14, %cst_12 [1] : vector<8x16x128xf32> to vector<8x128xf32>
    %c0_13 = arith.constant 0 : index
    %c0_14 = arith.constant 0 : index
    %16 = vector.load %arg6[%c0_13, %c0_14] : memref<128x1024xf32, #tpu.memory_space<vmem>>, vector<128x1024xf32>
    %cst_15 = arith.constant dense<0.000000e+00> : vector<8x1024xf32>
    %17 = tpu.matmul %15, %16, %cst_15 {dimension_numbers = #tpu.dot_dimension_numbers<[1], [0], [0], [1], [0, 0, 1, 1], [], []>} : vector<8x128xf32>, vector<128x1024xf32>, vector<8x1024xf32> -> vector<8x1024xf32>
    %c0_16 = arith.constant 0 : index
    %c0_17 = arith.constant 0 : index
    %18 = vector.load %arg7[%c0_16, %c0_17] : memref<1x1024xf32, #tpu.memory_space<vmem>>, vector<1x1024xf32>
    %19 = vector.broadcast %18 : vector<1x1024xf32> to vector<8x1024xf32>
    %20 = arith.addf %17, %19 : vector<8x1024xf32>
    %cst_18 = arith.constant 0.000000e+00 : f32
    %21 = vector.broadcast %cst_18 : f32 to vector<8x1024xf32>
    %22 = arith.maximumf %20, %21 : vector<8x1024xf32>
    %c0_19 = arith.constant 0 : index
    %c0_20 = arith.constant 0 : index
    %23 = vector.load %arg8[%c0_19, %c0_20] : memref<1024x512xf32, #tpu.memory_space<vmem>>, vector<1024x512xf32>
    %cst_21 = arith.constant dense<0.000000e+00> : vector<8x512xf32>
    %24 = tpu.matmul %22, %23, %cst_21 {dimension_numbers = #tpu.dot_dimension_numbers<[1], [0], [0], [1], [0, 0, 1, 1], [], []>} : vector<8x1024xf32>, vector<1024x512xf32>, vector<8x512xf32> -> vector<8x512xf32>
    %c0_22 = arith.constant 0 : index
    %c0_23 = arith.constant 0 : index
    %25 = vector.load %arg9[%c0_22, %c0_23] : memref<1x512xf32, #tpu.memory_space<vmem>>, vector<1x512xf32>
    %26 = vector.broadcast %25 : vector<1x512xf32> to vector<8x512xf32>
    %27 = arith.addf %24, %26 : vector<8x512xf32>
    %cst_24 = arith.constant 0.000000e+00 : f32
    %28 = vector.broadcast %cst_24 : f32 to vector<8x512xf32>
    %29 = arith.maximumf %27, %28 : vector<8x512xf32>
    %c0_25 = arith.constant 0 : index
    %c0_26 = arith.constant 0 : index
    %30 = vector.load %arg10[%c0_25, %c0_26] : memref<512x256xf32, #tpu.memory_space<vmem>>, vector<512x256xf32>
    %cst_27 = arith.constant dense<0.000000e+00> : vector<8x256xf32>
    %31 = tpu.matmul %29, %30, %cst_27 {dimension_numbers = #tpu.dot_dimension_numbers<[1], [0], [0], [1], [0, 0, 1, 1], [], []>} : vector<8x512xf32>, vector<512x256xf32>, vector<8x256xf32> -> vector<8x256xf32>
    %c0_28 = arith.constant 0 : index
    %c0_29 = arith.constant 0 : index
    %32 = vector.load %arg11[%c0_28, %c0_29] : memref<1x256xf32, #tpu.memory_space<vmem>>, vector<1x256xf32>
    %33 = vector.broadcast %32 : vector<1x256xf32> to vector<8x256xf32>
    %34 = arith.addf %31, %33 : vector<8x256xf32>
    %cst_30 = arith.constant 0.000000e+00 : f32
    %35 = vector.broadcast %cst_30 : f32 to vector<8x256xf32>
    %36 = arith.maximumf %34, %35 : vector<8x256xf32>
    %c0_31 = arith.constant 0 : index
    %c0_32 = arith.constant 0 : index
    %37 = vector.load %arg12[%c0_31, %c0_32] : memref<256x128xf32, #tpu.memory_space<vmem>>, vector<256x128xf32>
    %cst_33 = arith.constant dense<0.000000e+00> : vector<8x128xf32>
    %38 = tpu.matmul %36, %37, %cst_33 {dimension_numbers = #tpu.dot_dimension_numbers<[1], [0], [0], [1], [0, 0, 1, 1], [], []>} : vector<8x256xf32>, vector<256x128xf32>, vector<8x128xf32> -> vector<8x128xf32>
    %c0_34 = arith.constant 0 : index
    %c0_35 = arith.constant 0 : index
    %39 = vector.load %arg13[%c0_34, %c0_35] : memref<1x128xf32, #tpu.memory_space<vmem>>, vector<1x128xf32>
    %40 = vector.broadcast %39 : vector<1x128xf32> to vector<8x128xf32>
    %41 = arith.addf %38, %40 : vector<8x128xf32>
    %42 = math.tanh %41 : vector<8x128xf32>
    %c0_36 = arith.constant 0 : index
    %c0_37 = arith.constant 0 : index
    %43 = vector.load %arg14[%c0_36, %c0_37] : memref<128x1024xf32, #tpu.memory_space<vmem>>, vector<128x1024xf32>
    %cst_38 = arith.constant dense<0.000000e+00> : vector<8x1024xf32>
    %44 = tpu.matmul %15, %43, %cst_38 {dimension_numbers = #tpu.dot_dimension_numbers<[1], [0], [0], [1], [0, 0, 1, 1], [], []>} : vector<8x128xf32>, vector<128x1024xf32>, vector<8x1024xf32> -> vector<8x1024xf32>
    %c0_39 = arith.constant 0 : index
    %c0_40 = arith.constant 0 : index
    %45 = vector.load %arg15[%c0_39, %c0_40] : memref<1x1024xf32, #tpu.memory_space<vmem>>, vector<1x1024xf32>
    %46 = vector.broadcast %45 : vector<1x1024xf32> to vector<8x1024xf32>
    %47 = arith.addf %44, %46 : vector<8x1024xf32>
    %cst_41 = arith.constant 0.000000e+00 : f32
    %48 = vector.broadcast %cst_41 : f32 to vector<8x1024xf32>
    %49 = arith.maximumf %47, %48 : vector<8x1024xf32>
    %c0_42 = arith.constant 0 : index
    %c0_43 = arith.constant 0 : index
    %50 = vector.load %arg16[%c0_42, %c0_43] : memref<1024x512xf32, #tpu.memory_space<vmem>>, vector<1024x512xf32>
    %cst_44 = arith.constant dense<0.000000e+00> : vector<8x512xf32>
    %51 = tpu.matmul %49, %50, %cst_44 {dimension_numbers = #tpu.dot_dimension_numbers<[1], [0], [0], [1], [0, 0, 1, 1], [], []>} : vector<8x1024xf32>, vector<1024x512xf32>, vector<8x512xf32> -> vector<8x512xf32>
    %c0_45 = arith.constant 0 : index
    %c0_46 = arith.constant 0 : index
    %52 = vector.load %arg17[%c0_45, %c0_46] : memref<1x512xf32, #tpu.memory_space<vmem>>, vector<1x512xf32>
    %53 = vector.broadcast %52 : vector<1x512xf32> to vector<8x512xf32>
    %54 = arith.addf %51, %53 : vector<8x512xf32>
    %cst_47 = arith.constant 0.000000e+00 : f32
    %55 = vector.broadcast %cst_47 : f32 to vector<8x512xf32>
    %56 = arith.maximumf %54, %55 : vector<8x512xf32>
    %c0_48 = arith.constant 0 : index
    %c0_49 = arith.constant 0 : index
    %57 = vector.load %arg18[%c0_48, %c0_49] : memref<512x256xf32, #tpu.memory_space<vmem>>, vector<512x256xf32>
    %cst_50 = arith.constant dense<0.000000e+00> : vector<8x256xf32>
    %58 = tpu.matmul %56, %57, %cst_50 {dimension_numbers = #tpu.dot_dimension_numbers<[1], [0], [0], [1], [0, 0, 1, 1], [], []>} : vector<8x512xf32>, vector<512x256xf32>, vector<8x256xf32> -> vector<8x256xf32>
    %c0_51 = arith.constant 0 : index
    %c0_52 = arith.constant 0 : index
    %59 = vector.load %arg19[%c0_51, %c0_52] : memref<1x256xf32, #tpu.memory_space<vmem>>, vector<1x256xf32>
    %60 = vector.broadcast %59 : vector<1x256xf32> to vector<8x256xf32>
    %61 = arith.addf %58, %60 : vector<8x256xf32>
    %cst_53 = arith.constant 0.000000e+00 : f32
    %62 = vector.broadcast %cst_53 : f32 to vector<8x256xf32>
    %63 = arith.maximumf %61, %62 : vector<8x256xf32>
    %c0_54 = arith.constant 0 : index
    %c0_55 = arith.constant 0 : index
    %64 = vector.load %arg20[%c0_54, %c0_55] : memref<256x128xf32, #tpu.memory_space<vmem>>, vector<256x128xf32>
    %cst_56 = arith.constant dense<0.000000e+00> : vector<8x128xf32>
    %65 = tpu.matmul %63, %64, %cst_56 {dimension_numbers = #tpu.dot_dimension_numbers<[1], [0], [0], [1], [0, 0, 1, 1], [], []>} : vector<8x256xf32>, vector<256x128xf32>, vector<8x128xf32> -> vector<8x128xf32>
    %c0_57 = arith.constant 0 : index
    %c0_58 = arith.constant 0 : index
    %66 = vector.load %arg21[%c0_57, %c0_58] : memref<1x128xf32, #tpu.memory_space<vmem>>, vector<1x128xf32>
    %67 = vector.broadcast %66 : vector<1x128xf32> to vector<8x128xf32>
    %68 = arith.addf %65, %67 : vector<8x128xf32>
    %69 = arith.negf %68 : vector<8x128xf32>
    %70 = math.exp %69 : vector<8x128xf32>
    %cst_59 = arith.constant 1.000000e+00 : f32
    %71 = vector.broadcast %cst_59 : f32 to vector<8x128xf32>
    %72 = arith.addf %71, %70 : vector<8x128xf32>
    %73 = arith.divf %71, %72 : vector<8x128xf32>
    %c0_60 = arith.constant 0 : index
    %c0_61 = arith.constant 0 : index
    %74 = vector.load %arg22[%c0_60, %c0_61] : memref<8x128xf32, #tpu.memory_space<vmem>>, vector<8x128xf32>
    tpu.vector_store %arg22[%c0_60, %c0_61], %42 {strides = array<i32>} : memref<8x128xf32, #tpu.memory_space<vmem>>, vector<8x128xf32>,
    %c0_62 = arith.constant 0 : index
    %c0_63 = arith.constant 0 : index
    %75 = vector.load %arg23[%c0_62, %c0_63] : memref<8x128xf32, #tpu.memory_space<vmem>>, vector<8x128xf32>
    tpu.vector_store %arg23[%c0_62, %c0_63], %73 {strides = array<i32>} : memref<8x128xf32, #tpu.memory_space<vmem>>, vector<8x128xf32>,
    return
  }
  func.func @transform_0(%arg0: i32) -> (i32, i32, i32) {
    %c0_i32 = arith.constant 0 : i32
    %c0_i32_0 = arith.constant 0 : i32
    %c0_i32_1 = arith.constant 0 : i32
    return %arg0, %c0_i32, %c0_i32_0 : i32, i32, i32
  }
  func.func @transform_1(%arg0: i32) -> (i32, i32) {
    %c0_i32 = arith.constant 0 : i32
    %c0_i32_0 = arith.constant 0 : i32
    %c0_i32_1 = arith.constant 0 : i32
    return %c0_i32, %c0_i32_0 : i32, i32
  }
  func.func @transform_2(%arg0: i32) -> (i32, i32) {
    %c0_i32 = arith.constant 0 : i32
    %c0_i32_0 = arith.constant 0 : i32
    %c0_i32_1 = arith.constant 0 : i32
    return %c0_i32, %c0_i32_0 : i32, i32
  }
  func.func @transform_3(%arg0: i32) -> (i32, i32) {
    %c0_i32 = arith.constant 0 : i32
    %c0_i32_0 = arith.constant 0 : i32
    %c0_i32_1 = arith.constant 0 : i32
    return %c0_i32, %c0_i32_0 : i32, i32
  }
  func.func @transform_4(%arg0: i32) -> (i32, i32) {
    %c0_i32 = arith.constant 0 : i32
    %c0_i32_0 = arith.constant 0 : i32
    %c0_i32_1 = arith.constant 0 : i32
    return %c0_i32, %c0_i32_0 : i32, i32
  }
  func.func @transform_5(%arg0: i32) -> (i32, i32) {
    %c0_i32 = arith.constant 0 : i32
    %c0_i32_0 = arith.constant 0 : i32
    %c0_i32_1 = arith.constant 0 : i32
    return %c0_i32, %c0_i32_0 : i32, i32
  }
  func.func @transform_6(%arg0: i32) -> (i32, i32) {
    %c0_i32 = arith.constant 0 : i32
    %c0_i32_0 = arith.constant 0 : i32
    %c0_i32_1 = arith.constant 0 : i32
    return %c0_i32, %c0_i32_0 : i32, i32
  }
  func.func @transform_7(%arg0: i32) -> (i32, i32) {
    %c0_i32 = arith.constant 0 : i32
    %c0_i32_0 = arith.constant 0 : i32
    %c0_i32_1 = arith.constant 0 : i32
    return %c0_i32, %c0_i32_0 : i32, i32
  }
  func.func @transform_8(%arg0: i32) -> (i32, i32) {
    %c0_i32 = arith.constant 0 : i32
    %c0_i32_0 = arith.constant 0 : i32
    %c0_i32_1 = arith.constant 0 : i32
    return %c0_i32, %c0_i32_0 : i32, i32
  }
  func.func @transform_9(%arg0: i32) -> (i32, i32) {
    %c0_i32 = arith.constant 0 : i32
    %c0_i32_0 = arith.constant 0 : i32
    %c0_i32_1 = arith.constant 0 : i32
    return %c0_i32, %c0_i32_0 : i32, i32
  }
  func.func @transform_10(%arg0: i32) -> (i32, i32) {
    %c0_i32 = arith.constant 0 : i32
    %c0_i32_0 = arith.constant 0 : i32
    %c0_i32_1 = arith.constant 0 : i32
    return %c0_i32, %c0_i32_0 : i32, i32
  }
  func.func @transform_11(%arg0: i32) -> (i32, i32) {
    %c0_i32 = arith.constant 0 : i32
    %c0_i32_0 = arith.constant 0 : i32
    %c0_i32_1 = arith.constant 0 : i32
    return %c0_i32, %c0_i32_0 : i32, i32
  }
  func.func @transform_12(%arg0: i32) -> (i32, i32) {
    %c0_i32 = arith.constant 0 : i32
    %c0_i32_0 = arith.constant 0 : i32
    %c0_i32_1 = arith.constant 0 : i32
    return %c0_i32, %c0_i32_0 : i32, i32
  }
  func.func @transform_13(%arg0: i32) -> (i32, i32) {
    %c0_i32 = arith.constant 0 : i32
    %c0_i32_0 = arith.constant 0 : i32
    %c0_i32_1 = arith.constant 0 : i32
    return %c0_i32, %c0_i32_0 : i32, i32
  }
  func.func @transform_14(%arg0: i32) -> (i32, i32) {
    %c0_i32 = arith.constant 0 : i32
    %c0_i32_0 = arith.constant 0 : i32
    %c0_i32_1 = arith.constant 0 : i32
    return %c0_i32, %c0_i32_0 : i32, i32
  }
  func.func @transform_15(%arg0: i32) -> (i32, i32) {
    %c0_i32 = arith.constant 0 : i32
    %c0_i32_0 = arith.constant 0 : i32
    %c0_i32_1 = arith.constant 0 : i32
    return %c0_i32, %c0_i32_0 : i32, i32
  }
  func.func @transform_16(%arg0: i32) -> (i32, i32) {
    %c0_i32 = arith.constant 0 : i32
    %c0_i32_0 = arith.constant 0 : i32
    %c0_i32_1 = arith.constant 0 : i32
    return %c0_i32, %c0_i32_0 : i32, i32
  }
  func.func @transform_17(%arg0: i32) -> (i32, i32) {
    %c0_i32 = arith.constant 0 : i32
    %c0_i32_0 = arith.constant 0 : i32
    %c0_i32_1 = arith.constant 0 : i32
    return %c0_i32, %c0_i32_0 : i32, i32
  }
  func.func @transform_18(%arg0: i32) -> (i32, i32) {
    %c0_i32 = arith.constant 0 : i32
    %c0_i32_0 = arith.constant 0 : i32
    %c0_i32_1 = arith.constant 0 : i32
    return %c0_i32, %c0_i32_0 : i32, i32
  }
  func.func @transform_19(%arg0: i32) -> (i32, i32) {
    %c0_i32 = arith.constant 0 : i32
    %c0_i32_0 = arith.constant 0 : i32
    %c0_i32_1 = arith.constant 0 : i32
    return %c0_i32, %c0_i32_0 : i32, i32
  }
  func.func @transform_20(%arg0: i32) -> (i32, i32) {
    %c0_i32 = arith.constant 0 : i32
    %c0_i32_0 = arith.constant 0 : i32
    %c0_i32_1 = arith.constant 0 : i32
    return %c0_i32, %c0_i32_0 : i32, i32
  }
  func.func @transform_21(%arg0: i32) -> (i32, i32) {
    %c0_i32 = arith.constant 0 : i32
    %c0_i32_0 = arith.constant 0 : i32
    return %arg0, %c0_i32 : i32, i32
  }
  func.func @transform_22(%arg0: i32) -> (i32, i32) {
    %c0_i32 = arith.constant 0 : i32
    %c0_i32_0 = arith.constant 0 : i32
    return %arg0, %c0_i32 : i32, i32
  }
}

</mosaic_0001>

<llo_original>
// kernel: tpu_custom_call.1
$region0: #{tpu_custom_call.1}
  #allocation0 [shape = 'u32[]', space=smem, size = 0x4, offset = 0x4, fixed_abs, tag = 'smem constant byte address 0x4 - core index']
  #allocation1 [shape = 'u32[144,128]{1,0:T(1,128)}', space=vmem, size = 0x12000, scoped, tag = 'internal scratch']
  %s0 = inlined_call_operand.hbm [shape: f32[8,16,256], index: 0, kind: input, shape index: {}]
  %s1 = inlined_call_operand.hbm [shape: f32[256,128], index: 1, kind: input, shape index: {}]
  %s2 = inlined_call_operand.hbm [shape: f32[1,128], index: 2, kind: input, shape index: {}]
  %s3 = inlined_call_operand.hbm [shape: f32[128,128], index: 3, kind: input, shape index: {}]
  %s4 = inlined_call_operand.hbm [shape: f32[1,128], index: 4, kind: input, shape index: {}]
  %s5 = inlined_call_operand.hbm [shape: f32[128,1024], index: 5, kind: input, shape index: {}]
  %s6 = inlined_call_operand.hbm [shape: f32[1,1024], index: 6, kind: input, shape index: {}]
  %s7 = inlined_call_operand.hbm [shape: f32[1024,512], index: 7, kind: input, shape index: {}]
  %s8 = inlined_call_operand.hbm [shape: f32[1,512], index: 8, kind: input, shape index: {}]
  %s9 = inlined_call_operand.hbm [shape: f32[512,256], index: 9, kind: input, shape index: {}]
  %s10 = inlined_call_operand.hbm [shape: f32[1,256], index: 10, kind: input, shape index: {}]
  %s11 = inlined_call_operand.hbm [shape: f32[256,128], index: 11, kind: input, shape index: {}]
  %s12 = inlined_call_operand.hbm [shape: f32[1,128], index: 12, kind: input, shape index: {}]
  %s13 = inlined_call_operand.hbm [shape: f32[128,1024], index: 13, kind: input, shape index: {}]
  %s14 = inlined_call_operand.hbm [shape: f32[1,1024], index: 14, kind: input, shape index: {}]
  %s15 = inlined_call_operand.hbm [shape: f32[1024,512], index: 15, kind: input, shape index: {}]
  %s16 = inlined_call_operand.hbm [shape: f32[1,512], index: 16, kind: input, shape index: {}]
  %s17 = inlined_call_operand.hbm [shape: f32[512,256], index: 17, kind: input, shape index: {}]
  %s18 = inlined_call_operand.hbm [shape: f32[1,256], index: 18, kind: input, shape index: {}]
  %s19 = inlined_call_operand.hbm [shape: f32[256,128], index: 19, kind: input, shape index: {}]
  %s20 = inlined_call_operand.hbm [shape: f32[1,128], index: 20, kind: input, shape index: {}]
  %s21 = inlined_call_operand.hbm [shape: f32[8,128], index: 21, kind: output, shape index: {0}]
  %s22 = inlined_call_operand.hbm [shape: f32[8,128], index: 22, kind: output, shape index: {1}]
  %23 = xla_tuple %s21, %s22
  %s24 = sld [smem:[#allocation0]]
  $region186: #{tpu_custom_call.1} parent=0
    _
  %s26 = ssub.s32 1, %s24
  %s27 = scalar_select 0, %s26, %s24
  $region1: #{tpu_custom_call.1} parent=0
    #allocation2 [shape = 'u8[131072]{0}', space=vmem, size = 0x20000, scoped, tag = 'input window, operand 0, single buffered']
    #allocation3 [shape = 's32[1]{0}', space=sflag, size = 0x4, scoped, tag = 'scoped memory for tpu_custom_call.1']
    #allocation4 [shape = 's32[1]{0}', space=sflag, size = 0x4, scoped, tag = 'scoped memory for tpu_custom_call.1']
    #allocation5 [shape = 'u8[131072]{0}', space=vmem, size = 0x20000, scoped, tag = 'input window, operand 1, single buffered']
    #allocation6 [shape = 's32[1]{0}', space=sflag, size = 0x4, scoped, tag = 'scoped memory for tpu_custom_call.1']
    #allocation7 [shape = 'u8[512]{0}', space=vmem, size = 0x400, scoped, tag = 'input window, operand 2, single buffered']
    #allocation8 [shape = 'u8[65536]{0}', space=vmem, size = 0x10000, scoped, tag = 'input window, operand 3, single buffered']
    #allocation9 [shape = 's32[1]{0}', space=sflag, size = 0x4, scoped, tag = 'scoped memory for tpu_custom_call.1']
    #allocation10 [shape = 'u8[512]{0}', space=vmem, size = 0x400, scoped, tag = 'input window, operand 4, single buffered']
    #allocation11 [shape = 'u8[524288]{0}', space=vmem, size = 0x80000, scoped, tag = 'input window, operand 5, single buffered']
    #allocation12 [shape = 's32[1]{0}', space=sflag, size = 0x4, scoped, tag = 'scoped memory for tpu_custom_call.1']
    #allocation13 [shape = 'u8[4096]{0}', space=vmem, size = 0x1000, scoped, tag = 'input window, operand 6, single buffered']
    #allocation14 [shape = 'u8[2097152]{0}', space=vmem, size = 0x200000, scoped, tag = 'input window, operand 7, single buffered']
    #allocation15 [shape = 's32[1]{0}', space=sflag, size = 0x4, scoped, tag = 'scoped memory for tpu_custom_call.1']
    #allocation16 [shape = 'u8[2048]{0}', space=vmem, size = 0x800, scoped, tag = 'input window, operand 8, single buffered']
    #allocation17 [shape = 'u8[524288]{0}', space=vmem, size = 0x80000, scoped, tag = 'input window, operand 9, single buffered']
    #allocation18 [shape = 's32[1]{0}', space=sflag, size = 0x4, scoped, tag = 'scoped memory for tpu_custom_call.1']
    #allocation19 [shape = 'u8[1024]{0}', space=vmem, size = 0x400, scoped, tag = 'input window, operand 10, single buffered']
    #allocation20 [shape = 'u8[131072]{0}', space=vmem, size = 0x20000, scoped, tag = 'input window, operand 11, single buffered']
    #allocation21 [shape = 's32[1]{0}', space=sflag, size = 0x4, scoped, tag = 'scoped memory for tpu_custom_call.1']
    #allocation22 [shape = 'u8[512]{0}', space=vmem, size = 0x400, scoped, tag = 'input window, operand 12, single buffered']
    #allocation23 [shape = 'u8[524288]{0}', space=vmem, size = 0x80000, scoped, tag = 'input window, operand 13, single buffered']
    #allocation24 [shape = 's32[1]{0}', space=sflag, size = 0x4, scoped, tag = 'scoped memory for tpu_custom_call.1']
    #allocation25 [shape = 'u8[4096]{0}', space=vmem, size = 0x1000, scoped, tag = 'input window, operand 14, single buffered']
    #allocation26 [shape = 'u8[2097152]{0}', space=vmem, size = 0x200000, scoped, tag = 'input window, operand 15, single buffered']
    #allocation27 [shape = 's32[1]{0}', space=sflag, size = 0x4, scoped, tag = 'scoped memory for tpu_custom_call.1']
    #allocation28 [shape = 'u8[2048]{0}', space=vmem, size = 0x800, scoped, tag = 'input window, operand 16, single buffered']
    #allocation29 [shape = 'u8[524288]{0}', space=vmem, size = 0x80000, scoped, tag = 'input window, operand 17, single buffered']
    #allocation30 [shape = 's32[1]{0}', space=sflag, size = 0x4, scoped, tag = 'scoped memory for tpu_custom_call.1']
    #allocation31 [shape = 'u8[1024]{0}', space=vmem, size = 0x400, scoped, tag = 'input window, operand 18, single buffered']
    #allocation32 [shape = 'u8[131072]{0}', space=vmem, size = 0x20000, scoped, tag = 'input window, operand 19, single buffered']
    #allocation33 [shape = 's32[1]{0}', space=sflag, size = 0x4, scoped, tag = 'scoped memory for tpu_custom_call.1']
    #allocation34 [shape = 'u8[512]{0}', space=vmem, size = 0x400, scoped, tag = 'input window, operand 20, single buffered']
    #allocation35 [shape = 'u8[4096]{0}', space=vmem, size = 0x1000, scoped, tag = 'output window, operand 0, single buffered']
    #allocation36 [shape = 'u8[4096]{0}', space=vmem, size = 0x1000, scoped, tag = 'output window, operand 1, single buffered']
    #allocation37 [shape = 's32[1]{0}', space=sflag, size = 0x4, scoped, tag = 'scoped memory for tpu_custom_call.1']
    %28 = vsyncpa [#allocation3], 0
    %29 = vsyncpa [#allocation6], 0
    %30 = vsyncpa [#allocation9], 0
    %31 = vsyncpa [#allocation12], 0
    %32 = vsyncpa [#allocation15], 0
    %33 = vsyncpa [#allocation18], 0
    %34 = vsyncpa [#allocation21], 0
    %35 = vsyncpa [#allocation24], 0
    %36 = vsyncpa [#allocation27], 0
    %37 = vsyncpa [#allocation30], 0
    %38 = vsyncpa [#allocation33], 0
    %39 = vsyncpa [#allocation4], 0
    %40 = vsyncpa [#allocation37], 0
    // Predicated region
    $region2: #{tpu_custom_call.1} parent=1 // pred_check
      _
    $region3: #{tpu_custom_call.1} parent=1 // pred_check_branch
      %42 = sbr.rel (0) target = $region5
    $region4: #{tpu_custom_call.1} parent=1 // pred_region
      %s44 = ssub.s32 4096, 4096
      %45 = vsyncadd [#allocation3], %s44
      %s46 = sshll.u32 [#allocation2], 4
      %s47 = int_to_ptr.vmem [resolvable:$true] %s46
      %52 = dma.hbm_to_vmem [thread:$0]  %s0, 4096, %s47, [#allocation3], 256, 256, 16
    $region5: #{tpu_custom_call.1} parent=1 // pred_fallthru
      _
    // Predicated region
    $region6: #{tpu_custom_call.1} parent=1 // pred_check
      _
    $region7: #{tpu_custom_call.1} parent=1 // pred_check_branch
      %54 = sbr.rel (0) target = $region9
    $region8: #{tpu_custom_call.1} parent=1 // pred_region
      %s56 = ssub.s32 4096, 4096
      %57 = vsyncadd [#allocation6], %s56
      %s58 = sshll.u32 [#allocation5], 4
      %s59 = int_to_ptr.vmem [resolvable:$true] %s58
      %64 = dma.hbm_to_vmem [thread:$0]  %s1, 4096, %s59, [#allocation6], 128, 128, 8
    $region9: #{tpu_custom_call.1} parent=1 // pred_fallthru
      _
    // Predicated region
    $region10: #{tpu_custom_call.1} parent=1 // pred_check
      _
    $region11: #{tpu_custom_call.1} parent=1 // pred_check_branch
      %66 = sbr.rel (0) target = $region13
    $region12: #{tpu_custom_call.1} parent=1 // pred_region
      %s68 = ssub.s32 16, 16
      %69 = vsyncadd [#allocation6], %s68
      %s71 = sshll.u32 [#allocation7], 4
      %s72 = int_to_ptr.vmem [resolvable:$true] %s71
      %74 = dma.hbm_to_vmem [thread:$0]  %s2, 16, %s72, [#allocation6]
    $region13: #{tpu_custom_call.1} parent=1 // pred_fallthru
      _
    // Predicated region
    $region14: #{tpu_custom_call.1} parent=1 // pred_check
      _
    $region15: #{tpu_custom_call.1} parent=1 // pred_check_branch
      %76 = sbr.rel (0) target = $region17
    $region16: #{tpu_custom_call.1} parent=1 // pred_region
      %s78 = ssub.s32 2048, 2048
      %79 = vsyncadd [#allocation9], %s78
      %s80 = sshll.u32 [#allocation8], 4
      %s81 = int_to_ptr.vmem [resolvable:$true] %s80
      %86 = dma.hbm_to_vmem [thread:$0]  %s3, 2048, %s81, [#allocation9], 128, 128, 8
    $region17: #{tpu_custom_call.1} parent=1 // pred_fallthru
      _
    // Predicated region
    $region18: #{tpu_custom_call.1} parent=1 // pred_check
      _
    $region19: #{tpu_custom_call.1} parent=1 // pred_check_branch
      %88 = sbr.rel (0) target = $region21
    $region20: #{tpu_custom_call.1} parent=1 // pred_region
      %s90 = ssub.s32 16, 16
      %91 = vsyncadd [#allocation9], %s90
      %s93 = sshll.u32 [#allocation10], 4
      %s94 = int_to_ptr.vmem [resolvable:$true] %s93
      %96 = dma.hbm_to_vmem [thread:$0]  %s4, 16, %s94, [#allocation9]
    $region21: #{tpu_custom_call.1} parent=1 // pred_fallthru
      _
    // Predicated region
    $region22: #{tpu_custom_call.1} parent=1 // pred_check
      _
    $region23: #{tpu_custom_call.1} parent=1 // pred_check_branch
      %98 = sbr.rel (0) target = $region25
    $region24: #{tpu_custom_call.1} parent=1 // pred_region
      %s100 = ssub.s32 16384, 16384
      %101 = vsyncadd [#allocation12], %s100
      %s102 = sshll.u32 [#allocation11], 4
      %s103 = int_to_ptr.vmem [resolvable:$true] %s102
      %108 = dma.hbm_to_vmem [thread:$0]  %s5, 16384, %s103, [#allocation12], 1024, 1024, 64
    $region25: #{tpu_custom_call.1} parent=1 // pred_fallthru
      _
    // Predicated region
    $region26: #{tpu_custom_call.1} parent=1 // pred_check
      _
    $region27: #{tpu_custom_call.1} parent=1 // pred_check_branch
      %110 = sbr.rel (0) target = $region29
    $region28: #{tpu_custom_call.1} parent=1 // pred_region
      %s112 = ssub.s32 128, 128
      %113 = vsyncadd [#allocation12], %s112
      %s115 = sshll.u32 [#allocation13], 4
      %s116 = int_to_ptr.vmem [resolvable:$true] %s115
      %118 = dma.hbm_to_vmem [thread:$0]  %s6, 128, %s116, [#allocation12]
    $region29: #{tpu_custom_call.1} parent=1 // pred_fallthru
      _
    // Predicated region
    $region30: #{tpu_custom_call.1} parent=1 // pred_check
      _
    $region31: #{tpu_custom_call.1} parent=1 // pred_check_branch
      %120 = sbr.rel (0) target = $region33
    $region32: #{tpu_custom_call.1} parent=1 // pred_region
      %s122 = ssub.s32 65536, 65536
      %123 = vsyncadd [#allocation15], %s122
      %s124 = sshll.u32 [#allocation14], 4
      %s125 = int_to_ptr.vmem [resolvable:$true] %s124
      %130 = dma.hbm_to_vmem [thread:$0]  %s7, 65536, %s125, [#allocation15], 512, 512, 32
    $region33: #{tpu_custom_call.1} parent=1 // pred_fallthru
      _
    // Predicated region
    $region34: #{tpu_custom_call.1} parent=1 // pred_check
      _
    $region35: #{tpu_custom_call.1} parent=1 // pred_check_branch
      %132 = sbr.rel (0) target = $region37
    $region36: #{tpu_custom_call.1} parent=1 // pred_region
      %s134 = ssub.s32 64, 64
      %135 = vsyncadd [#allocation15], %s134
      %s137 = sshll.u32 [#allocation16], 4
      %s138 = int_to_ptr.vmem [resolvable:$true] %s137
      %140 = dma.hbm_to_vmem [thread:$0]  %s8, 64, %s138, [#allocation15]
    $region37: #{tpu_custom_call.1} parent=1 // pred_fallthru
      _
    // Predicated region
    $region38: #{tpu_custom_call.1} parent=1 // pred_check
      _
    $region39: #{tpu_custom_call.1} parent=1 // pred_check_branch
      %142 = sbr.rel (0) target = $region41
    $region40: #{tpu_custom_call.1} parent=1 // pred_region
      %s144 = ssub.s32 16384, 16384
      %145 = vsyncadd [#allocation18], %s144
      %s146 = sshll.u32 [#allocation17], 4
      %s147 = int_to_ptr.vmem [resolvable:$true] %s146
      %152 = dma.hbm_to_vmem [thread:$0]  %s9, 16384, %s147, [#allocation18], 256, 256, 16
    $region41: #{tpu_custom_call.1} parent=1 // pred_fallthru
      _
    // Predicated region
    $region42: #{tpu_custom_call.1} parent=1 // pred_check
      _
    $region43: #{tpu_custom_call.1} parent=1 // pred_check_branch
      %154 = sbr.rel (0) target = $region45
    $region44: #{tpu_custom_call.1} parent=1 // pred_region
      %s156 = ssub.s32 32, 32
      %157 = vsyncadd [#allocation18], %s156
      %s159 = sshll.u32 [#allocation19], 4
      %s160 = int_to_ptr.vmem [resolvable:$true] %s159
      %162 = dma.hbm_to_vmem [thread:$0]  %s10, 32, %s160, [#allocation18]
    $region45: #{tpu_custom_call.1} parent=1 // pred_fallthru
      _
    // Predicated region
    $region46: #{tpu_custom_call.1} parent=1 // pred_check
      _
    $region47: #{tpu_custom_call.1} parent=1 // pred_check_branch
      %164 = sbr.rel (0) target = $region49
    $region48: #{tpu_custom_call.1} parent=1 // pred_region
      %s166 = ssub.s32 4096, 4096
      %167 = vsyncadd [#allocation21], %s166
      %s168 = sshll.u32 [#allocation20], 4
      %s169 = int_to_ptr.vmem [resolvable:$true] %s168
      %174 = dma.hbm_to_vmem [thread:$0]  %s11, 4096, %s169, [#allocation21], 128, 128, 8
    $region49: #{tpu_custom_call.1} parent=1 // pred_fallthru
      _
    // Predicated region
    $region50: #{tpu_custom_call.1} parent=1 // pred_check
      _
    $region51: #{tpu_custom_call.1} parent=1 // pred_check_branch
      %176 = sbr.rel (0) target = $region53
    $region52: #{tpu_custom_call.1} parent=1 // pred_region
      %s178 = ssub.s32 16, 16
      %179 = vsyncadd [#allocation21], %s178
      %s181 = sshll.u32 [#allocation22], 4
      %s182 = int_to_ptr.vmem [resolvable:$true] %s181
      %184 = dma.hbm_to_vmem [thread:$0]  %s12, 16, %s182, [#allocation21]
    $region53: #{tpu_custom_call.1} parent=1 // pred_fallthru
      _
    // Predicated region
    $region54: #{tpu_custom_call.1} parent=1 // pred_check
      _
    $region55: #{tpu_custom_call.1} parent=1 // pred_check_branch
      %186 = sbr.rel (0) target = $region57
    $region56: #{tpu_custom_call.1} parent=1 // pred_region
      %s188 = ssub.s32 16384, 16384
      %189 = vsyncadd [#allocation24], %s188
      %s190 = sshll.u32 [#allocation23], 4
      %s191 = int_to_ptr.vmem [resolvable:$true] %s190
      %196 = dma.hbm_to_vmem [thread:$0]  %s13, 16384, %s191, [#allocation24], 1024, 1024, 64
    $region57: #{tpu_custom_call.1} parent=1 // pred_fallthru
      _
    // Predicated region
    $region58: #{tpu_custom_call.1} parent=1 // pred_check
      _
    $region59: #{tpu_custom_call.1} parent=1 // pred_check_branch
      %198 = sbr.rel (0) target = $region61
    $region60: #{tpu_custom_call.1} parent=1 // pred_region
      %s200 = ssub.s32 128, 128
      %201 = vsyncadd [#allocation24], %s200
      %s203 = sshll.u32 [#allocation25], 4
      %s204 = int_to_ptr.vmem [resolvable:$true] %s203
      %206 = dma.hbm_to_vmem [thread:$0]  %s14, 128, %s204, [#allocation24]
    $region61: #{tpu_custom_call.1} parent=1 // pred_fallthru
      _
    // Predicated region
    $region62: #{tpu_custom_call.1} parent=1 // pred_check
      _
    $region63: #{tpu_custom_call.1} parent=1 // pred_check_branch
      %208 = sbr.rel (0) target = $region65
    $region64: #{tpu_custom_call.1} parent=1 // pred_region
      %s210 = ssub.s32 65536, 65536
      %211 = vsyncadd [#allocation27], %s210
      %s212 = sshll.u32 [#allocation26], 4
      %s213 = int_to_ptr.vmem [resolvable:$true] %s212
      %218 = dma.hbm_to_vmem [thread:$0]  %s15, 65536, %s213, [#allocation27], 512, 512, 32
    $region65: #{tpu_custom_call.1} parent=1 // pred_fallthru
      _
    // Predicated region
    $region66: #{tpu_custom_call.1} parent=1 // pred_check
      _
    $region67: #{tpu_custom_call.1} parent=1 // pred_check_branch
      %220 = sbr.rel (0) target = $region69
    $region68: #{tpu_custom_call.1} parent=1 // pred_region
      %s222 = ssub.s32 64, 64
      %223 = vsyncadd [#allocation27], %s222
      %s225 = sshll.u32 [#allocation28], 4
      %s226 = int_to_ptr.vmem [resolvable:$true] %s225
      %228 = dma.hbm_to_vmem [thread:$0]  %s16, 64, %s226, [#allocation27]
    $region69: #{tpu_custom_call.1} parent=1 // pred_fallthru
      _
    // Predicated region
    $region70: #{tpu_custom_call.1} parent=1 // pred_check
      _
    $region71: #{tpu_custom_call.1} parent=1 // pred_check_branch
      %230 = sbr.rel (0) target = $region73
    $region72: #{tpu_custom_call.1} parent=1 // pred_region
      %s232 = ssub.s32 16384, 16384
      %233 = vsyncadd [#allocation30], %s232
      %s234 = sshll.u32 [#allocation29], 4
      %s235 = int_to_ptr.vmem [resolvable:$true] %s234
      %240 = dma.hbm_to_vmem [thread:$0]  %s17, 16384, %s235, [#allocation30], 256, 256, 16
    $region73: #{tpu_custom_call.1} parent=1 // pred_fallthru
      _
    // Predicated region
    $region74: #{tpu_custom_call.1} parent=1 // pred_check
      _
    $region75: #{tpu_custom_call.1} parent=1 // pred_check_branch
      %242 = sbr.rel (0) target = $region77
    $region76: #{tpu_custom_call.1} parent=1 // pred_region
      %s244 = ssub.s32 32, 32
      %245 = vsyncadd [#allocation30], %s244
      %s247 = sshll.u32 [#allocation31], 4
      %s248 = int_to_ptr.vmem [resolvable:$true] %s247
      %250 = dma.hbm_to_vmem [thread:$0]  %s18, 32, %s248, [#allocation30]
    $region77: #{tpu_custom_call.1} parent=1 // pred_fallthru
      _
    // Predicated region
    $region78: #{tpu_custom_call.1} parent=1 // pred_check
      _
    $region79: #{tpu_custom_call.1} parent=1 // pred_check_branch
      %252 = sbr.rel (0) target = $region81
    $region80: #{tpu_custom_call.1} parent=1 // pred_region
      %s254 = ssub.s32 4096, 4096
      %255 = vsyncadd [#allocation33], %s254
      %s256 = sshll.u32 [#allocation32], 4
      %s257 = int_to_ptr.vmem [resolvable:$true] %s256
      %262 = dma.hbm_to_vmem [thread:$0]  %s19, 4096, %s257, [#allocation33], 128, 128, 8
    $region81: #{tpu_custom_call.1} parent=1 // pred_fallthru
      _
    // Predicated region
    $region82: #{tpu_custom_call.1} parent=1 // pred_check
      _
    $region83: #{tpu_custom_call.1} parent=1 // pred_check_branch
      %264 = sbr.rel (0) target = $region85
    $region84: #{tpu_custom_call.1} parent=1 // pred_region
      %s266 = ssub.s32 16, 16
      %267 = vsyncadd [#allocation33], %s266
      %s269 = sshll.u32 [#allocation34], 4
      %s270 = int_to_ptr.vmem [resolvable:$true] %s269
      %272 = dma.hbm_to_vmem [thread:$0]  %s20, 16, %s270, [#allocation33]
    $region85: #{tpu_custom_call.1} parent=1 // pred_fallthru
      _
    // Predicated region
    $region86: #{tpu_custom_call.1} parent=1 // pred_check
      _
    $region87: #{tpu_custom_call.1} parent=1 // pred_check_branch
      %274 = sbr.rel (0) target = $region89
    $region88: #{tpu_custom_call.1} parent=1 // pred_region
      %275 = dma.done [#allocation3], 4096
    $region89: #{tpu_custom_call.1} parent=1 // pred_fallthru
      _
    // Predicated region
    $region90: #{tpu_custom_call.1} parent=1 // pred_check
      _
    $region91: #{tpu_custom_call.1} parent=1 // pred_check_branch
      %277 = sbr.rel (0) target = $region93
    $region92: #{tpu_custom_call.1} parent=1 // pred_region
      %278 = dma.done [#allocation6], 4096
    $region93: #{tpu_custom_call.1} parent=1 // pred_fallthru
      _
    // Predicated region
    $region94: #{tpu_custom_call.1} parent=1 // pred_check
      _
    $region95: #{tpu_custom_call.1} parent=1 // pred_check_branch
      %280 = sbr.rel (0) target = $region97
    $region96: #{tpu_custom_call.1} parent=1 // pred_region
      %281 = dma.done [#allocation6], 16
    $region97: #{tpu_custom_call.1} parent=1 // pred_fallthru
      _
    // Predicated region
    $region98: #{tpu_custom_call.1} parent=1 // pred_check
      _
    $region99: #{tpu_custom_call.1} parent=1 // pred_check_branch
      %283 = sbr.rel (0) target = $region101
    $region100: #{tpu_custom_call.1} parent=1 // pred_region
      %284 = dma.done [#allocation9], 2048
    $region101: #{tpu_custom_call.1} parent=1 // pred_fallthru
      _
    // Predicated region
    $region102: #{tpu_custom_call.1} parent=1 // pred_check
      _
    $region103: #{tpu_custom_call.1} parent=1 // pred_check_branch
      %286 = sbr.rel (0) target = $region105
    $region104: #{tpu_custom_call.1} parent=1 // pred_region
      %287 = dma.done [#allocation9], 16
    $region105: #{tpu_custom_call.1} parent=1 // pred_fallthru
      _
    // Predicated region
    $region106: #{tpu_custom_call.1} parent=1 // pred_check
      _
    $region107: #{tpu_custom_call.1} parent=1 // pred_check_branch
      %289 = sbr.rel (0) target = $region109
    $region108: #{tpu_custom_call.1} parent=1 // pred_region
      %290 = dma.done [#allocation12], 16384
    $region109: #{tpu_custom_call.1} parent=1 // pred_fallthru
      _
    // Predicated region
    $region110: #{tpu_custom_call.1} parent=1 // pred_check
      _
    $region111: #{tpu_custom_call.1} parent=1 // pred_check_branch
      %292 = sbr.rel (0) target = $region113
    $region112: #{tpu_custom_call.1} parent=1 // pred_region
      %293 = dma.done [#allocation12], 128
    $region113: #{tpu_custom_call.1} parent=1 // pred_fallthru
      _
    // Predicated region
    $region114: #{tpu_custom_call.1} parent=1 // pred_check
      _
    $region115: #{tpu_custom_call.1} parent=1 // pred_check_branch
      %295 = sbr.rel (0) target = $region117
    $region116: #{tpu_custom_call.1} parent=1 // pred_region
      %296 = dma.done [#allocation15], 65536
    $region117: #{tpu_custom_call.1} parent=1 // pred_fallthru
      _
    // Predicated region
    $region118: #{tpu_custom_call.1} parent=1 // pred_check
      _
    $region119: #{tpu_custom_call.1} parent=1 // pred_check_branch
      %298 = sbr.rel (0) target = $region121
    $region120: #{tpu_custom_call.1} parent=1 // pred_region
      %299 = dma.done [#allocation15], 64
    $region121: #{tpu_custom_call.1} parent=1 // pred_fallthru
      _
    // Predicated region
    $region122: #{tpu_custom_call.1} parent=1 // pred_check
      _
    $region123: #{tpu_custom_call.1} parent=1 // pred_check_branch
      %301 = sbr.rel (0) target = $region125
    $region124: #{tpu_custom_call.1} parent=1 // pred_region
      %302 = dma.done [#allocation18], 16384
    $region125: #{tpu_custom_call.1} parent=1 // pred_fallthru
      _
    // Predicated region
    $region126: #{tpu_custom_call.1} parent=1 // pred_check
      _
    $region127: #{tpu_custom_call.1} parent=1 // pred_check_branch
      %304 = sbr.rel (0) target = $region129
    $region128: #{tpu_custom_call.1} parent=1 // pred_region
      %305 = dma.done [#allocation18], 32
    $region129: #{tpu_custom_call.1} parent=1 // pred_fallthru
      _
    // Predicated region
    $region130: #{tpu_custom_call.1} parent=1 // pred_check
      _
    $region131: #{tpu_custom_call.1} parent=1 // pred_check_branch
      %307 = sbr.rel (0) target = $region133
    $region132: #{tpu_custom_call.1} parent=1 // pred_region
      %308 = dma.done [#allocation21], 4096
    $region133: #{tpu_custom_call.1} parent=1 // pred_fallthru
      _
    // Predicated region
    $region134: #{tpu_custom_call.1} parent=1 // pred_check
      _
    $region135: #{tpu_custom_call.1} parent=1 // pred_check_branch
      %310 = sbr.rel (0) target = $region137
    $region136: #{tpu_custom_call.1} parent=1 // pred_region
      %311 = dma.done [#allocation21], 16
    $region137: #{tpu_custom_call.1} parent=1 // pred_fallthru
      _
    // Predicated region
    $region138: #{tpu_custom_call.1} parent=1 // pred_check
      _
    $region139: #{tpu_custom_call.1} parent=1 // pred_check_branch
      %313 = sbr.rel (0) target = $region141
    $region140: #{tpu_custom_call.1} parent=1 // pred_region
      %314 = dma.done [#allocation24], 16384
    $region141: #{tpu_custom_call.1} parent=1 // pred_fallthru
      _
    // Predicated region
    $region142: #{tpu_custom_call.1} parent=1 // pred_check
      _
    $region143: #{tpu_custom_call.1} parent=1 // pred_check_branch
      %316 = sbr.rel (0) target = $region145
    $region144: #{tpu_custom_call.1} parent=1 // pred_region
      %317 = dma.done [#allocation24], 128
    $region145: #{tpu_custom_call.1} parent=1 // pred_fallthru
      _
    // Predicated region
    $region146: #{tpu_custom_call.1} parent=1 // pred_check
      _
    $region147: #{tpu_custom_call.1} parent=1 // pred_check_branch
      %319 = sbr.rel (0) target = $region149
    $region148: #{tpu_custom_call.1} parent=1 // pred_region
      %320 = dma.done [#allocation27], 65536
    $region149: #{tpu_custom_call.1} parent=1 // pred_fallthru
      _
    // Predicated region
    $region150: #{tpu_custom_call.1} parent=1 // pred_check
      _
    $region151: #{tpu_custom_call.1} parent=1 // pred_check_branch
      %322 = sbr.rel (0) target = $region153
    $region152: #{tpu_custom_call.1} parent=1 // pred_region
      %323 = dma.done [#allocation27], 64
    $region153: #{tpu_custom_call.1} parent=1 // pred_fallthru
      _
    // Predicated region
    $region154: #{tpu_custom_call.1} parent=1 // pred_check
      _
    $region155: #{tpu_custom_call.1} parent=1 // pred_check_branch
      %325 = sbr.rel (0) target = $region157
    $region156: #{tpu_custom_call.1} parent=1 // pred_region
      %326 = dma.done [#allocation30], 16384
    $region157: #{tpu_custom_call.1} parent=1 // pred_fallthru
      _
    // Predicated region
    $region158: #{tpu_custom_call.1} parent=1 // pred_check
      _
    $region159: #{tpu_custom_call.1} parent=1 // pred_check_branch
      %328 = sbr.rel (0) target = $region161
    $region160: #{tpu_custom_call.1} parent=1 // pred_region
      %329 = dma.done [#allocation30], 32
    $region161: #{tpu_custom_call.1} parent=1 // pred_fallthru
      _
    // Predicated region
    $region162: #{tpu_custom_call.1} parent=1 // pred_check
      _
    $region163: #{tpu_custom_call.1} parent=1 // pred_check_branch
      %331 = sbr.rel (0) target = $region165
    $region164: #{tpu_custom_call.1} parent=1 // pred_region
      %332 = dma.done [#allocation33], 4096
    $region165: #{tpu_custom_call.1} parent=1 // pred_fallthru
      _
    // Predicated region
    $region166: #{tpu_custom_call.1} parent=1 // pred_check
      _
    $region167: #{tpu_custom_call.1} parent=1 // pred_check_branch
      %334 = sbr.rel (0) target = $region169
    $region168: #{tpu_custom_call.1} parent=1 // pred_region
      %335 = dma.done [#allocation33], 16
    $region169: #{tpu_custom_call.1} parent=1 // pred_fallthru
      _
    %v336 = vld [vmem:[#allocation2] sm:$0xff]
    %v337 = vld [vmem:[#allocation2 + $0x8] sm:$0xff]
    %v338 = vld [vmem:[#allocation2 + $0x10] sm:$0xff]
    %v339 = vld [vmem:[#allocation2 + $0x18] sm:$0xff]
    %v340 = vld [vmem:[#allocation2 + $0x20] sm:$0xff]
    %v341 = vld [vmem:[#allocation2 + $0x28] sm:$0xff]
    %v342 = vld [vmem:[#allocation2 + $0x30] sm:$0xff]
    %v343 = vld [vmem:[#allocation2 + $0x38] sm:$0xff]
    %v344 = vld [vmem:[#allocation2 + $0x40] sm:$0xff]
    %v345 = vld [vmem:[#allocation2 + $0x48] sm:$0xff]
    %v346 = vld [vmem:[#allocation2 + $0x50] sm:$0xff]
    %v347 = vld [vmem:[#allocation2 + $0x58] sm:$0xff]
    %v348 = vld [vmem:[#allocation2 + $0x60] sm:$0xff]
    %v349 = vld [vmem:[#allocation2 + $0x68] sm:$0xff]
    %v350 = vld [vmem:[#allocation2 + $0x70] sm:$0xff]
    %v351 = vld [vmem:[#allocation2 + $0x78] sm:$0xff]
    %v352 = vld [vmem:[#allocation2 + $0x80] sm:$0xff]
    %v353 = vld [vmem:[#allocation2 + $0x88] sm:$0xff]
    %v354 = vld [vmem:[#allocation2 + $0x90] sm:$0xff]
    %v355 = vld [vmem:[#allocation2 + $0x98] sm:$0xff]
    %v356 = vld [vmem:[#allocation2 + $0xa0] sm:$0xff]
    %v357 = vld [vmem:[#allocation2 + $0xa8] sm:$0xff]
    %v358 = vld [vmem:[#allocation2 + $0xb0] sm:$0xff]
    %v359 = vld [vmem:[#allocation2 + $0xb8] sm:$0xff]
    %v360 = vld [vmem:[#allocation2 + $0xc0] sm:$0xff]
    %v361 = vld [vmem:[#allocation2 + $0xc8] sm:$0xff]
    %v362 = vld [vmem:[#allocation2 + $0xd0] sm:$0xff]
    %v363 = vld [vmem:[#allocation2 + $0xd8] sm:$0xff]
    %v364 = vld [vmem:[#allocation2 + $0xe0] sm:$0xff]
    %v365 = vld [vmem:[#allocation2 + $0xe8] sm:$0xff]
    %v366 = vld [vmem:[#allocation2 + $0xf0] sm:$0xff]
    %v367 = vld [vmem:[#allocation2 + $0xf8] sm:$0xff]
    %v368 = vld [vmem:[#allocation5] sm:$0xff]
    %v369 = vld [vmem:[#allocation5 + $0x8] sm:$0xff]
    %v370 = vld [vmem:[#allocation5 + $0x10] sm:$0xff]
    %v371 = vld [vmem:[#allocation5 + $0x18] sm:$0xff]
    %v372 = vld [vmem:[#allocation5 + $0x20] sm:$0xff]
    %v373 = vld [vmem:[#allocation5 + $0x28] sm:$0xff]
    %v374 = vld [vmem:[#allocation5 + $0x30] sm:$0xff]
    %v375 = vld [vmem:[#allocation5 + $0x38] sm:$0xff]
    %v376 = vld [vmem:[#allocation5 + $0x40] sm:$0xff]
    %v377 = vld [vmem:[#allocation5 + $0x48] sm:$0xff]
    %v378 = vld [vmem:[#allocation5 + $0x50] sm:$0xff]
    %v379 = vld [vmem:[#allocation5 + $0x58] sm:$0xff]
    %v380 = vld [vmem:[#allocation5 + $0x60] sm:$0xff]
    %v381 = vld [vmem:[#allocation5 + $0x68] sm:$0xff]
    %v382 = vld [vmem:[#allocation5 + $0x70] sm:$0xff]
    %v383 = vld [vmem:[#allocation5 + $0x78] sm:$0xff]
    %v384 = vld [vmem:[#allocation5 + $0x80] sm:$0xff]
    %v385 = vld [vmem:[#allocation5 + $0x88] sm:$0xff]
    %v386 = vld [vmem:[#allocation5 + $0x90] sm:$0xff]
    %v387 = vld [vmem:[#allocation5 + $0x98] sm:$0xff]
    %v388 = vld [vmem:[#allocation5 + $0xa0] sm:$0xff]
    %v389 = vld [vmem:[#allocation5 + $0xa8] sm:$0xff]
    %v390 = vld [vmem:[#allocation5 + $0xb0] sm:$0xff]
    %v391 = vld [vmem:[#allocation5 + $0xb8] sm:$0xff]
    %v392 = vld [vmem:[#allocation5 + $0xc0] sm:$0xff]
    %v393 = vld [vmem:[#allocation5 + $0xc8] sm:$0xff]
    %v394 = vld [vmem:[#allocation5 + $0xd0] sm:$0xff]
    %v395 = vld [vmem:[#allocation5 + $0xd8] sm:$0xff]
    %v396 = vld [vmem:[#allocation5 + $0xe0] sm:$0xff]
    %v397 = vld [vmem:[#allocation5 + $0xe8] sm:$0xff]
    %v398 = vld [vmem:[#allocation5 + $0xf0] sm:$0xff]
    %v399 = vld [vmem:[#allocation5 + $0xf8] sm:$0xff]
    %v400 = vld [vmem:[#allocation7] sm:$0x1]
    %v402 = vlaneseq
    %v403 = vshrl.u32 %v402, 7
    %v404 = vsub.s32 0, %v403
    %v405 = vrot.slane %v400, %v404
    %407 = vmatprep.subr.mxu0 0.0
    %408 = vmatpush1.msra.mxu0 %v368
    %409 = vmatprep.subr.mxu0 0.0
    %410 = vmatpush1.msra.mxu0 %v369
    %411 = vmatprep.subr.mxu0 0.0
    %412 = vmatpush1.msra.mxu0 %v370
    %413 = vmatprep.subr.mxu0 0.0
    %414 = vmatpush1.msra.mxu0 %v371
    %415 = vmatprep.subr.mxu0 0.0
    %416 = vmatpush1.msra.mxu0 %v372
    %417 = vmatprep.subr.mxu0 0.0
    %418 = vmatpush1.msra.mxu0 %v373
    %419 = vmatprep.subr.mxu0 0.0
    %420 = vmatpush1.msra.mxu0 %v374
    %421 = vmatprep.subr.mxu0 0.0
    %422 = vmatpush1.msra.mxu0 %v375
    %423 = vmatprep.subr.mxu0 0.0
    %424 = vmatpush1.msra.mxu0 %v376
    %425 = vmatprep.subr.mxu0 0.0
    %426 = vmatpush1.msra.mxu0 %v377
    %427 = vmatprep.subr.mxu0 0.0
    %428 = vmatpush1.msra.mxu0 %v378
    %429 = vmatprep.subr.mxu0 0.0
    %430 = vmatpush1.msra.mxu0 %v379
    %431 = vmatprep.subr.mxu0 0.0
    %432 = vmatpush1.msra.mxu0 %v380
    %433 = vmatprep.subr.mxu0 0.0
    %434 = vmatpush1.msra.mxu0 %v381
    %435 = vmatprep.subr.mxu0 0.0
    %436 = vmatpush1.msra.mxu0 %v382
    %437 = vmatprep.subr.mxu0 0.0
    %438 = vmatpush1.msra.mxu0 %v383
    %439 = vmatprep.subr.mxu0 0.0
    %440 = vmatpush1.msra.mxu0 %v384
    %441 = vmatprep.subr.mxu0 0.0
    %442 = vmatpush1.msra.mxu0 %v385
    %443 = vmatprep.subr.mxu0 0.0
    %444 = vmatpush1.msra.mxu0 %v386
    %445 = vmatprep.subr.mxu0 0.0
    %446 = vmatpush1.msra.mxu0 %v387
    %447 = vmatprep.subr.mxu0 0.0
    %448 = vmatpush1.msra.mxu0 %v388
    %449 = vmatprep.subr.mxu0 0.0
    %450 = vmatpush1.msra.mxu0 %v389
    %451 = vmatprep.subr.mxu0 0.0
    %452 = vmatpush1.msra.mxu0 %v390
    %453 = vmatprep.subr.mxu0 0.0
    %454 = vmatpush1.msra.mxu0 %v391
    %455 = vmatprep.subr.mxu0 0.0
    %456 = vmatpush1.msra.mxu0 %v392
    %457 = vmatprep.subr.mxu0 0.0
    %458 = vmatpush1.msra.mxu0 %v393
    %459 = vmatprep.subr.mxu0 0.0
    %460 = vmatpush1.msra.mxu0 %v394
    %461 = vmatprep.subr.mxu0 0.0
    %462 = vmatpush1.msra.mxu0 %v395
    %463 = vmatprep.subr.mxu0 0.0
    %464 = vmatpush1.msra.mxu0 %v396
    %465 = vmatprep.subr.mxu0 0.0
    %466 = vmatpush1.msra.mxu0 %v397
    %467 = vmatprep.subr.mxu0 0.0
    %468 = vmatpush1.msra.mxu0 %v398
    %469 = vmatprep.subr.mxu0 0.0
    %470 = vmatpush1.msra.mxu0 %v399
    %471 = vmatprep.mubr.f32.mxu0 %v337
    %472 = vmatmul.mubr.f32.gmra.mrb[0].mxu0 %v336
    %v473 = vpop.f32.mrb[0].mxu0
    %v474 = vadd.f32 %v405, %v473
    %v475 = vpop.f32.mrb[0].mxu0
    %476 = vmatprep.mubr.f32.mxu0 %v339
    %477 = vmatmul.mubr.f32.gmra.mrb[0].mxu0 %v338
    %v478 = vpop.f32.mrb[0].mxu0
    %v479 = vadd.f32 %v405, %v478
    %v480 = vpop.f32.mrb[0].mxu0
    %481 = vmatprep.mubr.f32.mxu0 %v341
    %482 = vmatmul.mubr.f32.gmra.mrb[0].mxu0 %v340
    %v483 = vpop.f32.mrb[0].mxu0
    %v484 = vadd.f32 %v405, %v483
    %v485 = vpop.f32.mrb[0].mxu0
    %486 = vmatprep.mubr.f32.mxu0 %v343
    %487 = vmatmul.mubr.f32.gmra.mrb[0].mxu0 %v342
    %v488 = vpop.f32.mrb[0].mxu0
    %v489 = vadd.f32 %v405, %v488
    %v490 = vpop.f32.mrb[0].mxu0
    %491 = vmatprep.mubr.f32.mxu0 %v345
    %492 = vmatmul.mubr.f32.gmra.mrb[0].mxu0 %v344
    %v493 = vpop.f32.mrb[0].mxu0
    %v494 = vadd.f32 %v405, %v493
    %v495 = vpop.f32.mrb[0].mxu0
    %496 = vmatprep.mubr.f32.mxu0 %v347
    %497 = vmatmul.mubr.f32.gmra.mrb[0].mxu0 %v346
    %v498 = vpop.f32.mrb[0].mxu0
    %v499 = vadd.f32 %v405, %v498
    %v500 = vpop.f32.mrb[0].mxu0
    %501 = vmatprep.mubr.f32.mxu0 %v349
    %502 = vmatmul.mubr.f32.gmra.mrb[0].mxu0 %v348
    %v503 = vpop.f32.mrb[0].mxu0
    %v504 = vadd.f32 %v405, %v503
    %v505 = vpop.f32.mrb[0].mxu0
    %506 = vmatprep.mubr.f32.mxu0 %v351
    %507 = vmatmul.mubr.f32.gmra.mrb[0].mxu0 %v350
    %v508 = vpop.f32.mrb[0].mxu0
    %v509 = vadd.f32 %v405, %v508
    %v510 = vpop.f32.mrb[0].mxu0
    %511 = vmatprep.mubr.f32.mxu0 %v353
    %512 = vmatmul.mubr.f32.gmra.mrb[0].mxu0 %v352
    %v513 = vpop.f32.mrb[0].mxu0
    %v514 = vadd.f32 %v405, %v513
    %v515 = vpop.f32.mrb[0].mxu0
    %516 = vmatprep.mubr.f32.mxu0 %v355
    %517 = vmatmul.mubr.f32.gmra.mrb[0].mxu0 %v354
    %v518 = vpop.f32.mrb[0].mxu0
    %v519 = vadd.f32 %v405, %v518
    %v520 = vpop.f32.mrb[0].mxu0
    %521 = vmatprep.mubr.f32.mxu0 %v357
    %522 = vmatmul.mubr.f32.gmra.mrb[0].mxu0 %v356
    %v523 = vpop.f32.mrb[0].mxu0
    %v524 = vadd.f32 %v405, %v523
    %v525 = vpop.f32.mrb[0].mxu0
    %526 = vmatprep.mubr.f32.mxu0 %v359
    %527 = vmatmul.mubr.f32.gmra.mrb[0].mxu0 %v358
    %v528 = vpop.f32.mrb[0].mxu0
    %v529 = vadd.f32 %v405, %v528
    %v530 = vpop.f32.mrb[0].mxu0
    %531 = vmatprep.mubr.f32.mxu0 %v361
    %532 = vmatmul.mubr.f32.gmra.mrb[0].mxu0 %v360
    %v533 = vpop.f32.mrb[0].mxu0
    %v534 = vadd.f32 %v405, %v533
    %v535 = vpop.f32.mrb[0].mxu0
    %536 = vmatprep.mubr.f32.mxu0 %v363
    %537 = vmatmul.mubr.f32.gmra.mrb[0].mxu0 %v362
    %v538 = vpop.f32.mrb[0].mxu0
    %v539 = vadd.f32 %v405, %v538
    %v540 = vpop.f32.mrb[0].mxu0
    %541 = vmatprep.mubr.f32.mxu0 %v365
    %542 = vmatmul.mubr.f32.gmra.mrb[0].mxu0 %v364
    %v543 = vpop.f32.mrb[0].mxu0
    %v544 = vadd.f32 %v405, %v543
    %v545 = vpop.f32.mrb[0].mxu0
    %546 = vmatprep.mubr.f32.mxu0 %v367
    %547 = vmatmul.mubr.f32.gmra.mrb[0].mxu0 %v366
    %v548 = vpop.f32.mrb[0].mxu0
    %v549 = vadd.f32 %v405, %v548
    %v550 = vpop.f32.mrb[0].mxu0
    %551 = vdwg.mxu0
    %v552 = vmax.f32 %v474, 0.0
    %v553 = vmax.f32 %v479, 0.0
    %v554 = vmax.f32 %v484, 0.0
    %v555 = vmax.f32 %v489, 0.0
    %v556 = vmax.f32 %v494, 0.0
    %v557 = vmax.f32 %v499, 0.0
    %v558 = vmax.f32 %v504, 0.0
    %v559 = vmax.f32 %v509, 0.0
    %v560 = vmax.f32 %v514, 0.0
    %v561 = vmax.f32 %v519, 0.0
    %v562 = vmax.f32 %v524, 0.0
    %v563 = vmax.f32 %v529, 0.0
    %v564 = vmax.f32 %v534, 0.0
    %v565 = vmax.f32 %v539, 0.0
    %v566 = vmax.f32 %v544, 0.0
    %v567 = vmax.f32 %v549, 0.0
    %v568 = vld [vmem:[#allocation8] sm:$0xff]
    %v569 = vld [vmem:[#allocation8 + $0x8] sm:$0xff]
    %v570 = vld [vmem:[#allocation8 + $0x10] sm:$0xff]
    %v571 = vld [vmem:[#allocation8 + $0x18] sm:$0xff]
    %v572 = vld [vmem:[#allocation8 + $0x20] sm:$0xff]
    %v573 = vld [vmem:[#allocation8 + $0x28] sm:$0xff]
    %v574 = vld [vmem:[#allocation8 + $0x30] sm:$0xff]
    %v575 = vld [vmem:[#allocation8 + $0x38] sm:$0xff]
    %v576 = vld [vmem:[#allocation8 + $0x40] sm:$0xff]
    %v577 = vld [vmem:[#allocation8 + $0x48] sm:$0xff]
    %v578 = vld [vmem:[#allocation8 + $0x50] sm:$0xff]
    %v579 = vld [vmem:[#allocation8 + $0x58] sm:$0xff]
    %v580 = vld [vmem:[#allocation8 + $0x60] sm:$0xff]
    %v581 = vld [vmem:[#allocation8 + $0x68] sm:$0xff]
    %v582 = vld [vmem:[#allocation8 + $0x70] sm:$0xff]
    %v583 = vld [vmem:[#allocation8 + $0x78] sm:$0xff]
    %v584 = vld [vmem:[#allocation10] sm:$0x1]
    %v586 = vlaneseq
    %v587 = vshrl.u32 %v586, 7
    %v588 = vsub.s32 0, %v587
    %v589 = vrot.slane %v584, %v588
    %591 = vmatprep.subr.mxu0 0.0
    %592 = vmatpush1.msra.mxu0 %v568
    %593 = vmatprep.subr.mxu0 0.0
    %594 = vmatpush1.msra.mxu0 %v569
    %595 = vmatprep.subr.mxu0 0.0
    %596 = vmatpush1.msra.mxu0 %v570
    %597 = vmatprep.subr.mxu0 0.0
    %598 = vmatpush1.msra.mxu0 %v571
    %599 = vmatprep.subr.mxu0 0.0
    %600 = vmatpush1.msra.mxu0 %v572
    %601 = vmatprep.subr.mxu0 0.0
    %602 = vmatpush1.msra.mxu0 %v573
    %603 = vmatprep.subr.mxu0 0.0
    %604 = vmatpush1.msra.mxu0 %v574
    %605 = vmatprep.subr.mxu0 0.0
    %606 = vmatpush1.msra.mxu0 %v575
    %607 = vmatprep.subr.mxu0 0.0
    %608 = vmatpush1.msra.mxu0 %v576
    %609 = vmatprep.subr.mxu0 0.0
    %610 = vmatpush1.msra.mxu0 %v577
    %611 = vmatprep.subr.mxu0 0.0
    %612 = vmatpush1.msra.mxu0 %v578
    %613 = vmatprep.subr.mxu0 0.0
    %614 = vmatpush1.msra.mxu0 %v579
    %615 = vmatprep.subr.mxu0 0.0
    %616 = vmatpush1.msra.mxu0 %v580
    %617 = vmatprep.subr.mxu0 0.0
    %618 = vmatpush1.msra.mxu0 %v581
    %619 = vmatprep.subr.mxu0 0.0
    %620 = vmatpush1.msra.mxu0 %v582
    %621 = vmatprep.subr.mxu0 0.0
    %622 = vmatpush1.msra.mxu0 %v583
    %623 = vmatprep.subr.mxu0 0.0
    %624 = vmatpush1.msra.mxu0 0.0
    %625 = vmatprep.subr.mxu0 0.0
    %626 = vmatpush1.msra.mxu0 0.0
    %627 = vmatprep.subr.mxu0 0.0
    %628 = vmatpush1.msra.mxu0 0.0
    %629 = vmatprep.subr.mxu0 0.0
    %630 = vmatpush1.msra.mxu0 0.0
    %631 = vmatprep.subr.mxu0 0.0
    %632 = vmatpush1.msra.mxu0 0.0
    %633 = vmatprep.subr.mxu0 0.0
    %634 = vmatpush1.msra.mxu0 0.0
    %635 = vmatprep.subr.mxu0 0.0
    %636 = vmatpush1.msra.mxu0 0.0
    %637 = vmatprep.subr.mxu0 0.0
    %638 = vmatpush1.msra.mxu0 0.0
    %639 = vmatprep.subr.mxu0 0.0
    %640 = vmatpush1.msra.mxu0 0.0
    %641 = vmatprep.subr.mxu0 0.0
    %642 = vmatpush1.msra.mxu0 0.0
    %643 = vmatprep.subr.mxu0 0.0
    %644 = vmatpush1.msra.mxu0 0.0
    %645 = vmatprep.subr.mxu0 0.0
    %646 = vmatpush1.msra.mxu0 0.0
    %647 = vmatprep.subr.mxu0 0.0
    %648 = vmatpush1.msra.mxu0 0.0
    %649 = vmatprep.subr.mxu0 0.0
    %650 = vmatpush1.msra.mxu0 0.0
    %651 = vmatprep.subr.mxu0 0.0
    %652 = vmatpush1.msra.mxu0 0.0
    %653 = vmatprep.subr.mxu0 0.0
    %654 = vmatpush1.msra.mxu0 0.0
    %655 = vmatprep.mubr.f32.mxu0 0.0
    %656 = vmatmul.mubr.f32.gmra.mrb[0].mxu0 %v552
    %v657 = vpop.f32.mrb[0].mxu0
    %v658 = vadd.f32 %v589, %v657
    %v659 = vpop.f32.mrb[0].mxu0
    %660 = vmatprep.mubr.f32.mxu0 0.0
    %661 = vmatmul.mubr.f32.gmra.mrb[0].mxu0 %v553
    %v662 = vpop.f32.mrb[0].mxu0
    %v663 = vadd.f32 %v589, %v662
    %v664 = vpop.f32.mrb[0].mxu0
    %665 = vmatprep.mubr.f32.mxu0 0.0
    %666 = vmatmul.mubr.f32.gmra.mrb[0].mxu0 %v554
    %v667 = vpop.f32.mrb[0].mxu0
    %v668 = vadd.f32 %v589, %v667
    %v669 = vpop.f32.mrb[0].mxu0
    %670 = vmatprep.mubr.f32.mxu0 0.0
    %671 = vmatmul.mubr.f32.gmra.mrb[0].mxu0 %v555
    %v672 = vpop.f32.mrb[0].mxu0
    %v673 = vadd.f32 %v589, %v672
    %v674 = vpop.f32.mrb[0].mxu0
    %675 = vmatprep.mubr.f32.mxu0 0.0
    %676 = vmatmul.mubr.f32.gmra.mrb[0].mxu0 %v556
    %v677 = vpop.f32.mrb[0].mxu0
    %v678 = vadd.f32 %v589, %v677
    %v679 = vpop.f32.mrb[0].mxu0
    %680 = vmatprep.mubr.f32.mxu0 0.0
    %681 = vmatmul.mubr.f32.gmra.mrb[0].mxu0 %v557
    %v682 = vpop.f32.mrb[0].mxu0
    %v683 = vadd.f32 %v589, %v682
    %v684 = vpop.f32.mrb[0].mxu0
    %685 = vmatprep.mubr.f32.mxu0 0.0
    %686 = vmatmul.mubr.f32.gmra.mrb[0].mxu0 %v558
    %v687 = vpop.f32.mrb[0].mxu0
    %v688 = vadd.f32 %v589, %v687
    %v689 = vpop.f32.mrb[0].mxu0
    %690 = vmatprep.mubr.f32.mxu0 0.0
    %691 = vmatmul.mubr.f32.gmra.mrb[0].mxu0 %v559
    %v692 = vpop.f32.mrb[0].mxu0
    %v693 = vadd.f32 %v589, %v692
    %v694 = vpop.f32.mrb[0].mxu0
    %695 = vmatprep.mubr.f32.mxu0 0.0
    %696 = vmatmul.mubr.f32.gmra.mrb[0].mxu0 %v560
    %v697 = vpop.f32.mrb[0].mxu0
    %v698 = vadd.f32 %v589, %v697
    %v699 = vpop.f32.mrb[0].mxu0
    %700 = vmatprep.mubr.f32.mxu0 0.0
    %701 = vmatmul.mubr.f32.gmra.mrb[0].mxu0 %v561
    %v702 = vpop.f32.mrb[0].mxu0
    %v703 = vadd.f32 %v589, %v702
    %v704 = vpop.f32.mrb[0].mxu0
    %705 = vmatprep.mubr.f32.mxu0 0.0
    %706 = vmatmul.mubr.f32.gmra.mrb[0].mxu0 %v562
    %v707 = vpop.f32.mrb[0].mxu0
    %v708 = vadd.f32 %v589, %v707
    %v709 = vpop.f32.mrb[0].mxu0
    %710 = vmatprep.mubr.f32.mxu0 0.0
    %711 = vmatmul.mubr.f32.gmra.mrb[0].mxu0 %v563
    %v712 = vpop.f32.mrb[0].mxu0
    %v713 = vadd.f32 %v589, %v712
    %v714 = vpop.f32.mrb[0].mxu0
    %715 = vmatprep.mubr.f32.mxu0 0.0
    %716 = vmatmul.mubr.f32.gmra.mrb[0].mxu0 %v564
    %v717 = vpop.f32.mrb[0].mxu0
    %v718 = vadd.f32 %v589, %v717
    %v719 = vpop.f32.mrb[0].mxu0
    %720 = vmatprep.mubr.f32.mxu0 0.0
    %721 = vmatmul.mubr.f32.gmra.mrb[0].mxu0 %v565
    %v722 = vpop.f32.mrb[0].mxu0
    %v723 = vadd.f32 %v589, %v722
    %v724 = vpop.f32.mrb[0].mxu0
    %725 = vmatprep.mubr.f32.mxu0 0.0
    %726 = vmatmul.mubr.f32.gmra.mrb[0].mxu0 %v566
    %v727 = vpop.f32.mrb[0].mxu0
    %v728 = vadd.f32 %v589, %v727
    %v729 = vpop.f32.mrb[0].mxu0
    %730 = vmatprep.mubr.f32.mxu0 0.0
    %731 = vmatmul.mubr.f32.gmra.mrb[0].mxu0 %v567
    %v732 = vpop.f32.mrb[0].mxu0
    %v733 = vadd.f32 %v589, %v732
    %v734 = vpop.f32.mrb[0].mxu0
    %735 = vdwg.mxu0
    %v736 = vmax.f32 %v658, %v663
    %v737 = vrot.slane %v736, 4
    %v738 = vmax.f32 %v736, %v737
    %v739 = vrot.slane %v738, 2
    %v740 = vmax.f32 %v738, %v739
    %v741 = vrot.slane %v740, 1
    %v742 = vmax.f32 %v740, %v741
    %v743 = vmax.f32 %v668, %v673
    %v744 = vrot.slane %v743, 4
    %v745 = vmax.f32 %v743, %v744
    %v746 = vrot.slane %v745, 2
    %v747 = vmax.f32 %v745, %v746
    %v748 = vrot.slane %v747, 1
    %v749 = vmax.f32 %v747, %v748
    %v750 = vmax.f32 %v678, %v683
    %v751 = vrot.slane %v750, 4
    %v752 = vmax.f32 %v750, %v751
    %v753 = vrot.slane %v752, 2
    %v754 = vmax.f32 %v752, %v753
    %v755 = vrot.slane %v754, 1
    %v756 = vmax.f32 %v754, %v755
    %v757 = vmax.f32 %v688, %v693
    %v758 = vrot.slane %v757, 4
    %v759 = vmax.f32 %v757, %v758
    %v760 = vrot.slane %v759, 2
    %v761 = vmax.f32 %v759, %v760
    %v762 = vrot.slane %v761, 1
    %v763 = vmax.f32 %v761, %v762
    %v764 = vmax.f32 %v698, %v703
    %v765 = vrot.slane %v764, 4
    %v766 = vmax.f32 %v764, %v765
    %v767 = vrot.slane %v766, 2
    %v768 = vmax.f32 %v766, %v767
    %v769 = vrot.slane %v768, 1
    %v770 = vmax.f32 %v768, %v769
    %v771 = vmax.f32 %v708, %v713
    %v772 = vrot.slane %v771, 4
    %v773 = vmax.f32 %v771, %v772
    %v774 = vrot.slane %v773, 2
    %v775 = vmax.f32 %v773, %v774
    %v776 = vrot.slane %v775, 1
    %v777 = vmax.f32 %v775, %v776
    %v778 = vmax.f32 %v718, %v723
    %v779 = vrot.slane %v778, 4
    %v780 = vmax.f32 %v778, %v779
    %v781 = vrot.slane %v780, 2
    %v782 = vmax.f32 %v780, %v781
    %v783 = vrot.slane %v782, 1
    %v784 = vmax.f32 %v782, %v783
    %v785 = vmax.f32 %v728, %v733
    %v786 = vrot.slane %v785, 4
    %v787 = vmax.f32 %v785, %v786
    %v788 = vrot.slane %v787, 2
    %v789 = vmax.f32 %v787, %v788
    %v790 = vrot.slane %v789, 1
    %v791 = vmax.f32 %v789, %v790
    %v792 = vld [vmem:[#allocation11] sm:$0xff]
    %v793 = vld [vmem:[#allocation11 + $0x8] sm:$0xff]
    %v794 = vld [vmem:[#allocation11 + $0x10] sm:$0xff]
    %v795 = vld [vmem:[#allocation11 + $0x18] sm:$0xff]
    %v796 = vld [vmem:[#allocation11 + $0x20] sm:$0xff]
    %v797 = vld [vmem:[#allocation11 + $0x28] sm:$0xff]
    %v798 = vld [vmem:[#allocation11 + $0x30] sm:$0xff]
    %v799 = vld [vmem:[#allocation11 + $0x38] sm:$0xff]
    %v800 = vld [vmem:[#allocation11 + $0x40] sm:$0xff]
    %v801 = vld [vmem:[#allocation11 + $0x48] sm:$0xff]
    %v802 = vld [vmem:[#allocation11 + $0x50] sm:$0xff]
    %v803 = vld [vmem:[#allocation11 + $0x58] sm:$0xff]
    %v804 = vld [vmem:[#allocation11 + $0x60] sm:$0xff]
    %v805 = vld [vmem:[#allocation11 + $0x68] sm:$0xff]
    %v806 = vld [vmem:[#allocation11 + $0x70] sm:$0xff]
    %v807 = vld [vmem:[#allocation11 + $0x78] sm:$0xff]
    %v808 = vld [vmem:[#allocation11 + $0x80] sm:$0xff]
    %v809 = vld [vmem:[#allocation11 + $0x88] sm:$0xff]
    %v810 = vld [vmem:[#allocation11 + $0x90] sm:$0xff]
    %v811 = vld [vmem:[#allocation11 + $0x98] sm:$0xff]
    %v812 = vld [vmem:[#allocation11 + $0xa0] sm:$0xff]
    %v813 = vld [vmem:[#allocation11 + $0xa8] sm:$0xff]
    %v814 = vld [vmem:[#allocation11 + $0xb0] sm:$0xff]
    %v815 = vld [vmem:[#allocation11 + $0xb8] sm:$0xff]
    %v816 = vld [vmem:[#allocation11 + $0xc0] sm:$0xff]
    %v817 = vld [vmem:[#allocation11 + $0xc8] sm:$0xff]
    %v818 = vld [vmem:[#allocation11 + $0xd0] sm:$0xff]
    %v819 = vld [vmem:[#allocation11 + $0xd8] sm:$0xff]
    %v820 = vld [vmem:[#allocation11 + $0xe0] sm:$0xff]
    %v821 = vld [vmem:[#allocation11 + $0xe8] sm:$0xff]
    %v822 = vld [vmem:[#allocation11 + $0xf0] sm:$0xff]
    %v823 = vld [vmem:[#allocation11 + $0xf8] sm:$0xff]
    %v824 = vld [vmem:[#allocation11 + $0x100] sm:$0xff]
    %v825 = vld [vmem:[#allocation11 + $0x108] sm:$0xff]
    %v826 = vld [vmem:[#allocation11 + $0x110] sm:$0xff]
    %v827 = vld [vmem:[#allocation11 + $0x118] sm:$0xff]
    %v828 = vld [vmem:[#allocation11 + $0x120] sm:$0xff]
    %v829 = vld [vmem:[#allocation11 + $0x128] sm:$0xff]
    %v830 = vld [vmem:[#allocation11 + $0x130] sm:$0xff]
    %v831 = vld [vmem:[#allocation11 + $0x138] sm:$0xff]
    %v832 = vld [vmem:[#allocation11 + $0x140] sm:$0xff]
    %v833 = vld [vmem:[#allocation11 + $0x148] sm:$0xff]
    %v834 = vld [vmem:[#allocation11 + $0x150] sm:$0xff]
    %v835 = vld [vmem:[#allocation11 + $0x158] sm:$0xff]
    %v836 = vld [vmem:[#allocation11 + $0x160] sm:$0xff]
    %v837 = vld [vmem:[#allocation11 + $0x168] sm:$0xff]
    %v838 = vld [vmem:[#allocation11 + $0x170] sm:$0xff]
    %v839 = vld [vmem:[#allocation11 + $0x178] sm:$0xff]
    %v840 = vld [vmem:[#allocation11 + $0x180] sm:$0xff]
    %v841 = vld [vmem:[#allocation11 + $0x188] sm:$0xff]
    %v842 = vld [vmem:[#allocation11 + $0x190] sm:$0xff]
    %v843 = vld [vmem:[#allocation11 + $0x198] sm:$0xff]
    %v844 = vld [vmem:[#allocation11 + $0x1a0] sm:$0xff]
    %v845 = vld [vmem:[#allocation11 + $0x1a8] sm:$0xff]
    %v846 = vld [vmem:[#allocation11 + $0x1b0] sm:$0xff]
    %v847 = vld [vmem:[#allocation11 + $0x1b8] sm:$0xff]
    %v848 = vld [vmem:[#allocation11 + $0x1c0] sm:$0xff]
    %v849 = vld [vmem:[#allocation11 + $0x1c8] sm:$0xff]
    %v850 = vld [vmem:[#allocation11 + $0x1d0] sm:$0xff]
    %v851 = vld [vmem:[#allocation11 + $0x1d8] sm:$0xff]
    %v852 = vld [vmem:[#allocation11 + $0x1e0] sm:$0xff]
    %v853 = vld [vmem:[#allocation11 + $0x1e8] sm:$0xff]
    %v854 = vld [vmem:[#allocation11 + $0x1f0] sm:$0xff]
    %v855 = vld [vmem:[#allocation11 + $0x1f8] sm:$0xff]
    %v856 = vld [vmem:[#allocation11 + $0x200] sm:$0xff]
    %v857 = vld [vmem:[#allocation11 + $0x208] sm:$0xff]
    %v858 = vld [vmem:[#allocation11 + $0x210] sm:$0xff]
    %v859 = vld [vmem:[#allocation11 + $0x218] sm:$0xff]
    %v860 = vld [vmem:[#allocation11 + $0x220] sm:$0xff]
    %v861 = vld [vmem:[#allocation11 + $0x228] sm:$0xff]
    %v862 = vld [vmem:[#allocation11 + $0x230] sm:$0xff]
    %v863 = vld [vmem:[#allocation11 + $0x238] sm:$0xff]
    %v864 = vld [vmem:[#allocation11 + $0x240] sm:$0xff]
    %v865 = vld [vmem:[#allocation11 + $0x248] sm:$0xff]
    %v866 = vld [vmem:[#allocation11 + $0x250] sm:$0xff]
    %v867 = vld [vmem:[#allocation11 + $0x258] sm:$0xff]
    %v868 = vld [vmem:[#allocation11 + $0x260] sm:$0xff]
    %v869 = vld [vmem:[#allocation11 + $0x268] sm:$0xff]
    %v870 = vld [vmem:[#allocation11 + $0x270] sm:$0xff]
    %v871 = vld [vmem:[#allocation11 + $0x278] sm:$0xff]
    %v872 = vld [vmem:[#allocation11 + $0x280] sm:$0xff]
    %v873 = vld [vmem:[#allocation11 + $0x288] sm:$0xff]
    %v874 = vld [vmem:[#allocation11 + $0x290] sm:$0xff]
    %v875 = vld [vmem:[#allocation11 + $0x298] sm:$0xff]
    %v876 = vld [vmem:[#allocation11 + $0x2a0] sm:$0xff]
    %v877 = vld [vmem:[#allocation11 + $0x2a8] sm:$0xff]
    %v878 = vld [vmem:[#allocation11 + $0x2b0] sm:$0xff]
    %v879 = vld [vmem:[#allocation11 + $0x2b8] sm:$0xff]
    %v880 = vld [vmem:[#allocation11 + $0x2c0] sm:$0xff]
    %v881 = vld [vmem:[#allocation11 + $0x2c8] sm:$0xff]
    %v882 = vld [vmem:[#allocation11 + $0x2d0] sm:$0xff]
    %v883 = vld [vmem:[#allocation11 + $0x2d8] sm:$0xff]
    %v884 = vld [vmem:[#allocation11 + $0x2e0] sm:$0xff]
    %v885 = vld [vmem:[#allocation11 + $0x2e8] sm:$0xff]
    %v886 = vld [vmem:[#allocation11 + $0x2f0] sm:$0xff]
    %v887 = vld [vmem:[#allocation11 + $0x2f8] sm:$0xff]
    %v888 = vld [vmem:[#allocation11 + $0x300] sm:$0xff]
    %v889 = vld [vmem:[#allocation11 + $0x308] sm:$0xff]
    %v890 = vld [vmem:[#allocation11 + $0x310] sm:$0xff]
    %v891 = vld [vmem:[#allocation11 + $0x318] sm:$0xff]
    %v892 = vld [vmem:[#allocation11 + $0x320] sm:$0xff]
    %v893 = vld [vmem:[#allocation11 + $0x328] sm:$0xff]
    %v894 = vld [vmem:[#allocation11 + $0x330] sm:$0xff]
    %v895 = vld [vmem:[#allocation11 + $0x338] sm:$0xff]
    %v896 = vld [vmem:[#allocation11 + $0x340] sm:$0xff]
    %v897 = vld [vmem:[#allocation11 + $0x348] sm:$0xff]
    %v898 = vld [vmem:[#allocation11 + $0x350] sm:$0xff]
    %v899 = vld [vmem:[#allocation11 + $0x358] sm:$0xff]
    %v900 = vld [vmem:[#allocation11 + $0x360] sm:$0xff]
    %v901 = vld [vmem:[#allocation11 + $0x368] sm:$0xff]
    %v902 = vld [vmem:[#allocation11 + $0x370] sm:$0xff]
    %v903 = vld [vmem:[#allocation11 + $0x378] sm:$0xff]
    %v904 = vld [vmem:[#allocation11 + $0x380] sm:$0xff]
    %v905 = vld [vmem:[#allocation11 + $0x388] sm:$0xff]
    %v906 = vld [vmem:[#allocation11 + $0x390] sm:$0xff]
    %v907 = vld [vmem:[#allocation11 + $0x398] sm:$0xff]
    %v908 = vld [vmem:[#allocation11 + $0x3a0] sm:$0xff]
    %v909 = vld [vmem:[#allocation11 + $0x3a8] sm:$0xff]
    %v910 = vld [vmem:[#allocation11 + $0x3b0] sm:$0xff]
    %v911 = vld [vmem:[#allocation11 + $0x3b8] sm:$0xff]
    %v912 = vld [vmem:[#allocation11 + $0x3c0] sm:$0xff]
    %v913 = vld [vmem:[#allocation11 + $0x3c8] sm:$0xff]
    %v914 = vld [vmem:[#allocation11 + $0x3d0] sm:$0xff]
    %v915 = vld [vmem:[#allocation11 + $0x3d8] sm:$0xff]
    %v916 = vld [vmem:[#allocation11 + $0x3e0] sm:$0xff]
    %v917 = vld [vmem:[#allocation11 + $0x3e8] sm:$0xff]
    %v918 = vld [vmem:[#allocation11 + $0x3f0] sm:$0xff]
    %v919 = vld [vmem:[#allocation11 + $0x3f8] sm:$0xff]
    %v920 = vld [vmem:[#allocation13] sm:$0xff]
    %v922 = vlaneseq
    %v923 = vshrl.u32 %v922, 7
    %v924 = vsub.s32 0, %v923
    %v925 = vrot.slane %v920, %v924
    %v926 = vlaneseq
    %v927 = vshrl.u32 %v926, 7
    %v928 = vsub.s32 1, %v927
    %v929 = vrot.slane %v920, %v928
    %v930 = vlaneseq
    %v931 = vshrl.u32 %v930, 7
    %v932 = vsub.s32 2, %v931
    %v933 = vrot.slane %v920, %v932
    %v934 = vlaneseq
    %v935 = vshrl.u32 %v934, 7
    %v936 = vsub.s32 3, %v935
    %v937 = vrot.slane %v920, %v936
    %v938 = vlaneseq
    %v939 = vshrl.u32 %v938, 7
    %v940 = vsub.s32 4, %v939
    %v941 = vrot.slane %v920, %v940
    %v942 = vlaneseq
    %v943 = vshrl.u32 %v942, 7
    %v944 = vsub.s32 5, %v943
    %v945 = vrot.slane %v920, %v944
    %v946 = vlaneseq
    %v947 = vshrl.u32 %v946, 7
    %v948 = vsub.s32 6, %v947
    %v949 = vrot.slane %v920, %v948
    %v950 = vlaneseq
    %v951 = vshrl.u32 %v950, 7
    %v952 = vsub.s32 7, %v951
    %v953 = vrot.slane %v920, %v952
    %vm970 = vcmask 1041409
    %v971 = vsel %vm970, %v749, %v742
    %vm972 = vcmask 1042434
    %v973 = vsel %vm972, %v756, %v971
    %vm974 = vcmask 1043459
    %v975 = vsel %vm974, %v763, %v973
    %vm976 = vcmask 1044484
    %v977 = vsel %vm976, %v770, %v975
    %vm978 = vcmask 1045509
    %v979 = vsel %vm978, %v777, %v977
    %vm980 = vcmask 1046534
    %v981 = vsel %vm980, %v784, %v979
    %vm982 = vcmask 1047559
    %v983 = vsel %vm982, %v791, %v981
    %985 = vmatprep.subr.mxu0 %v793
    %986 = vmatpush1.msra.mxu0 %v792
    %987 = vmatprep.subr.mxu0 %v801
    %988 = vmatpush1.msra.mxu0 %v800
    %989 = vmatprep.subr.mxu0 %v809
    %990 = vmatpush1.msra.mxu0 %v808
    %991 = vmatprep.subr.mxu0 %v817
    %992 = vmatpush1.msra.mxu0 %v816
    %993 = vmatprep.subr.mxu0 %v825
    %994 = vmatpush1.msra.mxu0 %v824
    %995 = vmatprep.subr.mxu0 %v833
    %996 = vmatpush1.msra.mxu0 %v832
    %997 = vmatprep.subr.mxu0 %v841
    %998 = vmatpush1.msra.mxu0 %v840
    %999 = vmatprep.subr.mxu0 %v849
    %1000 = vmatpush1.msra.mxu0 %v848
    %1001 = vmatprep.subr.mxu0 %v857
    %1002 = vmatpush1.msra.mxu0 %v856
    %1003 = vmatprep.subr.mxu0 %v865
    %1004 = vmatpush1.msra.mxu0 %v864
    %1005 = vmatprep.subr.mxu0 %v873
    %1006 = vmatpush1.msra.mxu0 %v872
    %1007 = vmatprep.subr.mxu0 %v881
    %1008 = vmatpush1.msra.mxu0 %v880
    %1009 = vmatprep.subr.mxu0 %v889
    %1010 = vmatpush1.msra.mxu0 %v888
    %1011 = vmatprep.subr.mxu0 %v897
    %1012 = vmatpush1.msra.mxu0 %v896
    %1013 = vmatprep.subr.mxu0 %v905
    %1014 = vmatpush1.msra.mxu0 %v904
    %1015 = vmatprep.subr.mxu0 %v913
    %1016 = vmatpush1.msra.mxu0 %v912
    %1017 = vmatprep.subr.mxu0 0.0
    %1018 = vmatpush1.msra.mxu0 0.0
    %1019 = vmatprep.subr.mxu0 0.0
    %1020 = vmatpush1.msra.mxu0 0.0
    %1021 = vmatprep.subr.mxu0 0.0
    %1022 = vmatpush1.msra.mxu0 0.0
    %1023 = vmatprep.subr.mxu0 0.0
    %1024 = vmatpush1.msra.mxu0 0.0
    %1025 = vmatprep.subr.mxu0 0.0
    %1026 = vmatpush1.msra.mxu0 0.0
    %1027 = vmatprep.subr.mxu0 0.0
    %1028 = vmatpush1.msra.mxu0 0.0
    %1029 = vmatprep.subr.mxu0 0.0
    %1030 = vmatpush1.msra.mxu0 0.0
    %1031 = vmatprep.subr.mxu0 0.0
    %1032 = vmatpush1.msra.mxu0 0.0
    %1033 = vmatprep.subr.mxu0 0.0
    %1034 = vmatpush1.msra.mxu0 0.0
    %1035 = vmatprep.subr.mxu0 0.0
    %1036 = vmatpush1.msra.mxu0 0.0
    %1037 = vmatprep.subr.mxu0 0.0
    %1038 = vmatpush1.msra.mxu0 0.0
    %1039 = vmatprep.subr.mxu0 0.0
    %1040 = vmatpush1.msra.mxu0 0.0
    %1041 = vmatprep.subr.mxu0 0.0
    %1042 = vmatpush1.msra.mxu0 0.0
    %1043 = vmatprep.subr.mxu0 0.0
    %1044 = vmatpush1.msra.mxu0 0.0
    %1045 = vmatprep.subr.mxu0 0.0
    %1046 = vmatpush1.msra.mxu0 0.0
    %1047 = vmatprep.subr.mxu0 0.0
    %1048 = vmatpush1.msra.mxu0 0.0
    %1049 = vmatprep.mubr.f32.mxu0 0.0
    %1050 = vmatmul.mubr.f32.gmra.mrb[0].mxu0 %v983
    %v1051 = vpop.f32.mrb[0].mxu0
    %v1052 = vadd.f32 %v925, %v1051
    %v1053 = vpop.f32.mrb[0].mxu0
    %v1054 = vadd.f32 %v929, %v1053
    %1055 = vdwg.mxu0
    %1056 = vmatprep.subr.mxu0 %v795
    %1057 = vmatpush1.msra.mxu0 %v794
    %1058 = vmatprep.subr.mxu0 %v803
    %1059 = vmatpush1.msra.mxu0 %v802
    %1060 = vmatprep.subr.mxu0 %v811
    %1061 = vmatpush1.msra.mxu0 %v810
    %1062 = vmatprep.subr.mxu0 %v819
    %1063 = vmatpush1.msra.mxu0 %v818
    %1064 = vmatprep.subr.mxu0 %v827
    %1065 = vmatpush1.msra.mxu0 %v826
    %1066 = vmatprep.subr.mxu0 %v835
    %1067 = vmatpush1.msra.mxu0 %v834
    %1068 = vmatprep.subr.mxu0 %v843
    %1069 = vmatpush1.msra.mxu0 %v842
    %1070 = vmatprep.subr.mxu0 %v851
    %1071 = vmatpush1.msra.mxu0 %v850
    %1072 = vmatprep.subr.mxu0 %v859
    %1073 = vmatpush1.msra.mxu0 %v858
    %1074 = vmatprep.subr.mxu0 %v867
    %1075 = vmatpush1.msra.mxu0 %v866
    %1076 = vmatprep.subr.mxu0 %v875
    %1077 = vmatpush1.msra.mxu0 %v874
    %1078 = vmatprep.subr.mxu0 %v883
    %1079 = vmatpush1.msra.mxu0 %v882
    %1080 = vmatprep.subr.mxu0 %v891
    %1081 = vmatpush1.msra.mxu0 %v890
    %1082 = vmatprep.subr.mxu0 %v899
    %1083 = vmatpush1.msra.mxu0 %v898
    %1084 = vmatprep.subr.mxu0 %v907
    %1085 = vmatpush1.msra.mxu0 %v906
    %1086 = vmatprep.subr.mxu0 %v915
    %1087 = vmatpush1.msra.mxu0 %v914
    %1088 = vmatprep.subr.mxu0 0.0
    %1089 = vmatpush1.msra.mxu0 0.0
    %1090 = vmatprep.subr.mxu0 0.0
    %1091 = vmatpush1.msra.mxu0 0.0
    %1092 = vmatprep.subr.mxu0 0.0
    %1093 = vmatpush1.msra.mxu0 0.0
    %1094 = vmatprep.subr.mxu0 0.0
    %1095 = vmatpush1.msra.mxu0 0.0
    %1096 = vmatprep.subr.mxu0 0.0
    %1097 = vmatpush1.msra.mxu0 0.0
    %1098 = vmatprep.subr.mxu0 0.0
    %1099 = vmatpush1.msra.mxu0 0.0
    %1100 = vmatprep.subr.mxu0 0.0
    %1101 = vmatpush1.msra.mxu0 0.0
    %1102 = vmatprep.subr.mxu0 0.0
    %1103 = vmatpush1.msra.mxu0 0.0
    %1104 = vmatprep.subr.mxu0 0.0
    %1105 = vmatpush1.msra.mxu0 0.0
    %1106 = vmatprep.subr.mxu0 0.0
    %1107 = vmatpush1.msra.mxu0 0.0
    %1108 = vmatprep.subr.mxu0 0.0
    %1109 = vmatpush1.msra.mxu0 0.0
    %1110 = vmatprep.subr.mxu0 0.0
    %1111 = vmatpush1.msra.mxu0 0.0
    %1112 = vmatprep.subr.mxu0 0.0
    %1113 = vmatpush1.msra.mxu0 0.0
    %1114 = vmatprep.subr.mxu0 0.0
    %1115 = vmatpush1.msra.mxu0 0.0
    %1116 = vmatprep.subr.mxu0 0.0
    %1117 = vmatpush1.msra.mxu0 0.0
    %1118 = vmatprep.subr.mxu0 0.0
    %1119 = vmatpush1.msra.mxu0 0.0
    %1120 = vmatprep.mubr.f32.mxu0 0.0
    %1121 = vmatmul.mubr.f32.gmra.mrb[0].mxu0 %v983
    %v1122 = vpop.f32.mrb[0].mxu0
    %v1123 = vadd.f32 %v933, %v1122
    %v1124 = vpop.f32.mrb[0].mxu0
    %v1125 = vadd.f32 %v937, %v1124
    %1126 = vdwg.mxu0
    %1127 = vmatprep.subr.mxu0 %v797
    %1128 = vmatpush1.msra.mxu0 %v796
    %1129 = vmatprep.subr.mxu0 %v805
    %1130 = vmatpush1.msra.mxu0 %v804
    %1131 = vmatprep.subr.mxu0 %v813
    %1132 = vmatpush1.msra.mxu0 %v812
    %1133 = vmatprep.subr.mxu0 %v821
    %1134 = vmatpush1.msra.mxu0 %v820
    %1135 = vmatprep.subr.mxu0 %v829
    %1136 = vmatpush1.msra.mxu0 %v828
    %1137 = vmatprep.subr.mxu0 %v837
    %1138 = vmatpush1.msra.mxu0 %v836
    %1139 = vmatprep.subr.mxu0 %v845
    %1140 = vmatpush1.msra.mxu0 %v844
    %1141 = vmatprep.subr.mxu0 %v853
    %1142 = vmatpush1.msra.mxu0 %v852
    %1143 = vmatprep.subr.mxu0 %v861
    %1144 = vmatpush1.msra.mxu0 %v860
    %1145 = vmatprep.subr.mxu0 %v869
    %1146 = vmatpush1.msra.mxu0 %v868
    %1147 = vmatprep.subr.mxu0 %v877
    %1148 = vmatpush1.msra.mxu0 %v876
    %1149 = vmatprep.subr.mxu0 %v885
    %1150 = vmatpush1.msra.mxu0 %v884
    %1151 = vmatprep.subr.mxu0 %v893
    %1152 = vmatpush1.msra.mxu0 %v892
    %1153 = vmatprep.subr.mxu0 %v901
    %1154 = vmatpush1.msra.mxu0 %v900
    %1155 = vmatprep.subr.mxu0 %v909
    %1156 = vmatpush1.msra.mxu0 %v908
    %1157 = vmatprep.subr.mxu0 %v917
    %1158 = vmatpush1.msra.mxu0 %v916
    %1159 = vmatprep.subr.mxu0 0.0
    %1160 = vmatpush1.msra.mxu0 0.0
    %1161 = vmatprep.subr.mxu0 0.0
    %1162 = vmatpush1.msra.mxu0 0.0
    %1163 = vmatprep.subr.mxu0 0.0
    %1164 = vmatpush1.msra.mxu0 0.0
    %1165 = vmatprep.subr.mxu0 0.0
    %1166 = vmatpush1.msra.mxu0 0.0
    %1167 = vmatprep.subr.mxu0 0.0
    %1168 = vmatpush1.msra.mxu0 0.0
    %1169 = vmatprep.subr.mxu0 0.0
    %1170 = vmatpush1.msra.mxu0 0.0
    %1171 = vmatprep.subr.mxu0 0.0
    %1172 = vmatpush1.msra.mxu0 0.0
    %1173 = vmatprep.subr.mxu0 0.0
    %1174 = vmatpush1.msra.mxu0 0.0
    %1175 = vmatprep.subr.mxu0 0.0
    %1176 = vmatpush1.msra.mxu0 0.0
    %1177 = vmatprep.subr.mxu0 0.0
    %1178 = vmatpush1.msra.mxu0 0.0
    %1179 = vmatprep.subr.mxu0 0.0
    %1180 = vmatpush1.msra.mxu0 0.0
    %1181 = vmatprep.subr.mxu0 0.0
    %1182 = vmatpush1.msra.mxu0 0.0
    %1183 = vmatprep.subr.mxu0 0.0
    %1184 = vmatpush1.msra.mxu0 0.0
    %1185 = vmatprep.subr.mxu0 0.0
    %1186 = vmatpush1.msra.mxu0 0.0
    %1187 = vmatprep.subr.mxu0 0.0
    %1188 = vmatpush1.msra.mxu0 0.0
    %1189 = vmatprep.subr.mxu0 0.0
    %1190 = vmatpush1.msra.mxu0 0.0
    %1191 = vmatprep.mubr.f32.mxu0 0.0
    %1192 = vmatmul.mubr.f32.gmra.mrb[0].mxu0 %v983
    %v1193 = vpop.f32.mrb[0].mxu0
    %v1194 = vadd.f32 %v941, %v1193
    %v1195 = vpop.f32.mrb[0].mxu0
    %v1196 = vadd.f32 %v945, %v1195
    %1197 = vdwg.mxu0
    %1198 = vmatprep.subr.mxu0 %v799
    %1199 = vmatpush1.msra.mxu0 %v798
    %1200 = vmatprep.subr.mxu0 %v807
    %1201 = vmatpush1.msra.mxu0 %v806
    %1202 = vmatprep.subr.mxu0 %v815
    %1203 = vmatpush1.msra.mxu0 %v814
    %1204 = vmatprep.subr.mxu0 %v823
    %1205 = vmatpush1.msra.mxu0 %v822
    %1206 = vmatprep.subr.mxu0 %v831
    %1207 = vmatpush1.msra.mxu0 %v830
    %1208 = vmatprep.subr.mxu0 %v839
    %1209 = vmatpush1.msra.mxu0 %v838
    %1210 = vmatprep.subr.mxu0 %v847
    %1211 = vmatpush1.msra.mxu0 %v846
    %1212 = vmatprep.subr.mxu0 %v855
    %1213 = vmatpush1.msra.mxu0 %v854
    %1214 = vmatprep.subr.mxu0 %v863
    %1215 = vmatpush1.msra.mxu0 %v862
    %1216 = vmatprep.subr.mxu0 %v871
    %1217 = vmatpush1.msra.mxu0 %v870
    %1218 = vmatprep.subr.mxu0 %v879
    %1219 = vmatpush1.msra.mxu0 %v878
    %1220 = vmatprep.subr.mxu0 %v887
    %1221 = vmatpush1.msra.mxu0 %v886
    %1222 = vmatprep.subr.mxu0 %v895
    %1223 = vmatpush1.msra.mxu0 %v894
    %1224 = vmatprep.subr.mxu0 %v903
    %1225 = vmatpush1.msra.mxu0 %v902
    %1226 = vmatprep.subr.mxu0 %v911
    %1227 = vmatpush1.msra.mxu0 %v910
    %1228 = vmatprep.subr.mxu0 %v919
    %1229 = vmatpush1.msra.mxu0 %v918
    %1230 = vmatprep.subr.mxu0 0.0
    %1231 = vmatpush1.msra.mxu0 0.0
    %1232 = vmatprep.subr.mxu0 0.0
    %1233 = vmatpush1.msra.mxu0 0.0
    %1234 = vmatprep.subr.mxu0 0.0
    %1235 = vmatpush1.msra.mxu0 0.0
    %1236 = vmatprep.subr.mxu0 0.0
    %1237 = vmatpush1.msra.mxu0 0.0
    %1238 = vmatprep.subr.mxu0 0.0
    %1239 = vmatpush1.msra.mxu0 0.0
    %1240 = vmatprep.subr.mxu0 0.0
    %1241 = vmatpush1.msra.mxu0 0.0
    %1242 = vmatprep.subr.mxu0 0.0
    %1243 = vmatpush1.msra.mxu0 0.0
    %1244 = vmatprep.subr.mxu0 0.0
    %1245 = vmatpush1.msra.mxu0 0.0
    %1246 = vmatprep.subr.mxu0 0.0
    %1247 = vmatpush1.msra.mxu0 0.0
    %1248 = vmatprep.subr.mxu0 0.0
    %1249 = vmatpush1.msra.mxu0 0.0
    %1250 = vmatprep.subr.mxu0 0.0
    %1251 = vmatpush1.msra.mxu0 0.0
    %1252 = vmatprep.subr.mxu0 0.0
    %1253 = vmatpush1.msra.mxu0 0.0
    %1254 = vmatprep.subr.mxu0 0.0
    %1255 = vmatpush1.msra.mxu0 0.0
    %1256 = vmatprep.subr.mxu0 0.0
    %1257 = vmatpush1.msra.mxu0 0.0
    %1258 = vmatprep.subr.mxu0 0.0
    %1259 = vmatpush1.msra.mxu0 0.0
    %1260 = vmatprep.subr.mxu0 0.0
    %1261 = vmatpush1.msra.mxu0 0.0
    %1262 = vmatprep.mubr.f32.mxu0 0.0
    %1263 = vmatmul.mubr.f32.gmra.mrb[0].mxu0 %v983
    %v1264 = vpop.f32.mrb[0].mxu0
    %v1265 = vadd.f32 %v949, %v1264
    %v1266 = vpop.f32.mrb[0].mxu0
    %v1267 = vadd.f32 %v953, %v1266
    %1268 = vdwg.mxu0
    %v1269 = vmax.f32 %v1052, 0.0
    %v1270 = vmax.f32 %v1054, 0.0
    %v1271 = vmax.f32 %v1123, 0.0
    %v1272 = vmax.f32 %v1125, 0.0
    %v1273 = vmax.f32 %v1194, 0.0
    %v1274 = vmax.f32 %v1196, 0.0
    %v1275 = vmax.f32 %v1265, 0.0
    %v1276 = vmax.f32 %v1267, 0.0
    %v1277 = vld [vmem:[#allocation14] sm:$0xff]
    %v1278 = vld [vmem:[#allocation14 + $0x8] sm:$0xff]
    %v1279 = vld [vmem:[#allocation14 + $0x10] sm:$0xff]
    %v1280 = vld [vmem:[#allocation14 + $0x18] sm:$0xff]
    %v1281 = vld [vmem:[#allocation14 + $0x20] sm:$0xff]
    %v1282 = vld [vmem:[#allocation14 + $0x28] sm:$0xff]
    %v1283 = vld [vmem:[#allocation14 + $0x30] sm:$0xff]
    %v1284 = vld [vmem:[#allocation14 + $0x38] sm:$0xff]
    %v1285 = vld [vmem:[#allocation14 + $0x40] sm:$0xff]
    %v1286 = vld [vmem:[#allocation14 + $0x48] sm:$0xff]
    %v1287 = vld [vmem:[#allocation14 + $0x50] sm:$0xff]
    %v1288 = vld [vmem:[#allocation14 + $0x58] sm:$0xff]
    %v1289 = vld [vmem:[#allocation14 + $0x60] sm:$0xff]
    %v1290 = vld [vmem:[#allocation14 + $0x68] sm:$0xff]
    %v1291 = vld [vmem:[#allocation14 + $0x70] sm:$0xff]
    %v1292 = vld [vmem:[#allocation14 + $0x78] sm:$0xff]
    %v1293 = vld [vmem:[#allocation14 + $0x80] sm:$0xff]
    %v1294 = vld [vmem:[#allocation14 + $0x88] sm:$0xff]
    %v1295 = vld [vmem:[#allocation14 + $0x90] sm:$0xff]
    %v1296 = vld [vmem:[#allocation14 + $0x98] sm:$0xff]
    %v1297 = vld [vmem:[#allocation14 + $0xa0] sm:$0xff]
    %v1298 = vld [vmem:[#allocation14 + $0xa8] sm:$0xff]
    %v1299 = vld [vmem:[#allocation14 + $0xb0] sm:$0xff]
    %v1300 = vld [vmem:[#allocation14 + $0xb8] sm:$0xff]
    %v1301 = vld [vmem:[#allocation14 + $0xc0] sm:$0xff]
    %v1302 = vld [vmem:[#allocation14 + $0xc8] sm:$0xff]
    %v1303 = vld [vmem:[#allocation14 + $0xd0] sm:$0xff]
    %v1304 = vld [vmem:[#allocation14 + $0xd8] sm:$0xff]
    %v1305 = vld [vmem:[#allocation14 + $0xe0] sm:$0xff]
    %v1306 = vld [vmem:[#allocation14 + $0xe8] sm:$0xff]
    %v1307 = vld [vmem:[#allocation14 + $0xf0] sm:$0xff]
    %v1308 = vld [vmem:[#allocation14 + $0xf8] sm:$0xff]
    %v1309 = vld [vmem:[#allocation14 + $0x100] sm:$0xff]
    %v1310 = vld [vmem:[#allocation14 + $0x108] sm:$0xff]
    %v1311 = vld [vmem:[#allocation14 + $0x110] sm:$0xff]
    %v1312 = vld [vmem:[#allocation14 + $0x118] sm:$0xff]
    %v1313 = vld [vmem:[#allocation14 + $0x120] sm:$0xff]
    %v1314 = vld [vmem:[#allocation14 + $0x128] sm:$0xff]
    %v1315 = vld [vmem:[#allocation14 + $0x130] sm:$0xff]
    %v1316 = vld [vmem:[#allocation14 + $0x138] sm:$0xff]
    %v1317 = vld [vmem:[#allocation14 + $0x140] sm:$0xff]
    %v1318 = vld [vmem:[#allocation14 + $0x148] sm:$0xff]
    %v1319 = vld [vmem:[#allocation14 + $0x150] sm:$0xff]
    %v1320 = vld [vmem:[#allocation14 + $0x158] sm:$0xff]
    %v1321 = vld [vmem:[#allocation14 + $0x160] sm:$0xff]
    %v1322 = vld [vmem:[#allocation14 + $0x168] sm:$0xff]
    %v1323 = vld [vmem:[#allocation14 + $0x170] sm:$0xff]
    %v1324 = vld [vmem:[#allocation14 + $0x178] sm:$0xff]
    %v1325 = vld [vmem:[#allocation14 + $0x180] sm:$0xff]
    %v1326 = vld [vmem:[#allocation14 + $0x188] sm:$0xff]
    %v1327 = vld [vmem:[#allocation14 + $0x190] sm:$0xff]
    %v1328 = vld [vmem:[#allocation14 + $0x198] sm:$0xff]
    %v1329 = vld [vmem:[#allocation14 + $0x1a0] sm:$0xff]
    %v1330 = vld [vmem:[#allocation14 + $0x1a8] sm:$0xff]
    %v1331 = vld [vmem:[#allocation14 + $0x1b0] sm:$0xff]
    %v1332 = vld [vmem:[#allocation14 + $0x1b8] sm:$0xff]
    %v1333 = vld [vmem:[#allocation14 + $0x1c0] sm:$0xff]
    %v1334 = vld [vmem:[#allocation14 + $0x1c8] sm:$0xff]
    %v1335 = vld [vmem:[#allocation14 + $0x1d0] sm:$0xff]
    %v1336 = vld [vmem:[#allocation14 + $0x1d8] sm:$0xff]
    %v1337 = vld [vmem:[#allocation14 + $0x1e0] sm:$0xff]
    %v1338 = vld [vmem:[#allocation14 + $0x1e8] sm:$0xff]
    %v1339 = vld [vmem:[#allocation14 + $0x1f0] sm:$0xff]
    %v1340 = vld [vmem:[#allocation14 + $0x1f8] sm:$0xff]
    %v1341 = vld [vmem:[#allocation14 + $0x200] sm:$0xff]
    %v1342 = vld [vmem:[#allocation14 + $0x208] sm:$0xff]
    %v1343 = vld [vmem:[#allocation14 + $0x210] sm:$0xff]
    %v1344 = vld [vmem:[#allocation14 + $0x218] sm:$0xff]
    %v1345 = vld [vmem:[#allocation14 + $0x220] sm:$0xff]
    %v1346 = vld [vmem:[#allocation14 + $0x228] sm:$0xff]
    %v1347 = vld [vmem:[#allocation14 + $0x230] sm:$0xff]
    %v1348 = vld [vmem:[#allocation14 + $0x238] sm:$0xff]
    %v1349 = vld [vmem:[#allocation14 + $0x240] sm:$0xff]
    %v1350 = vld [vmem:[#allocation14 + $0x248] sm:$0xff]
    %v1351 = vld [vmem:[#allocation14 + $0x250] sm:$0xff]
    %v1352 = vld [vmem:[#allocation14 + $0x258] sm:$0xff]
    %v1353 = vld [vmem:[#allocation14 + $0x260] sm:$0xff]
    %v1354 = vld [vmem:[#allocation14 + $0x268] sm:$0xff]
    %v1355 = vld [vmem:[#allocation14 + $0x270] sm:$0xff]
    %v1356 = vld [vmem:[#allocation14 + $0x278] sm:$0xff]
    %v1357 = vld [vmem:[#allocation14 + $0x280] sm:$0xff]
    %v1358 = vld [vmem:[#allocation14 + $0x288] sm:$0xff]
    %v1359 = vld [vmem:[#allocation14 + $0x290] sm:$0xff]
    %v1360 = vld [vmem:[#allocation14 + $0x298] sm:$0xff]
    %v1361 = vld [vmem:[#allocation14 + $0x2a0] sm:$0xff]
    %v1362 = vld [vmem:[#allocation14 + $0x2a8] sm:$0xff]
    %v1363 = vld [vmem:[#allocation14 + $0x2b0] sm:$0xff]
    %v1364 = vld [vmem:[#allocation14 + $0x2b8] sm:$0xff]
    %v1365 = vld [vmem:[#allocation14 + $0x2c0] sm:$0xff]
    %v1366 = vld [vmem:[#allocation14 + $0x2c8] sm:$0xff]
    %v1367 = vld [vmem:[#allocation14 + $0x2d0] sm:$0xff]
    %v1368 = vld [vmem:[#allocation14 + $0x2d8] sm:$0xff]
    %v1369 = vld [vmem:[#allocation14 + $0x2e0] sm:$0xff]
    %v1370 = vld [vmem:[#allocation14 + $0x2e8] sm:$0xff]
    %v1371 = vld [vmem:[#allocation14 + $0x2f0] sm:$0xff]
    %v1372 = vld [vmem:[#allocation14 + $0x2f8] sm:$0xff]
    %v1373 = vld [vmem:[#allocation14 + $0x300] sm:$0xff]
    %v1374 = vld [vmem:[#allocation14 + $0x308] sm:$0xff]
    %v1375 = vld [vmem:[#allocation14 + $0x310] sm:$0xff]
    %v1376 = vld [vmem:[#allocation14 + $0x318] sm:$0xff]
    %v1377 = vld [vmem:[#allocation14 + $0x320] sm:$0xff]
    %v1378 = vld [vmem:[#allocation14 + $0x328] sm:$0xff]
    %v1379 = vld [vmem:[#allocation14 + $0x330] sm:$0xff]
    %v1380 = vld [vmem:[#allocation14 + $0x338] sm:$0xff]
    %v1381 = vld [vmem:[#allocation14 + $0x340] sm:$0xff]
    %v1382 = vld [vmem:[#allocation14 + $0x348] sm:$0xff]
    %v1383 = vld [vmem:[#allocation14 + $0x350] sm:$0xff]
    %v1384 = vld [vmem:[#allocation14 + $0x358] sm:$0xff]
    %v1385 = vld [vmem:[#allocation14 + $0x360] sm:$0xff]
    %v1386 = vld [vmem:[#allocation14 + $0x368] sm:$0xff]
    %v1387 = vld [vmem:[#allocation14 + $0x370] sm:$0xff]
    %v1388 = vld [vmem:[#allocation14 + $0x378] sm:$0xff]
    %v1389 = vld [vmem:[#allocation14 + $0x380] sm:$0xff]
    %v1390 = vld [vmem:[#allocation14 + $0x388] sm:$0xff]
    %v1391 = vld [vmem:[#allocation14 + $0x390] sm:$0xff]
    %v1392 = vld [vmem:[#allocation14 + $0x398] sm:$0xff]
    %v1393 = vld [vmem:[#allocation14 + $0x3a0] sm:$0xff]
    %v1394 = vld [vmem:[#allocation14 + $0x3a8] sm:$0xff]
    %v1395 = vld [vmem:[#allocation14 + $0x3b0] sm:$0xff]
    %v1396 = vld [vmem:[#allocation14 + $0x3b8] sm:$0xff]
    %v1397 = vld [vmem:[#allocation14 + $0x3c0] sm:$0xff]
    %v1398 = vld [vmem:[#allocation14 + $0x3c8] sm:$0xff]
    %v1399 = vld [vmem:[#allocation14 + $0x3d0] sm:$0xff]
    %v1400 = vld [vmem:[#allocation14 + $0x3d8] sm:$0xff]
    %v1401 = vld [vmem:[#allocation14 + $0x3e0] sm:$0xff]
    %v1402 = vld [vmem:[#allocation14 + $0x3e8] sm:$0xff]
    %v1403 = vld [vmem:[#allocation14 + $0x3f0] sm:$0xff]
    %v1404 = vld [vmem:[#allocation14 + $0x3f8] sm:$0xff]
    %v1405 = vld [vmem:[#allocation14 + $0x400] sm:$0xff]
    %v1406 = vld [vmem:[#allocation14 + $0x408] sm:$0xff]
    %v1407 = vld [vmem:[#allocation14 + $0x410] sm:$0xff]
    %v1408 = vld [vmem:[#allocation14 + $0x418] sm:$0xff]
    %v1409 = vld [vmem:[#allocation14 + $0x420] sm:$0xff]
    %v1410 = vld [vmem:[#allocation14 + $0x428] sm:$0xff]
    %v1411 = vld [vmem:[#allocation14 + $0x430] sm:$0xff]
    %v1412 = vld [vmem:[#allocation14 + $0x438] sm:$0xff]
    %v1413 = vld [vmem:[#allocation14 + $0x440] sm:$0xff]
    %v1414 = vld [vmem:[#allocation14 + $0x448] sm:$0xff]
    %v1415 = vld [vmem:[#allocation14 + $0x450] sm:$0xff]
    %v1416 = vld [vmem:[#allocation14 + $0x458] sm:$0xff]
    %v1417 = vld [vmem:[#allocation14 + $0x460] sm:$0xff]
    %v1418 = vld [vmem:[#allocation14 + $0x468] sm:$0xff]
    %v1419 = vld [vmem:[#allocation14 + $0x470] sm:$0xff]
    %v1420 = vld [vmem:[#allocation14 + $0x478] sm:$0xff]
    %v1421 = vld [vmem:[#allocation14 + $0x480] sm:$0xff]
    %v1422 = vld [vmem:[#allocation14 + $0x488] sm:$0xff]
    %v1423 = vld [vmem:[#allocation14 + $0x490] sm:$0xff]
    %v1424 = vld [vmem:[#allocation14 + $0x498] sm:$0xff]
    %v1425 = vld [vmem:[#allocation14 + $0x4a0] sm:$0xff]
    %v1426 = vld [vmem:[#allocation14 + $0x4a8] sm:$0xff]
    %v1427 = vld [vmem:[#allocation14 + $0x4b0] sm:$0xff]
    %v1428 = vld [vmem:[#allocation14 + $0x4b8] sm:$0xff]
    %v1429 = vld [vmem:[#allocation14 + $0x4c0] sm:$0xff]
    %v1430 = vld [vmem:[#allocation14 + $0x4c8] sm:$0xff]
    %v1431 = vld [vmem:[#allocation14 + $0x4d0] sm:$0xff]
    %v1432 = vld [vmem:[#allocation14 + $0x4d8] sm:$0xff]
    %v1433 = vld [vmem:[#allocation14 + $0x4e0] sm:$0xff]
    %v1434 = vld [vmem:[#allocation14 + $0x4e8] sm:$0xff]
    %v1435 = vld [vmem:[#allocation14 + $0x4f0] sm:$0xff]
    %v1436 = vld [vmem:[#allocation14 + $0x4f8] sm:$0xff]
    %v1437 = vld [vmem:[#allocation14 + $0x500] sm:$0xff]
    %v1438 = vld [vmem:[#allocation14 + $0x508] sm:$0xff]
    %v1439 = vld [vmem:[#allocation14 + $0x510] sm:$0xff]
    %v1440 = vld [vmem:[#allocation14 + $0x518] sm:$0xff]
    %v1441 = vld [vmem:[#allocation14 + $0x520] sm:$0xff]
    %v1442 = vld [vmem:[#allocation14 + $0x528] sm:$0xff]
    %v1443 = vld [vmem:[#allocation14 + $0x530] sm:$0xff]
    %v1444 = vld [vmem:[#allocation14 + $0x538] sm:$0xff]
    %v1445 = vld [vmem:[#allocation14 + $0x540] sm:$0xff]
    %v1446 = vld [vmem:[#allocation14 + $0x548] sm:$0xff]
    %v1447 = vld [vmem:[#allocation14 + $0x550] sm:$0xff]
    %v1448 = vld [vmem:[#allocation14 + $0x558] sm:$0xff]
    %v1449 = vld [vmem:[#allocation14 + $0x560] sm:$0xff]
    %v1450 = vld [vmem:[#allocation14 + $0x568] sm:$0xff]
    %v1451 = vld [vmem:[#allocation14 + $0x570] sm:$0xff]
    %v1452 = vld [vmem:[#allocation14 + $0x578] sm:$0xff]
    %v1453 = vld [vmem:[#allocation14 + $0x580] sm:$0xff]
    %v1454 = vld [vmem:[#allocation14 + $0x588] sm:$0xff]
    %v1455 = vld [vmem:[#allocation14 + $0x590] sm:$0xff]
    %v1456 = vld [vmem:[#allocation14 + $0x598] sm:$0xff]
    %v1457 = vld [vmem:[#allocation14 + $0x5a0] sm:$0xff]
    %v1458 = vld [vmem:[#allocation14 + $0x5a8] sm:$0xff]
    %v1459 = vld [vmem:[#allocation14 + $0x5b0] sm:$0xff]
    %v1460 = vld [vmem:[#allocation14 + $0x5b8] sm:$0xff]
    %v1461 = vld [vmem:[#allocation14 + $0x5c0] sm:$0xff]
    %v1462 = vld [vmem:[#allocation14 + $0x5c8] sm:$0xff]
    %v1463 = vld [vmem:[#allocation14 + $0x5d0] sm:$0xff]
    %v1464 = vld [vmem:[#allocation14 + $0x5d8] sm:$0xff]
    %v1465 = vld [vmem:[#allocation14 + $0x5e0] sm:$0xff]
    %v1466 = vld [vmem:[#allocation14 + $0x5e8] sm:$0xff]
    %v1467 = vld [vmem:[#allocation14 + $0x5f0] sm:$0xff]
    %v1468 = vld [vmem:[#allocation14 + $0x5f8] sm:$0xff]
    %v1469 = vld [vmem:[#allocation14 + $0x600] sm:$0xff]
    %v1470 = vld [vmem:[#allocation14 + $0x608] sm:$0xff]
    %v1471 = vld [vmem:[#allocation14 + $0x610] sm:$0xff]
    %v1472 = vld [vmem:[#allocation14 + $0x618] sm:$0xff]
    %v1473 = vld [vmem:[#allocation14 + $0x620] sm:$0xff]
    %v1474 = vld [vmem:[#allocation14 + $0x628] sm:$0xff]
    %v1475 = vld [vmem:[#allocation14 + $0x630] sm:$0xff]
    %v1476 = vld [vmem:[#allocation14 + $0x638] sm:$0xff]
    %v1477 = vld [vmem:[#allocation14 + $0x640] sm:$0xff]
    %v1478 = vld [vmem:[#allocation14 + $0x648] sm:$0xff]
    %v1479 = vld [vmem:[#allocation14 + $0x650] sm:$0xff]
    %v1480 = vld [vmem:[#allocation14 + $0x658] sm:$0xff]
    %v1481 = vld [vmem:[#allocation14 + $0x660] sm:$0xff]
    %v1482 = vld [vmem:[#allocation14 + $0x668] sm:$0xff]
    %v1483 = vld [vmem:[#allocation14 + $0x670] sm:$0xff]
    %v1484 = vld [vmem:[#allocation14 + $0x678] sm:$0xff]
    %v1485 = vld [vmem:[#allocation14 + $0x680] sm:$0xff]
    %v1486 = vld [vmem:[#allocation14 + $0x688] sm:$0xff]
    %v1487 = vld [vmem:[#allocation14 + $0x690] sm:$0xff]
    %v1488 = vld [vmem:[#allocation14 + $0x698] sm:$0xff]
    %v1489 = vld [vmem:[#allocation14 + $0x6a0] sm:$0xff]
    %v1490 = vld [vmem:[#allocation14 + $0x6a8] sm:$0xff]
    %v1491 = vld [vmem:[#allocation14 + $0x6b0] sm:$0xff]
    %v1492 = vld [vmem:[#allocation14 + $0x6b8] sm:$0xff]
    %v1493 = vld [vmem:[#allocation14 + $0x6c0] sm:$0xff]
    %v1494 = vld [vmem:[#allocation14 + $0x6c8] sm:$0xff]
    %v1495 = vld [vmem:[#allocation14 + $0x6d0] sm:$0xff]
    %v1496 = vld [vmem:[#allocation14 + $0x6d8] sm:$0xff]
    %v1497 = vld [vmem:[#allocation14 + $0x6e0] sm:$0xff]
    %v1498 = vld [vmem:[#allocation14 + $0x6e8] sm:$0xff]
    %v1499 = vld [vmem:[#allocation14 + $0x6f0] sm:$0xff]
    %v1500 = vld [vmem:[#allocation14 + $0x6f8] sm:$0xff]
    %v1501 = vld [vmem:[#allocation14 + $0x700] sm:$0xff]
    %v1502 = vld [vmem:[#allocation14 + $0x708] sm:$0xff]
    %v1503 = vld [vmem:[#allocation14 + $0x710] sm:$0xff]
    %v1504 = vld [vmem:[#allocation14 + $0x718] sm:$0xff]
    %v1505 = vld [vmem:[#allocation14 + $0x720] sm:$0xff]
    %v1506 = vld [vmem:[#allocation14 + $0x728] sm:$0xff]
    %v1507 = vld [vmem:[#allocation14 + $0x730] sm:$0xff]
    %v1508 = vld [vmem:[#allocation14 + $0x738] sm:$0xff]
    %v1509 = vld [vmem:[#allocation14 + $0x740] sm:$0xff]
    %v1510 = vld [vmem:[#allocation14 + $0x748] sm:$0xff]
    %v1511 = vld [vmem:[#allocation14 + $0x750] sm:$0xff]
    %v1512 = vld [vmem:[#allocation14 + $0x758] sm:$0xff]
    %v1513 = vld [vmem:[#allocation14 + $0x760] sm:$0xff]
    %v1514 = vld [vmem:[#allocation14 + $0x768] sm:$0xff]
    %v1515 = vld [vmem:[#allocation14 + $0x770] sm:$0xff]
    %v1516 = vld [vmem:[#allocation14 + $0x778] sm:$0xff]
    %v1517 = vld [vmem:[#allocation14 + $0x780] sm:$0xff]
    %v1518 = vld [vmem:[#allocation14 + $0x788] sm:$0xff]
    %v1519 = vld [vmem:[#allocation14 + $0x790] sm:$0xff]
    %v1520 = vld [vmem:[#allocation14 + $0x798] sm:$0xff]
    %v1521 = vld [vmem:[#allocation14 + $0x7a0] sm:$0xff]
    %v1522 = vld [vmem:[#allocation14 + $0x7a8] sm:$0xff]
    %v1523 = vld [vmem:[#allocation14 + $0x7b0] sm:$0xff]
    %v1524 = vld [vmem:[#allocation14 + $0x7b8] sm:$0xff]
    %v1525 = vld [vmem:[#allocation14 + $0x7c0] sm:$0xff]
    %v1526 = vld [vmem:[#allocation14 + $0x7c8] sm:$0xff]
    %v1527 = vld [vmem:[#allocation14 + $0x7d0] sm:$0xff]
    %v1528 = vld [vmem:[#allocation14 + $0x7d8] sm:$0xff]
    %v1529 = vld [vmem:[#allocation14 + $0x7e0] sm:$0xff]
    %v1530 = vld [vmem:[#allocation14 + $0x7e8] sm:$0xff]
    %v1531 = vld [vmem:[#allocation14 + $0x7f0] sm:$0xff]
    %v1532 = vld [vmem:[#allocation14 + $0x7f8] sm:$0xff]
    %v1533 = vld [vmem:[#allocation14 + $0x800] sm:$0xff]
    %v1534 = vld [vmem:[#allocation14 + $0x808] sm:$0xff]
    %v1535 = vld [vmem:[#allocation14 + $0x810] sm:$0xff]
    %v1536 = vld [vmem:[#allocation14 + $0x818] sm:$0xff]
    %v1537 = vld [vmem:[#allocation14 + $0x820] sm:$0xff]
    %v1538 = vld [vmem:[#allocation14 + $0x828] sm:$0xff]
    %v1539 = vld [vmem:[#allocation14 + $0x830] sm:$0xff]
    %v1540 = vld [vmem:[#allocation14 + $0x838] sm:$0xff]
    %v1541 = vld [vmem:[#allocation14 + $0x840] sm:$0xff]
    %v1542 = vld [vmem:[#allocation14 + $0x848] sm:$0xff]
    %v1543 = vld [vmem:[#allocation14 + $0x850] sm:$0xff]
    %v1544 = vld [vmem:[#allocation14 + $0x858] sm:$0xff]
    %v1545 = vld [vmem:[#allocation14 + $0x860] sm:$0xff]
    %v1546 = vld [vmem:[#allocation14 + $0x868] sm:$0xff]
    %v1547 = vld [vmem:[#allocation14 + $0x870] sm:$0xff]
    %v1548 = vld [vmem:[#allocation14 + $0x878] sm:$0xff]
    %v1549 = vld [vmem:[#allocation14 + $0x880] sm:$0xff]
    %v1550 = vld [vmem:[#allocation14 + $0x888] sm:$0xff]
    %v1551 = vld [vmem:[#allocation14 + $0x890] sm:$0xff]
    %v1552 = vld [vmem:[#allocation14 + $0x898] sm:$0xff]
    %v1553 = vld [vmem:[#allocation14 + $0x8a0] sm:$0xff]
    %v1554 = vld [vmem:[#allocation14 + $0x8a8] sm:$0xff]
    %v1555 = vld [vmem:[#allocation14 + $0x8b0] sm:$0xff]
    %v1556 = vld [vmem:[#allocation14 + $0x8b8] sm:$0xff]
    %v1557 = vld [vmem:[#allocation14 + $0x8c0] sm:$0xff]
    %v1558 = vld [vmem:[#allocation14 + $0x8c8] sm:$0xff]
    %v1559 = vld [vmem:[#allocation14 + $0x8d0] sm:$0xff]
    %v1560 = vld [vmem:[#allocation14 + $0x8d8] sm:$0xff]
    %v1561 = vld [vmem:[#allocation14 + $0x8e0] sm:$0xff]
    %v1562 = vld [vmem:[#allocation14 + $0x8e8] sm:$0xff]
    %v1563 = vld [vmem:[#allocation14 + $0x8f0] sm:$0xff]
    %v1564 = vld [vmem:[#allocation14 + $0x8f8] sm:$0xff]
    %v1565 = vld [vmem:[#allocation14 + $0x900] sm:$0xff]
    %v1566 = vld [vmem:[#allocation14 + $0x908] sm:$0xff]
    %v1567 = vld [vmem:[#allocation14 + $0x910] sm:$0xff]
    %v1568 = vld [vmem:[#allocation14 + $0x918] sm:$0xff]
    %v1569 = vld [vmem:[#allocation14 + $0x920] sm:$0xff]
    %v1570 = vld [vmem:[#allocation14 + $0x928] sm:$0xff]
    %v1571 = vld [vmem:[#allocation14 + $0x930] sm:$0xff]
    %v1572 = vld [vmem:[#allocation14 + $0x938] sm:$0xff]
    %v1573 = vld [vmem:[#allocation14 + $0x940] sm:$0xff]
    %v1574 = vld [vmem:[#allocation14 + $0x948] sm:$0xff]
    %v1575 = vld [vmem:[#allocation14 + $0x950] sm:$0xff]
    %v1576 = vld [vmem:[#allocation14 + $0x958] sm:$0xff]
    %v1577 = vld [vmem:[#allocation14 + $0x960] sm:$0xff]
    %v1578 = vld [vmem:[#allocation14 + $0x968] sm:$0xff]
    %v1579 = vld [vmem:[#allocation14 + $0x970] sm:$0xff]
    %v1580 = vld [vmem:[#allocation14 + $0x978] sm:$0xff]
    %v1581 = vld [vmem:[#allocation14 + $0x980] sm:$0xff]
    %v1582 = vld [vmem:[#allocation14 + $0x988] sm:$0xff]
    %v1583 = vld [vmem:[#allocation14 + $0x990] sm:$0xff]
    %v1584 = vld [vmem:[#allocation14 + $0x998] sm:$0xff]
    %v1585 = vld [vmem:[#allocation14 + $0x9a0] sm:$0xff]
    %v1586 = vld [vmem:[#allocation14 + $0x9a8] sm:$0xff]
    %v1587 = vld [vmem:[#allocation14 + $0x9b0] sm:$0xff]
    %v1588 = vld [vmem:[#allocation14 + $0x9b8] sm:$0xff]
    %v1589 = vld [vmem:[#allocation14 + $0x9c0] sm:$0xff]
    %v1590 = vld [vmem:[#allocation14 + $0x9c8] sm:$0xff]
    %v1591 = vld [vmem:[#allocation14 + $0x9d0] sm:$0xff]
    %v1592 = vld [vmem:[#allocation14 + $0x9d8] sm:$0xff]
    %v1593 = vld [vmem:[#allocation14 + $0x9e0] sm:$0xff]
    %v1594 = vld [vmem:[#allocation14 + $0x9e8] sm:$0xff]
    %v1595 = vld [vmem:[#allocation14 + $0x9f0] sm:$0xff]
    %v1596 = vld [vmem:[#allocation14 + $0x9f8] sm:$0xff]
    %v1597 = vld [vmem:[#allocation14 + $0xa00] sm:$0xff]
    %v1598 = vld [vmem:[#allocation14 + $0xa08] sm:$0xff]
    %v1599 = vld [vmem:[#allocation14 + $0xa10] sm:$0xff]
    %v1600 = vld [vmem:[#allocation14 + $0xa18] sm:$0xff]
    %v1601 = vld [vmem:[#allocation14 + $0xa20] sm:$0xff]
    %v1602 = vld [vmem:[#allocation14 + $0xa28] sm:$0xff]
    %v1603 = vld [vmem:[#allocation14 + $0xa30] sm:$0xff]
    %v1604 = vld [vmem:[#allocation14 + $0xa38] sm:$0xff]
    %v1605 = vld [vmem:[#allocation14 + $0xa40] sm:$0xff]
    %v1606 = vld [vmem:[#allocation14 + $0xa48] sm:$0xff]
    %v1607 = vld [vmem:[#allocation14 + $0xa50] sm:$0xff]
    %v1608 = vld [vmem:[#allocation14 + $0xa58] sm:$0xff]
    %v1609 = vld [vmem:[#allocation14 + $0xa60] sm:$0xff]
    %v1610 = vld [vmem:[#allocation14 + $0xa68] sm:$0xff]
    %v1611 = vld [vmem:[#allocation14 + $0xa70] sm:$0xff]
    %v1612 = vld [vmem:[#allocation14 + $0xa78] sm:$0xff]
    %v1613 = vld [vmem:[#allocation14 + $0xa80] sm:$0xff]
    %v1614 = vld [vmem:[#allocation14 + $0xa88] sm:$0xff]
    %v1615 = vld [vmem:[#allocation14 + $0xa90] sm:$0xff]
    %v1616 = vld [vmem:[#allocation14 + $0xa98] sm:$0xff]
    %v1617 = vld [vmem:[#allocation14 + $0xaa0] sm:$0xff]
    %v1618 = vld [vmem:[#allocation14 + $0xaa8] sm:$0xff]
    %v1619 = vld [vmem:[#allocation14 + $0xab0] sm:$0xff]
    %v1620 = vld [vmem:[#allocation14 + $0xab8] sm:$0xff]
    %v1621 = vld [vmem:[#allocation14 + $0xac0] sm:$0xff]
    %v1622 = vld [vmem:[#allocation14 + $0xac8] sm:$0xff]
    %v1623 = vld [vmem:[#allocation14 + $0xad0] sm:$0xff]
    %v1624 = vld [vmem:[#allocation14 + $0xad8] sm:$0xff]
    %v1625 = vld [vmem:[#allocation14 + $0xae0] sm:$0xff]
    %v1626 = vld [vmem:[#allocation14 + $0xae8] sm:$0xff]
    %v1627 = vld [vmem:[#allocation14 + $0xaf0] sm:$0xff]
    %v1628 = vld [vmem:[#allocation14 + $0xaf8] sm:$0xff]
    %v1629 = vld [vmem:[#allocation14 + $0xb00] sm:$0xff]
    %v1630 = vld [vmem:[#allocation14 + $0xb08] sm:$0xff]
    %v1631 = vld [vmem:[#allocation14 + $0xb10] sm:$0xff]
    %v1632 = vld [vmem:[#allocation14 + $0xb18] sm:$0xff]
    %v1633 = vld [vmem:[#allocation14 + $0xb20] sm:$0xff]
    %v1634 = vld [vmem:[#allocation14 + $0xb28] sm:$0xff]
    %v1635 = vld [vmem:[#allocation14 + $0xb30] sm:$0xff]
    %v1636 = vld [vmem:[#allocation14 + $0xb38] sm:$0xff]
    %v1637 = vld [vmem:[#allocation14 + $0xb40] sm:$0xff]
    %v1638 = vld [vmem:[#allocation14 + $0xb48] sm:$0xff]
    %v1639 = vld [vmem:[#allocation14 + $0xb50] sm:$0xff]
    %v1640 = vld [vmem:[#allocation14 + $0xb58] sm:$0xff]
    %v1641 = vld [vmem:[#allocation14 + $0xb60] sm:$0xff]
    %v1642 = vld [vmem:[#allocation14 + $0xb68] sm:$0xff]
    %v1643 = vld [vmem:[#allocation14 + $0xb70] sm:$0xff]
    %v1644 = vld [vmem:[#allocation14 + $0xb78] sm:$0xff]
    %v1645 = vld [vmem:[#allocation14 + $0xb80] sm:$0xff]
    %v1646 = vld [vmem:[#allocation14 + $0xb88] sm:$0xff]
    %v1647 = vld [vmem:[#allocation14 + $0xb90] sm:$0xff]
    %v1648 = vld [vmem:[#allocation14 + $0xb98] sm:$0xff]
    %v1649 = vld [vmem:[#allocation14 + $0xba0] sm:$0xff]
    %v1650 = vld [vmem:[#allocation14 + $0xba8] sm:$0xff]
    %v1651 = vld [vmem:[#allocation14 + $0xbb0] sm:$0xff]
    %v1652 = vld [vmem:[#allocation14 + $0xbb8] sm:$0xff]
    %v1653 = vld [vmem:[#allocation14 + $0xbc0] sm:$0xff]
    %v1654 = vld [vmem:[#allocation14 + $0xbc8] sm:$0xff]
    %v1655 = vld [vmem:[#allocation14 + $0xbd0] sm:$0xff]
    %v1656 = vld [vmem:[#allocation14 + $0xbd8] sm:$0xff]
    %v1657 = vld [vmem:[#allocation14 + $0xbe0] sm:$0xff]
    %v1658 = vld [vmem:[#allocation14 + $0xbe8] sm:$0xff]
    %v1659 = vld [vmem:[#allocation14 + $0xbf0] sm:$0xff]
    %v1660 = vld [vmem:[#allocation14 + $0xbf8] sm:$0xff]
    %v1661 = vld [vmem:[#allocation14 + $0xc00] sm:$0xff]
    %v1662 = vld [vmem:[#allocation14 + $0xc08] sm:$0xff]
    %v1663 = vld [vmem:[#allocation14 + $0xc10] sm:$0xff]
    %v1664 = vld [vmem:[#allocation14 + $0xc18] sm:$0xff]
    %v1665 = vld [vmem:[#allocation14 + $0xc20] sm:$0xff]
    %v1666 = vld [vmem:[#allocation14 + $0xc28] sm:$0xff]
    %v1667 = vld [vmem:[#allocation14 + $0xc30] sm:$0xff]
    %v1668 = vld [vmem:[#allocation14 + $0xc38] sm:$0xff]
    %v1669 = vld [vmem:[#allocation14 + $0xc40] sm:$0xff]
    %v1670 = vld [vmem:[#allocation14 + $0xc48] sm:$0xff]
    %v1671 = vld [vmem:[#allocation14 + $0xc50] sm:$0xff]
    %v1672 = vld [vmem:[#allocation14 + $0xc58] sm:$0xff]
    %v1673 = vld [vmem:[#allocation14 + $0xc60] sm:$0xff]
    %v1674 = vld [vmem:[#allocation14 + $0xc68] sm:$0xff]
    %v1675 = vld [vmem:[#allocation14 + $0xc70] sm:$0xff]
    %v1676 = vld [vmem:[#allocation14 + $0xc78] sm:$0xff]
    %v1677 = vld [vmem:[#allocation14 + $0xc80] sm:$0xff]
    %v1678 = vld [vmem:[#allocation14 + $0xc88] sm:$0xff]
    %v1679 = vld [vmem:[#allocation14 + $0xc90] sm:$0xff]
    %v1680 = vld [vmem:[#allocation14 + $0xc98] sm:$0xff]
    %v1681 = vld [vmem:[#allocation14 + $0xca0] sm:$0xff]
    %v1682 = vld [vmem:[#allocation14 + $0xca8] sm:$0xff]
    %v1683 = vld [vmem:[#allocation14 + $0xcb0] sm:$0xff]
    %v1684 = vld [vmem:[#allocation14 + $0xcb8] sm:$0xff]
    %v1685 = vld [vmem:[#allocation14 + $0xcc0] sm:$0xff]
    %v1686 = vld [vmem:[#allocation14 + $0xcc8] sm:$0xff]
    %v1687 = vld [vmem:[#allocation14 + $0xcd0] sm:$0xff]
    %v1688 = vld [vmem:[#allocation14 + $0xcd8] sm:$0xff]
    %v1689 = vld [vmem:[#allocation14 + $0xce0] sm:$0xff]
    %v1690 = vld [vmem:[#allocation14 + $0xce8] sm:$0xff]
    %v1691 = vld [vmem:[#allocation14 + $0xcf0] sm:$0xff]
    %v1692 = vld [vmem:[#allocation14 + $0xcf8] sm:$0xff]
    %v1693 = vld [vmem:[#allocation14 + $0xd00] sm:$0xff]
    %v1694 = vld [vmem:[#allocation14 + $0xd08] sm:$0xff]
    %v1695 = vld [vmem:[#allocation14 + $0xd10] sm:$0xff]
    %v1696 = vld [vmem:[#allocation14 + $0xd18] sm:$0xff]
    %v1697 = vld [vmem:[#allocation14 + $0xd20] sm:$0xff]
    %v1698 = vld [vmem:[#allocation14 + $0xd28] sm:$0xff]
    %v1699 = vld [vmem:[#allocation14 + $0xd30] sm:$0xff]
    %v1700 = vld [vmem:[#allocation14 + $0xd38] sm:$0xff]
    %v1701 = vld [vmem:[#allocation14 + $0xd40] sm:$0xff]
    %v1702 = vld [vmem:[#allocation14 + $0xd48] sm:$0xff]
    %v1703 = vld [vmem:[#allocation14 + $0xd50] sm:$0xff]
    %v1704 = vld [vmem:[#allocation14 + $0xd58] sm:$0xff]
    %v1705 = vld [vmem:[#allocation14 + $0xd60] sm:$0xff]
    %v1706 = vld [vmem:[#allocation14 + $0xd68] sm:$0xff]
    %v1707 = vld [vmem:[#allocation14 + $0xd70] sm:$0xff]
    %v1708 = vld [vmem:[#allocation14 + $0xd78] sm:$0xff]
    %v1709 = vld [vmem:[#allocation14 + $0xd80] sm:$0xff]
    %v1710 = vld [vmem:[#allocation14 + $0xd88] sm:$0xff]
    %v1711 = vld [vmem:[#allocation14 + $0xd90] sm:$0xff]
    %v1712 = vld [vmem:[#allocation14 + $0xd98] sm:$0xff]
    %v1713 = vld [vmem:[#allocation14 + $0xda0] sm:$0xff]
    %v1714 = vld [vmem:[#allocation14 + $0xda8] sm:$0xff]
    %v1715 = vld [vmem:[#allocation14 + $0xdb0] sm:$0xff]
    %v1716 = vld [vmem:[#allocation14 + $0xdb8] sm:$0xff]
    %v1717 = vld [vmem:[#allocation14 + $0xdc0] sm:$0xff]
    %v1718 = vld [vmem:[#allocation14 + $0xdc8] sm:$0xff]
    %v1719 = vld [vmem:[#allocation14 + $0xdd0] sm:$0xff]
    %v1720 = vld [vmem:[#allocation14 + $0xdd8] sm:$0xff]
    %v1721 = vld [vmem:[#allocation14 + $0xde0] sm:$0xff]
    %v1722 = vld [vmem:[#allocation14 + $0xde8] sm:$0xff]
    %v1723 = vld [vmem:[#allocation14 + $0xdf0] sm:$0xff]
    %v1724 = vld [vmem:[#allocation14 + $0xdf8] sm:$0xff]
    %v1725 = vld [vmem:[#allocation14 + $0xe00] sm:$0xff]
    %v1726 = vld [vmem:[#allocation14 + $0xe08] sm:$0xff]
    %v1727 = vld [vmem:[#allocation14 + $0xe10] sm:$0xff]
    %v1728 = vld [vmem:[#allocation14 + $0xe18] sm:$0xff]
    %v1729 = vld [vmem:[#allocation14 + $0xe20] sm:$0xff]
    %v1730 = vld [vmem:[#allocation14 + $0xe28] sm:$0xff]
    %v1731 = vld [vmem:[#allocation14 + $0xe30] sm:$0xff]
    %v1732 = vld [vmem:[#allocation14 + $0xe38] sm:$0xff]
    %v1733 = vld [vmem:[#allocation14 + $0xe40] sm:$0xff]
    %v1734 = vld [vmem:[#allocation14 + $0xe48] sm:$0xff]
    %v1735 = vld [vmem:[#allocation14 + $0xe50] sm:$0xff]
    %v1736 = vld [vmem:[#allocation14 + $0xe58] sm:$0xff]
    %v1737 = vld [vmem:[#allocation14 + $0xe60] sm:$0xff]
    %v1738 = vld [vmem:[#allocation14 + $0xe68] sm:$0xff]
    %v1739 = vld [vmem:[#allocation14 + $0xe70] sm:$0xff]
    %v1740 = vld [vmem:[#allocation14 + $0xe78] sm:$0xff]
    %v1741 = vld [vmem:[#allocation14 + $0xe80] sm:$0xff]
    %v1742 = vld [vmem:[#allocation14 + $0xe88] sm:$0xff]
    %v1743 = vld [vmem:[#allocation14 + $0xe90] sm:$0xff]
    %v1744 = vld [vmem:[#allocation14 + $0xe98] sm:$0xff]
    %v1745 = vld [vmem:[#allocation14 + $0xea0] sm:$0xff]
    %v1746 = vld [vmem:[#allocation14 + $0xea8] sm:$0xff]
    %v1747 = vld [vmem:[#allocation14 + $0xeb0] sm:$0xff]
    %v1748 = vld [vmem:[#allocation14 + $0xeb8] sm:$0xff]
    %v1749 = vld [vmem:[#allocation14 + $0xec0] sm:$0xff]
    %v1750 = vld [vmem:[#allocation14 + $0xec8] sm:$0xff]
    %v1751 = vld [vmem:[#allocation14 + $0xed0] sm:$0xff]
    %v1752 = vld [vmem:[#allocation14 + $0xed8] sm:$0xff]
    %v1753 = vld [vmem:[#allocation14 + $0xee0] sm:$0xff]
    %v1754 = vld [vmem:[#allocation14 + $0xee8] sm:$0xff]
    %v1755 = vld [vmem:[#allocation14 + $0xef0] sm:$0xff]
    %v1756 = vld [vmem:[#allocation14 + $0xef8] sm:$0xff]
    %v1757 = vld [vmem:[#allocation14 + $0xf00] sm:$0xff]
    %v1758 = vld [vmem:[#allocation14 + $0xf08] sm:$0xff]
    %v1759 = vld [vmem:[#allocation14 + $0xf10] sm:$0xff]
    %v1760 = vld [vmem:[#allocation14 + $0xf18] sm:$0xff]
    %v1761 = vld [vmem:[#allocation14 + $0xf20] sm:$0xff]
    %v1762 = vld [vmem:[#allocation14 + $0xf28] sm:$0xff]
    %v1763 = vld [vmem:[#allocation14 + $0xf30] sm:$0xff]
    %v1764 = vld [vmem:[#allocation14 + $0xf38] sm:$0xff]
    %v1765 = vld [vmem:[#allocation14 + $0xf40] sm:$0xff]
    %v1766 = vld [vmem:[#allocation14 + $0xf48] sm:$0xff]
    %v1767 = vld [vmem:[#allocation14 + $0xf50] sm:$0xff]
    %v1768 = vld [vmem:[#allocation14 + $0xf58] sm:$0xff]
    %v1769 = vld [vmem:[#allocation14 + $0xf60] sm:$0xff]
    %v1770 = vld [vmem:[#allocation14 + $0xf68] sm:$0xff]
    %v1771 = vld [vmem:[#allocation14 + $0xf70] sm:$0xff]
    %v1772 = vld [vmem:[#allocation14 + $0xf78] sm:$0xff]
    %v1773 = vld [vmem:[#allocation14 + $0xf80] sm:$0xff]
    %v1774 = vld [vmem:[#allocation14 + $0xf88] sm:$0xff]
    %v1775 = vld [vmem:[#allocation14 + $0xf90] sm:$0xff]
    %v1776 = vld [vmem:[#allocation14 + $0xf98] sm:$0xff]
    %v1777 = vld [vmem:[#allocation14 + $0xfa0] sm:$0xff]
    %v1778 = vld [vmem:[#allocation14 + $0xfa8] sm:$0xff]
    %v1779 = vld [vmem:[#allocation14 + $0xfb0] sm:$0xff]
    %v1780 = vld [vmem:[#allocation14 + $0xfb8] sm:$0xff]
    %v1781 = vld [vmem:[#allocation14 + $0xfc0] sm:$0xff]
    %v1782 = vld [vmem:[#allocation14 + $0xfc8] sm:$0xff]
    %v1783 = vld [vmem:[#allocation14 + $0xfd0] sm:$0xff]
    %v1784 = vld [vmem:[#allocation14 + $0xfd8] sm:$0xff]
    %v1785 = vld [vmem:[#allocation14 + $0xfe0] sm:$0xff]
    %v1786 = vld [vmem:[#allocation14 + $0xfe8] sm:$0xff]
    %v1787 = vld [vmem:[#allocation14 + $0xff0] sm:$0xff]
    %v1788 = vld [vmem:[#allocation14 + $0xff8] sm:$0xff]
    %v1789 = vld [vmem:[#allocation16] sm:$0xf]
    %v1791 = vlaneseq
    %v1792 = vshrl.u32 %v1791, 7
    %v1793 = vsub.s32 0, %v1792
    %v1794 = vrot.slane %v1789, %v1793
    %v1795 = vlaneseq
    %v1796 = vshrl.u32 %v1795, 7
    %v1797 = vsub.s32 1, %v1796
    %v1798 = vrot.slane %v1789, %v1797
    %v1799 = vlaneseq
    %v1800 = vshrl.u32 %v1799, 7
    %v1801 = vsub.s32 2, %v1800
    %v1802 = vrot.slane %v1789, %v1801
    %v1803 = vlaneseq
    %v1804 = vshrl.u32 %v1803, 7
    %v1805 = vsub.s32 3, %v1804
    %v1806 = vrot.slane %v1789, %v1805
    %1811 = vmatprep.subr.mxu0 %v1278
    %1812 = vmatpush1.msra.mxu0 %v1277
    %1813 = vmatprep.subr.mxu0 %v1282
    %1814 = vmatpush1.msra.mxu0 %v1281
    %1815 = vmatprep.subr.mxu0 %v1286
    %1816 = vmatpush1.msra.mxu0 %v1285
    %1817 = vmatprep.subr.mxu0 %v1290
    %1818 = vmatpush1.msra.mxu0 %v1289
    %1819 = vmatprep.subr.mxu0 %v1294
    %1820 = vmatpush1.msra.mxu0 %v1293
    %1821 = vmatprep.subr.mxu0 %v1298
    %1822 = vmatpush1.msra.mxu0 %v1297
    %1823 = vmatprep.subr.mxu0 %v1302
    %1824 = vmatpush1.msra.mxu0 %v1301
    %1825 = vmatprep.subr.mxu0 %v1306
    %1826 = vmatpush1.msra.mxu0 %v1305
    %1827 = vmatprep.subr.mxu0 %v1310
    %1828 = vmatpush1.msra.mxu0 %v1309
    %1829 = vmatprep.subr.mxu0 %v1314
    %1830 = vmatpush1.msra.mxu0 %v1313
    %1831 = vmatprep.subr.mxu0 %v1318
    %1832 = vmatpush1.msra.mxu0 %v1317
    %1833 = vmatprep.subr.mxu0 %v1322
    %1834 = vmatpush1.msra.mxu0 %v1321
    %1835 = vmatprep.subr.mxu0 %v1326
    %1836 = vmatpush1.msra.mxu0 %v1325
    %1837 = vmatprep.subr.mxu0 %v1330
    %1838 = vmatpush1.msra.mxu0 %v1329
    %1839 = vmatprep.subr.mxu0 %v1334
    %1840 = vmatpush1.msra.mxu0 %v1333
    %1841 = vmatprep.subr.mxu0 %v1338
    %1842 = vmatpush1.msra.mxu0 %v1337
    %1843 = vmatprep.subr.mxu0 %v1342
    %1844 = vmatpush1.msra.mxu0 %v1341
    %1845 = vmatprep.subr.mxu0 %v1346
    %1846 = vmatpush1.msra.mxu0 %v1345
    %1847 = vmatprep.subr.mxu0 %v1350
    %1848 = vmatpush1.msra.mxu0 %v1349
    %1849 = vmatprep.subr.mxu0 %v1354
    %1850 = vmatpush1.msra.mxu0 %v1353
    %1851 = vmatprep.subr.mxu0 %v1358
    %1852 = vmatpush1.msra.mxu0 %v1357
    %1853 = vmatprep.subr.mxu0 %v1362
    %1854 = vmatpush1.msra.mxu0 %v1361
    %1855 = vmatprep.subr.mxu0 %v1366
    %1856 = vmatpush1.msra.mxu0 %v1365
    %1857 = vmatprep.subr.mxu0 %v1370
    %1858 = vmatpush1.msra.mxu0 %v1369
    %1859 = vmatprep.subr.mxu0 %v1374
    %1860 = vmatpush1.msra.mxu0 %v1373
    %1861 = vmatprep.subr.mxu0 %v1378
    %1862 = vmatpush1.msra.mxu0 %v1377
    %1863 = vmatprep.subr.mxu0 %v1382
    %1864 = vmatpush1.msra.mxu0 %v1381
    %1865 = vmatprep.subr.mxu0 %v1386
    %1866 = vmatpush1.msra.mxu0 %v1385
    %1867 = vmatprep.subr.mxu0 %v1390
    %1868 = vmatpush1.msra.mxu0 %v1389
    %1869 = vmatprep.subr.mxu0 %v1394
    %1870 = vmatpush1.msra.mxu0 %v1393
    %1871 = vmatprep.subr.mxu0 %v1398
    %1872 = vmatpush1.msra.mxu0 %v1397
    %1873 = vmatprep.subr.mxu0 %v1402
    %1874 = vmatpush1.msra.mxu0 %v1401
    %1875 = vmatprep.mubr.f32.mxu0 %v1270
    %1876 = vmatmul.mubr.f32.gmra.mrb[0].mxu0 %v1269
    %v1877 = vpop.f32.mrb[0].mxu0
    %v1878 = vadd.f32 %v1794, %v1877
    %v1879 = vpop.f32.mrb[0].mxu0
    %v1880 = vadd.f32 %v1798, %v1879
    %1881 = vdwg.mxu0
    %1882 = vmatprep.subr.mxu0 %v1406
    %1883 = vmatpush1.msra.mxu0 %v1405
    %1884 = vmatprep.subr.mxu0 %v1410
    %1885 = vmatpush1.msra.mxu0 %v1409
    %1886 = vmatprep.subr.mxu0 %v1414
    %1887 = vmatpush1.msra.mxu0 %v1413
    %1888 = vmatprep.subr.mxu0 %v1418
    %1889 = vmatpush1.msra.mxu0 %v1417
    %1890 = vmatprep.subr.mxu0 %v1422
    %1891 = vmatpush1.msra.mxu0 %v1421
    %1892 = vmatprep.subr.mxu0 %v1426
    %1893 = vmatpush1.msra.mxu0 %v1425
    %1894 = vmatprep.subr.mxu0 %v1430
    %1895 = vmatpush1.msra.mxu0 %v1429
    %1896 = vmatprep.subr.mxu0 %v1434
    %1897 = vmatpush1.msra.mxu0 %v1433
    %1898 = vmatprep.subr.mxu0 %v1438
    %1899 = vmatpush1.msra.mxu0 %v1437
    %1900 = vmatprep.subr.mxu0 %v1442
    %1901 = vmatpush1.msra.mxu0 %v1441
    %1902 = vmatprep.subr.mxu0 %v1446
    %1903 = vmatpush1.msra.mxu0 %v1445
    %1904 = vmatprep.subr.mxu0 %v1450
    %1905 = vmatpush1.msra.mxu0 %v1449
    %1906 = vmatprep.subr.mxu0 %v1454
    %1907 = vmatpush1.msra.mxu0 %v1453
    %1908 = vmatprep.subr.mxu0 %v1458
    %1909 = vmatpush1.msra.mxu0 %v1457
    %1910 = vmatprep.subr.mxu0 %v1462
    %1911 = vmatpush1.msra.mxu0 %v1461
    %1912 = vmatprep.subr.mxu0 %v1466
    %1913 = vmatpush1.msra.mxu0 %v1465
    %1914 = vmatprep.subr.mxu0 %v1470
    %1915 = vmatpush1.msra.mxu0 %v1469
    %1916 = vmatprep.subr.mxu0 %v1474
    %1917 = vmatpush1.msra.mxu0 %v1473
    %1918 = vmatprep.subr.mxu0 %v1478
    %1919 = vmatpush1.msra.mxu0 %v1477
    %1920 = vmatprep.subr.mxu0 %v1482
    %1921 = vmatpush1.msra.mxu0 %v1481
    %1922 = vmatprep.subr.mxu0 %v1486
    %1923 = vmatpush1.msra.mxu0 %v1485
    %1924 = vmatprep.subr.mxu0 %v1490
    %1925 = vmatpush1.msra.mxu0 %v1489
    %1926 = vmatprep.subr.mxu0 %v1494
    %1927 = vmatpush1.msra.mxu0 %v1493
    %1928 = vmatprep.subr.mxu0 %v1498
    %1929 = vmatpush1.msra.mxu0 %v1497
    %1930 = vmatprep.subr.mxu0 %v1502
    %1931 = vmatpush1.msra.mxu0 %v1501
    %1932 = vmatprep.subr.mxu0 %v1506
    %1933 = vmatpush1.msra.mxu0 %v1505
    %1934 = vmatprep.subr.mxu0 %v1510
    %1935 = vmatpush1.msra.mxu0 %v1509
    %1936 = vmatprep.subr.mxu0 %v1514
    %1937 = vmatpush1.msra.mxu0 %v1513
    %1938 = vmatprep.subr.mxu0 %v1518
    %1939 = vmatpush1.msra.mxu0 %v1517
    %1940 = vmatprep.subr.mxu0 %v1522
    %1941 = vmatpush1.msra.mxu0 %v1521
    %1942 = vmatprep.subr.mxu0 %v1526
    %1943 = vmatpush1.msra.mxu0 %v1525
    %1944 = vmatprep.subr.mxu0 %v1530
    %1945 = vmatpush1.msra.mxu0 %v1529
    %1946 = vmatprep.mubr.f32.mxu0 %v1272
    %1947 = vmatmul.mubr.f32.gmra.mrb[0].mxu0 %v1271
    %v1948 = vpop.f32.mrb[0].mxu0
    %v1949 = vadd.f32 %v1878, %v1948
    %v1950 = vpop.f32.mrb[0].mxu0
    %v1951 = vadd.f32 %v1880, %v1950
    %1952 = vdwg.mxu0
    %1953 = vmatprep.subr.mxu0 %v1534
    %1954 = vmatpush1.msra.mxu0 %v1533
    %1955 = vmatprep.subr.mxu0 %v1538
    %1956 = vmatpush1.msra.mxu0 %v1537
    %1957 = vmatprep.subr.mxu0 %v1542
    %1958 = vmatpush1.msra.mxu0 %v1541
    %1959 = vmatprep.subr.mxu0 %v1546
    %1960 = vmatpush1.msra.mxu0 %v1545
    %1961 = vmatprep.subr.mxu0 %v1550
    %1962 = vmatpush1.msra.mxu0 %v1549
    %1963 = vmatprep.subr.mxu0 %v1554
    %1964 = vmatpush1.msra.mxu0 %v1553
    %1965 = vmatprep.subr.mxu0 %v1558
    %1966 = vmatpush1.msra.mxu0 %v1557
    %1967 = vmatprep.subr.mxu0 %v1562
    %1968 = vmatpush1.msra.mxu0 %v1561
    %1969 = vmatprep.subr.mxu0 %v1566
    %1970 = vmatpush1.msra.mxu0 %v1565
    %1971 = vmatprep.subr.mxu0 %v1570
    %1972 = vmatpush1.msra.mxu0 %v1569
    %1973 = vmatprep.subr.mxu0 %v1574
    %1974 = vmatpush1.msra.mxu0 %v1573
    %1975 = vmatprep.subr.mxu0 %v1578
    %1976 = vmatpush1.msra.mxu0 %v1577
    %1977 = vmatprep.subr.mxu0 %v1582
    %1978 = vmatpush1.msra.mxu0 %v1581
    %1979 = vmatprep.subr.mxu0 %v1586
    %1980 = vmatpush1.msra.mxu0 %v1585
    %1981 = vmatprep.subr.mxu0 %v1590
    %1982 = vmatpush1.msra.mxu0 %v1589
    %1983 = vmatprep.subr.mxu0 %v1594
    %1984 = vmatpush1.msra.mxu0 %v1593
    %1985 = vmatprep.subr.mxu0 %v1598
    %1986 = vmatpush1.msra.mxu0 %v1597
    %1987 = vmatprep.subr.mxu0 %v1602
    %1988 = vmatpush1.msra.mxu0 %v1601
    %1989 = vmatprep.subr.mxu0 %v1606
    %1990 = vmatpush1.msra.mxu0 %v1605
    %1991 = vmatprep.subr.mxu0 %v1610
    %1992 = vmatpush1.msra.mxu0 %v1609
    %1993 = vmatprep.subr.mxu0 %v1614
    %1994 = vmatpush1.msra.mxu0 %v1613
    %1995 = vmatprep.subr.mxu0 %v1618
    %1996 = vmatpush1.msra.mxu0 %v1617
    %1997 = vmatprep.subr.mxu0 %v1622
    %1998 = vmatpush1.msra.mxu0 %v1621
    %1999 = vmatprep.subr.mxu0 %v1626
    %2000 = vmatpush1.msra.mxu0 %v1625
    %2001 = vmatprep.subr.mxu0 %v1630
    %2002 = vmatpush1.msra.mxu0 %v1629
    %2003 = vmatprep.subr.mxu0 %v1634
    %2004 = vmatpush1.msra.mxu0 %v1633
    %2005 = vmatprep.subr.mxu0 %v1638
    %2006 = vmatpush1.msra.mxu0 %v1637
    %2007 = vmatprep.subr.mxu0 %v1642
    %2008 = vmatpush1.msra.mxu0 %v1641
    %2009 = vmatprep.subr.mxu0 %v1646
    %2010 = vmatpush1.msra.mxu0 %v1645
    %2011 = vmatprep.subr.mxu0 %v1650
    %2012 = vmatpush1.msra.mxu0 %v1649
    %2013 = vmatprep.subr.mxu0 %v1654
    %2014 = vmatpush1.msra.mxu0 %v1653
    %2015 = vmatprep.subr.mxu0 %v1658
    %2016 = vmatpush1.msra.mxu0 %v1657
    %2017 = vmatprep.mubr.f32.mxu0 %v1274
    %2018 = vmatmul.mubr.f32.gmra.mrb[0].mxu0 %v1273
    %v2019 = vpop.f32.mrb[0].mxu0
    %v2020 = vadd.f32 %v1949, %v2019
    %v2021 = vpop.f32.mrb[0].mxu0
    %v2022 = vadd.f32 %v1951, %v2021
    %2023 = vdwg.mxu0
    %2024 = vmatprep.subr.mxu0 %v1662
    %2025 = vmatpush1.msra.mxu0 %v1661
    %2026 = vmatprep.subr.mxu0 %v1666
    %2027 = vmatpush1.msra.mxu0 %v1665
    %2028 = vmatprep.subr.mxu0 %v1670
    %2029 = vmatpush1.msra.mxu0 %v1669
    %2030 = vmatprep.subr.mxu0 %v1674
    %2031 = vmatpush1.msra.mxu0 %v1673
    %2032 = vmatprep.subr.mxu0 %v1678
    %2033 = vmatpush1.msra.mxu0 %v1677
    %2034 = vmatprep.subr.mxu0 %v1682
    %2035 = vmatpush1.msra.mxu0 %v1681
    %2036 = vmatprep.subr.mxu0 %v1686
    %2037 = vmatpush1.msra.mxu0 %v1685
    %2038 = vmatprep.subr.mxu0 %v1690
    %2039 = vmatpush1.msra.mxu0 %v1689
    %2040 = vmatprep.subr.mxu0 %v1694
    %2041 = vmatpush1.msra.mxu0 %v1693
    %2042 = vmatprep.subr.mxu0 %v1698
    %2043 = vmatpush1.msra.mxu0 %v1697
    %2044 = vmatprep.subr.mxu0 %v1702
    %2045 = vmatpush1.msra.mxu0 %v1701
    %2046 = vmatprep.subr.mxu0 %v1706
    %2047 = vmatpush1.msra.mxu0 %v1705
    %2048 = vmatprep.subr.mxu0 %v1710
    %2049 = vmatpush1.msra.mxu0 %v1709
    %2050 = vmatprep.subr.mxu0 %v1714
    %2051 = vmatpush1.msra.mxu0 %v1713
    %2052 = vmatprep.subr.mxu0 %v1718
    %2053 = vmatpush1.msra.mxu0 %v1717
    %2054 = vmatprep.subr.mxu0 %v1722
    %2055 = vmatpush1.msra.mxu0 %v1721
    %2056 = vmatprep.subr.mxu0 %v1726
    %2057 = vmatpush1.msra.mxu0 %v1725
    %2058 = vmatprep.subr.mxu0 %v1730
    %2059 = vmatpush1.msra.mxu0 %v1729
    %2060 = vmatprep.subr.mxu0 %v1734
    %2061 = vmatpush1.msra.mxu0 %v1733
    %2062 = vmatprep.subr.mxu0 %v1738
    %2063 = vmatpush1.msra.mxu0 %v1737
    %2064 = vmatprep.subr.mxu0 %v1742
    %2065 = vmatpush1.msra.mxu0 %v1741
    %2066 = vmatprep.subr.mxu0 %v1746
    %2067 = vmatpush1.msra.mxu0 %v1745
    %2068 = vmatprep.subr.mxu0 %v1750
    %2069 = vmatpush1.msra.mxu0 %v1749
    %2070 = vmatprep.subr.mxu0 %v1754
    %2071 = vmatpush1.msra.mxu0 %v1753
    %2072 = vmatprep.subr.mxu0 %v1758
    %2073 = vmatpush1.msra.mxu0 %v1757
    %2074 = vmatprep.subr.mxu0 %v1762
    %2075 = vmatpush1.msra.mxu0 %v1761
    %2076 = vmatprep.subr.mxu0 %v1766
    %2077 = vmatpush1.msra.mxu0 %v1765
    %2078 = vmatprep.subr.mxu0 %v1770
    %2079 = vmatpush1.msra.mxu0 %v1769
    %2080 = vmatprep.subr.mxu0 %v1774
    %2081 = vmatpush1.msra.mxu0 %v1773
    %2082 = vmatprep.subr.mxu0 %v1778
    %2083 = vmatpush1.msra.mxu0 %v1777
    %2084 = vmatprep.subr.mxu0 %v1782
    %2085 = vmatpush1.msra.mxu0 %v1781
    %2086 = vmatprep.subr.mxu0 %v1786
    %2087 = vmatpush1.msra.mxu0 %v1785
    %2088 = vmatprep.mubr.f32.mxu0 %v1276
    %2089 = vmatmul.mubr.f32.gmra.mrb[0].mxu0 %v1275
    %v2090 = vpop.f32.mrb[0].mxu0
    %v2091 = vadd.f32 %v2020, %v2090
    %v2092 = vpop.f32.mrb[0].mxu0
    %v2093 = vadd.f32 %v2022, %v2092
    %2094 = vdwg.mxu0
    %2095 = vmatprep.subr.mxu0 %v1280
    %2096 = vmatpush1.msra.mxu0 %v1279
    %2097 = vmatprep.subr.mxu0 %v1284
    %2098 = vmatpush1.msra.mxu0 %v1283
    %2099 = vmatprep.subr.mxu0 %v1288
    %2100 = vmatpush1.msra.mxu0 %v1287
    %2101 = vmatprep.subr.mxu0 %v1292
    %2102 = vmatpush1.msra.mxu0 %v1291
    %2103 = vmatprep.subr.mxu0 %v1296
    %2104 = vmatpush1.msra.mxu0 %v1295
    %2105 = vmatprep.subr.mxu0 %v1300
    %2106 = vmatpush1.msra.mxu0 %v1299
    %2107 = vmatprep.subr.mxu0 %v1304
    %2108 = vmatpush1.msra.mxu0 %v1303
    %2109 = vmatprep.subr.mxu0 %v1308
    %2110 = vmatpush1.msra.mxu0 %v1307
    %2111 = vmatprep.subr.mxu0 %v1312
    %2112 = vmatpush1.msra.mxu0 %v1311
    %2113 = vmatprep.subr.mxu0 %v1316
    %2114 = vmatpush1.msra.mxu0 %v1315
    %2115 = vmatprep.subr.mxu0 %v1320
    %2116 = vmatpush1.msra.mxu0 %v1319
    %2117 = vmatprep.subr.mxu0 %v1324
    %2118 = vmatpush1.msra.mxu0 %v1323
    %2119 = vmatprep.subr.mxu0 %v1328
    %2120 = vmatpush1.msra.mxu0 %v1327
    %2121 = vmatprep.subr.mxu0 %v1332
    %2122 = vmatpush1.msra.mxu0 %v1331
    %2123 = vmatprep.subr.mxu0 %v1336
    %2124 = vmatpush1.msra.mxu0 %v1335
    %2125 = vmatprep.subr.mxu0 %v1340
    %2126 = vmatpush1.msra.mxu0 %v1339
    %2127 = vmatprep.subr.mxu0 %v1344
    %2128 = vmatpush1.msra.mxu0 %v1343
    %2129 = vmatprep.subr.mxu0 %v1348
    %2130 = vmatpush1.msra.mxu0 %v1347
    %2131 = vmatprep.subr.mxu0 %v1352
    %2132 = vmatpush1.msra.mxu0 %v1351
    %2133 = vmatprep.subr.mxu0 %v1356
    %2134 = vmatpush1.msra.mxu0 %v1355
    %2135 = vmatprep.subr.mxu0 %v1360
    %2136 = vmatpush1.msra.mxu0 %v1359
    %2137 = vmatprep.subr.mxu0 %v1364
    %2138 = vmatpush1.msra.mxu0 %v1363
    %2139 = vmatprep.subr.mxu0 %v1368
    %2140 = vmatpush1.msra.mxu0 %v1367
    %2141 = vmatprep.subr.mxu0 %v1372
    %2142 = vmatpush1.msra.mxu0 %v1371
    %2143 = vmatprep.subr.mxu0 %v1376
    %2144 = vmatpush1.msra.mxu0 %v1375
    %2145 = vmatprep.subr.mxu0 %v1380
    %2146 = vmatpush1.msra.mxu0 %v1379
    %2147 = vmatprep.subr.mxu0 %v1384
    %2148 = vmatpush1.msra.mxu0 %v1383
    %2149 = vmatprep.subr.mxu0 %v1388
    %2150 = vmatpush1.msra.mxu0 %v1387
    %2151 = vmatprep.subr.mxu0 %v1392
    %2152 = vmatpush1.msra.mxu0 %v1391
    %2153 = vmatprep.subr.mxu0 %v1396
    %2154 = vmatpush1.msra.mxu0 %v1395
    %2155 = vmatprep.subr.mxu0 %v1400
    %2156 = vmatpush1.msra.mxu0 %v1399
    %2157 = vmatprep.subr.mxu0 %v1404
    %2158 = vmatpush1.msra.mxu0 %v1403
    %2159 = vmatprep.mubr.f32.mxu0 %v1270
    %2160 = vmatmul.mubr.f32.gmra.mrb[0].mxu0 %v1269
    %v2161 = vpop.f32.mrb[0].mxu0
    %v2162 = vadd.f32 %v1802, %v2161
    %v2163 = vpop.f32.mrb[0].mxu0
    %v2164 = vadd.f32 %v1806, %v2163
    %2165 = vdwg.mxu0
    %2166 = vmatprep.subr.mxu0 %v1408
    %2167 = vmatpush1.msra.mxu0 %v1407
    %2168 = vmatprep.subr.mxu0 %v1412
    %2169 = vmatpush1.msra.mxu0 %v1411
    %2170 = vmatprep.subr.mxu0 %v1416
    %2171 = vmatpush1.msra.mxu0 %v1415
    %2172 = vmatprep.subr.mxu0 %v1420
    %2173 = vmatpush1.msra.mxu0 %v1419
    %2174 = vmatprep.subr.mxu0 %v1424
    %2175 = vmatpush1.msra.mxu0 %v1423
    %2176 = vmatprep.subr.mxu0 %v1428
    %2177 = vmatpush1.msra.mxu0 %v1427
    %2178 = vmatprep.subr.mxu0 %v1432
    %2179 = vmatpush1.msra.mxu0 %v1431
    %2180 = vmatprep.subr.mxu0 %v1436
    %2181 = vmatpush1.msra.mxu0 %v1435
    %2182 = vmatprep.subr.mxu0 %v1440
    %2183 = vmatpush1.msra.mxu0 %v1439
    %2184 = vmatprep.subr.mxu0 %v1444
    %2185 = vmatpush1.msra.mxu0 %v1443
    %2186 = vmatprep.subr.mxu0 %v1448
    %2187 = vmatpush1.msra.mxu0 %v1447
    %2188 = vmatprep.subr.mxu0 %v1452
    %2189 = vmatpush1.msra.mxu0 %v1451
    %2190 = vmatprep.subr.mxu0 %v1456
    %2191 = vmatpush1.msra.mxu0 %v1455
    %2192 = vmatprep.subr.mxu0 %v1460
    %2193 = vmatpush1.msra.mxu0 %v1459
    %2194 = vmatprep.subr.mxu0 %v1464
    %2195 = vmatpush1.msra.mxu0 %v1463
    %2196 = vmatprep.subr.mxu0 %v1468
    %2197 = vmatpush1.msra.mxu0 %v1467
    %2198 = vmatprep.subr.mxu0 %v1472
    %2199 = vmatpush1.msra.mxu0 %v1471
    %2200 = vmatprep.subr.mxu0 %v1476
    %2201 = vmatpush1.msra.mxu0 %v1475
    %2202 = vmatprep.subr.mxu0 %v1480
    %2203 = vmatpush1.msra.mxu0 %v1479
    %2204 = vmatprep.subr.mxu0 %v1484
    %2205 = vmatpush1.msra.mxu0 %v1483
    %2206 = vmatprep.subr.mxu0 %v1488
    %2207 = vmatpush1.msra.mxu0 %v1487
    %2208 = vmatprep.subr.mxu0 %v1492
    %2209 = vmatpush1.msra.mxu0 %v1491
    %2210 = vmatprep.subr.mxu0 %v1496
    %2211 = vmatpush1.msra.mxu0 %v1495
    %2212 = vmatprep.subr.mxu0 %v1500
    %2213 = vmatpush1.msra.mxu0 %v1499
    %2214 = vmatprep.subr.mxu0 %v1504
    %2215 = vmatpush1.msra.mxu0 %v1503
    %2216 = vmatprep.subr.mxu0 %v1508
    %2217 = vmatpush1.msra.mxu0 %v1507
    %2218 = vmatprep.subr.mxu0 %v1512
    %2219 = vmatpush1.msra.mxu0 %v1511
    %2220 = vmatprep.subr.mxu0 %v1516
    %2221 = vmatpush1.msra.mxu0 %v1515
    %2222 = vmatprep.subr.mxu0 %v1520
    %2223 = vmatpush1.msra.mxu0 %v1519
    %2224 = vmatprep.subr.mxu0 %v1524
    %2225 = vmatpush1.msra.mxu0 %v1523
    %2226 = vmatprep.subr.mxu0 %v1528
    %2227 = vmatpush1.msra.mxu0 %v1527
    %2228 = vmatprep.subr.mxu0 %v1532
    %2229 = vmatpush1.msra.mxu0 %v1531
    %2230 = vmatprep.mubr.f32.mxu0 %v1272
    %2231 = vmatmul.mubr.f32.gmra.mrb[0].mxu0 %v1271
    %v2232 = vpop.f32.mrb[0].mxu0
    %v2233 = vadd.f32 %v2162, %v2232
    %v2234 = vpop.f32.mrb[0].mxu0
    %v2235 = vadd.f32 %v2164, %v2234
    %2236 = vdwg.mxu0
    %2237 = vmatprep.subr.mxu0 %v1536
    %2238 = vmatpush1.msra.mxu0 %v1535
    %2239 = vmatprep.subr.mxu0 %v1540
    %2240 = vmatpush1.msra.mxu0 %v1539
    %2241 = vmatprep.subr.mxu0 %v1544
    %2242 = vmatpush1.msra.mxu0 %v1543
    %2243 = vmatprep.subr.mxu0 %v1548
    %2244 = vmatpush1.msra.mxu0 %v1547
    %2245 = vmatprep.subr.mxu0 %v1552
    %2246 = vmatpush1.msra.mxu0 %v1551
    %2247 = vmatprep.subr.mxu0 %v1556
    %2248 = vmatpush1.msra.mxu0 %v1555
    %2249 = vmatprep.subr.mxu0 %v1560
    %2250 = vmatpush1.msra.mxu0 %v1559
    %2251 = vmatprep.subr.mxu0 %v1564
    %2252 = vmatpush1.msra.mxu0 %v1563
    %2253 = vmatprep.subr.mxu0 %v1568
    %2254 = vmatpush1.msra.mxu0 %v1567
    %2255 = vmatprep.subr.mxu0 %v1572
    %2256 = vmatpush1.msra.mxu0 %v1571
    %2257 = vmatprep.subr.mxu0 %v1576
    %2258 = vmatpush1.msra.mxu0 %v1575
    %2259 = vmatprep.subr.mxu0 %v1580
    %2260 = vmatpush1.msra.mxu0 %v1579
    %2261 = vmatprep.subr.mxu0 %v1584
    %2262 = vmatpush1.msra.mxu0 %v1583
    %2263 = vmatprep.subr.mxu0 %v1588
    %2264 = vmatpush1.msra.mxu0 %v1587
    %2265 = vmatprep.subr.mxu0 %v1592
    %2266 = vmatpush1.msra.mxu0 %v1591
    %2267 = vmatprep.subr.mxu0 %v1596
    %2268 = vmatpush1.msra.mxu0 %v1595
    %2269 = vmatprep.subr.mxu0 %v1600
    %2270 = vmatpush1.msra.mxu0 %v1599
    %2271 = vmatprep.subr.mxu0 %v1604
    %2272 = vmatpush1.msra.mxu0 %v1603
    %2273 = vmatprep.subr.mxu0 %v1608
    %2274 = vmatpush1.msra.mxu0 %v1607
    %2275 = vmatprep.subr.mxu0 %v1612
    %2276 = vmatpush1.msra.mxu0 %v1611
    %2277 = vmatprep.subr.mxu0 %v1616
    %2278 = vmatpush1.msra.mxu0 %v1615
    %2279 = vmatprep.subr.mxu0 %v1620
    %2280 = vmatpush1.msra.mxu0 %v1619
    %2281 = vmatprep.subr.mxu0 %v1624
    %2282 = vmatpush1.msra.mxu0 %v1623
    %2283 = vmatprep.subr.mxu0 %v1628
    %2284 = vmatpush1.msra.mxu0 %v1627
    %2285 = vmatprep.subr.mxu0 %v1632
    %2286 = vmatpush1.msra.mxu0 %v1631
    %2287 = vmatprep.subr.mxu0 %v1636
    %2288 = vmatpush1.msra.mxu0 %v1635
    %2289 = vmatprep.subr.mxu0 %v1640
    %2290 = vmatpush1.msra.mxu0 %v1639
    %2291 = vmatprep.subr.mxu0 %v1644
    %2292 = vmatpush1.msra.mxu0 %v1643
    %2293 = vmatprep.subr.mxu0 %v1648
    %2294 = vmatpush1.msra.mxu0 %v1647
    %2295 = vmatprep.subr.mxu0 %v1652
    %2296 = vmatpush1.msra.mxu0 %v1651
    %2297 = vmatprep.subr.mxu0 %v1656
    %2298 = vmatpush1.msra.mxu0 %v1655
    %2299 = vmatprep.subr.mxu0 %v1660
    %2300 = vmatpush1.msra.mxu0 %v1659
    %2301 = vmatprep.mubr.f32.mxu0 %v1274
    %2302 = vmatmul.mubr.f32.gmra.mrb[0].mxu0 %v1273
    %v2303 = vpop.f32.mrb[0].mxu0
    %v2304 = vadd.f32 %v2233, %v2303
    %v2305 = vpop.f32.mrb[0].mxu0
    %v2306 = vadd.f32 %v2235, %v2305
    %2307 = vdwg.mxu0
    %2308 = vmatprep.subr.mxu0 %v1664
    %2309 = vmatpush1.msra.mxu0 %v1663
    %2310 = vmatprep.subr.mxu0 %v1668
    %2311 = vmatpush1.msra.mxu0 %v1667
    %2312 = vmatprep.subr.mxu0 %v1672
    %2313 = vmatpush1.msra.mxu0 %v1671
    %2314 = vmatprep.subr.mxu0 %v1676
    %2315 = vmatpush1.msra.mxu0 %v1675
    %2316 = vmatprep.subr.mxu0 %v1680
    %2317 = vmatpush1.msra.mxu0 %v1679
    %2318 = vmatprep.subr.mxu0 %v1684
    %2319 = vmatpush1.msra.mxu0 %v1683
    %2320 = vmatprep.subr.mxu0 %v1688
    %2321 = vmatpush1.msra.mxu0 %v1687
    %2322 = vmatprep.subr.mxu0 %v1692
    %2323 = vmatpush1.msra.mxu0 %v1691
    %2324 = vmatprep.subr.mxu0 %v1696
    %2325 = vmatpush1.msra.mxu0 %v1695
    %2326 = vmatprep.subr.mxu0 %v1700
    %2327 = vmatpush1.msra.mxu0 %v1699
    %2328 = vmatprep.subr.mxu0 %v1704
    %2329 = vmatpush1.msra.mxu0 %v1703
    %2330 = vmatprep.subr.mxu0 %v1708
    %2331 = vmatpush1.msra.mxu0 %v1707
    %2332 = vmatprep.subr.mxu0 %v1712
    %2333 = vmatpush1.msra.mxu0 %v1711
    %2334 = vmatprep.subr.mxu0 %v1716
    %2335 = vmatpush1.msra.mxu0 %v1715
    %2336 = vmatprep.subr.mxu0 %v1720
    %2337 = vmatpush1.msra.mxu0 %v1719
    %2338 = vmatprep.subr.mxu0 %v1724
    %2339 = vmatpush1.msra.mxu0 %v1723
    %2340 = vmatprep.subr.mxu0 %v1728
    %2341 = vmatpush1.msra.mxu0 %v1727
    %2342 = vmatprep.subr.mxu0 %v1732
    %2343 = vmatpush1.msra.mxu0 %v1731
    %2344 = vmatprep.subr.mxu0 %v1736
    %2345 = vmatpush1.msra.mxu0 %v1735
    %2346 = vmatprep.subr.mxu0 %v1740
    %2347 = vmatpush1.msra.mxu0 %v1739
    %2348 = vmatprep.subr.mxu0 %v1744
    %2349 = vmatpush1.msra.mxu0 %v1743
    %2350 = vmatprep.subr.mxu0 %v1748
    %2351 = vmatpush1.msra.mxu0 %v1747
    %2352 = vmatprep.subr.mxu0 %v1752
    %2353 = vmatpush1.msra.mxu0 %v1751
    %2354 = vmatprep.subr.mxu0 %v1756
    %2355 = vmatpush1.msra.mxu0 %v1755
    %2356 = vmatprep.subr.mxu0 %v1760
    %2357 = vmatpush1.msra.mxu0 %v1759
    %2358 = vmatprep.subr.mxu0 %v1764
    %2359 = vmatpush1.msra.mxu0 %v1763
    %2360 = vmatprep.subr.mxu0 %v1768
    %2361 = vmatpush1.msra.mxu0 %v1767
    %2362 = vmatprep.subr.mxu0 %v1772
    %2363 = vmatpush1.msra.mxu0 %v1771
    %2364 = vmatprep.subr.mxu0 %v1776
    %2365 = vmatpush1.msra.mxu0 %v1775
    %2366 = vmatprep.subr.mxu0 %v1780
    %2367 = vmatpush1.msra.mxu0 %v1779
    %2368 = vmatprep.subr.mxu0 %v1784
    %2369 = vmatpush1.msra.mxu0 %v1783
    %2370 = vmatprep.subr.mxu0 %v1788
    %2371 = vmatpush1.msra.mxu0 %v1787
    %2372 = vmatprep.mubr.f32.mxu0 %v1276
    %2373 = vmatmul.mubr.f32.gmra.mrb[0].mxu0 %v1275
    %v2374 = vpop.f32.mrb[0].mxu0
    %v2375 = vadd.f32 %v2304, %v2374
    %v2376 = vpop.f32.mrb[0].mxu0
    %v2377 = vadd.f32 %v2306, %v2376
    %2378 = vdwg.mxu0
    %v2379 = vmax.f32 %v2091, 0.0
    %v2380 = vmax.f32 %v2093, 0.0
    %v2381 = vmax.f32 %v2375, 0.0
    %v2382 = vmax.f32 %v2377, 0.0
    %v2383 = vld [vmem:[#allocation17] sm:$0xff]
    %v2384 = vld [vmem:[#allocation17 + $0x8] sm:$0xff]
    %v2385 = vld [vmem:[#allocation17 + $0x10] sm:$0xff]
    %v2386 = vld [vmem:[#allocation17 + $0x18] sm:$0xff]
    %v2387 = vld [vmem:[#allocation17 + $0x20] sm:$0xff]
    %v2388 = vld [vmem:[#allocation17 + $0x28] sm:$0xff]
    %v2389 = vld [vmem:[#allocation17 + $0x30] sm:$0xff]
    %v2390 = vld [vmem:[#allocation17 + $0x38] sm:$0xff]
    %v2391 = vld [vmem:[#allocation17 + $0x40] sm:$0xff]
    %v2392 = vld [vmem:[#allocation17 + $0x48] sm:$0xff]
    %v2393 = vld [vmem:[#allocation17 + $0x50] sm:$0xff]
    %v2394 = vld [vmem:[#allocation17 + $0x58] sm:$0xff]
    %v2395 = vld [vmem:[#allocation17 + $0x60] sm:$0xff]
    %v2396 = vld [vmem:[#allocation17 + $0x68] sm:$0xff]
    %v2397 = vld [vmem:[#allocation17 + $0x70] sm:$0xff]
    %v2398 = vld [vmem:[#allocation17 + $0x78] sm:$0xff]
    %v2399 = vld [vmem:[#allocation17 + $0x80] sm:$0xff]
    %v2400 = vld [vmem:[#allocation17 + $0x88] sm:$0xff]
    %v2401 = vld [vmem:[#allocation17 + $0x90] sm:$0xff]
    %v2402 = vld [vmem:[#allocation17 + $0x98] sm:$0xff]
    %v2403 = vld [vmem:[#allocation17 + $0xa0] sm:$0xff]
    %v2404 = vld [vmem:[#allocation17 + $0xa8] sm:$0xff]
    %v2405 = vld [vmem:[#allocation17 + $0xb0] sm:$0xff]
    %v2406 = vld [vmem:[#allocation17 + $0xb8] sm:$0xff]
    %v2407 = vld [vmem:[#allocation17 + $0xc0] sm:$0xff]
    %v2408 = vld [vmem:[#allocation17 + $0xc8] sm:$0xff]
    %v2409 = vld [vmem:[#allocation17 + $0xd0] sm:$0xff]
    %v2410 = vld [vmem:[#allocation17 + $0xd8] sm:$0xff]
    %v2411 = vld [vmem:[#allocation17 + $0xe0] sm:$0xff]
    %v2412 = vld [vmem:[#allocation17 + $0xe8] sm:$0xff]
    %v2413 = vld [vmem:[#allocation17 + $0xf0] sm:$0xff]
    %v2414 = vld [vmem:[#allocation17 + $0xf8] sm:$0xff]
    %v2415 = vld [vmem:[#allocation17 + $0x100] sm:$0xff]
    %v2416 = vld [vmem:[#allocation17 + $0x108] sm:$0xff]
    %v2417 = vld [vmem:[#allocation17 + $0x110] sm:$0xff]
    %v2418 = vld [vmem:[#allocation17 + $0x118] sm:$0xff]
    %v2419 = vld [vmem:[#allocation17 + $0x120] sm:$0xff]
    %v2420 = vld [vmem:[#allocation17 + $0x128] sm:$0xff]
    %v2421 = vld [vmem:[#allocation17 + $0x130] sm:$0xff]
    %v2422 = vld [vmem:[#allocation17 + $0x138] sm:$0xff]
    %v2423 = vld [vmem:[#allocation17 + $0x140] sm:$0xff]
    %v2424 = vld [vmem:[#allocation17 + $0x148] sm:$0xff]
    %v2425 = vld [vmem:[#allocation17 + $0x150] sm:$0xff]
    %v2426 = vld [vmem:[#allocation17 + $0x158] sm:$0xff]
    %v2427 = vld [vmem:[#allocation17 + $0x160] sm:$0xff]
    %v2428 = vld [vmem:[#allocation17 + $0x168] sm:$0xff]
    %v2429 = vld [vmem:[#allocation17 + $0x170] sm:$0xff]
    %v2430 = vld [vmem:[#allocation17 + $0x178] sm:$0xff]
    %v2431 = vld [vmem:[#allocation17 + $0x180] sm:$0xff]
    %v2432 = vld [vmem:[#allocation17 + $0x188] sm:$0xff]
    %v2433 = vld [vmem:[#allocation17 + $0x190] sm:$0xff]
    %v2434 = vld [vmem:[#allocation17 + $0x198] sm:$0xff]
    %v2435 = vld [vmem:[#allocation17 + $0x1a0] sm:$0xff]
    %v2436 = vld [vmem:[#allocation17 + $0x1a8] sm:$0xff]
    %v2437 = vld [vmem:[#allocation17 + $0x1b0] sm:$0xff]
    %v2438 = vld [vmem:[#allocation17 + $0x1b8] sm:$0xff]
    %v2439 = vld [vmem:[#allocation17 + $0x1c0] sm:$0xff]
    %v2440 = vld [vmem:[#allocation17 + $0x1c8] sm:$0xff]
    %v2441 = vld [vmem:[#allocation17 + $0x1d0] sm:$0xff]
    %v2442 = vld [vmem:[#allocation17 + $0x1d8] sm:$0xff]
    %v2443 = vld [vmem:[#allocation17 + $0x1e0] sm:$0xff]
    %v2444 = vld [vmem:[#allocation17 + $0x1e8] sm:$0xff]
    %v2445 = vld [vmem:[#allocation17 + $0x1f0] sm:$0xff]
    %v2446 = vld [vmem:[#allocation17 + $0x1f8] sm:$0xff]
    %v2447 = vld [vmem:[#allocation17 + $0x200] sm:$0xff]
    %v2448 = vld [vmem:[#allocation17 + $0x208] sm:$0xff]
    %v2449 = vld [vmem:[#allocation17 + $0x210] sm:$0xff]
    %v2450 = vld [vmem:[#allocation17 + $0x218] sm:$0xff]
    %v2451 = vld [vmem:[#allocation17 + $0x220] sm:$0xff]
    %v2452 = vld [vmem:[#allocation17 + $0x228] sm:$0xff]
    %v2453 = vld [vmem:[#allocation17 + $0x230] sm:$0xff]
    %v2454 = vld [vmem:[#allocation17 + $0x238] sm:$0xff]
    %v2455 = vld [vmem:[#allocation17 + $0x240] sm:$0xff]
    %v2456 = vld [vmem:[#allocation17 + $0x248] sm:$0xff]
    %v2457 = vld [vmem:[#allocation17 + $0x250] sm:$0xff]
    %v2458 = vld [vmem:[#allocation17 + $0x258] sm:$0xff]
    %v2459 = vld [vmem:[#allocation17 + $0x260] sm:$0xff]
    %v2460 = vld [vmem:[#allocation17 + $0x268] sm:$0xff]
    %v2461 = vld [vmem:[#allocation17 + $0x270] sm:$0xff]
    %v2462 = vld [vmem:[#allocation17 + $0x278] sm:$0xff]
    %v2463 = vld [vmem:[#allocation17 + $0x280] sm:$0xff]
    %v2464 = vld [vmem:[#allocation17 + $0x288] sm:$0xff]
    %v2465 = vld [vmem:[#allocation17 + $0x290] sm:$0xff]
    %v2466 = vld [vmem:[#allocation17 + $0x298] sm:$0xff]
    %v2467 = vld [vmem:[#allocation17 + $0x2a0] sm:$0xff]
    %v2468 = vld [vmem:[#allocation17 + $0x2a8] sm:$0xff]
    %v2469 = vld [vmem:[#allocation17 + $0x2b0] sm:$0xff]
    %v2470 = vld [vmem:[#allocation17 + $0x2b8] sm:$0xff]
    %v2471 = vld [vmem:[#allocation17 + $0x2c0] sm:$0xff]
    %v2472 = vld [vmem:[#allocation17 + $0x2c8] sm:$0xff]
    %v2473 = vld [vmem:[#allocation17 + $0x2d0] sm:$0xff]
    %v2474 = vld [vmem:[#allocation17 + $0x2d8] sm:$0xff]
    %v2475 = vld [vmem:[#allocation17 + $0x2e0] sm:$0xff]
    %v2476 = vld [vmem:[#allocation17 + $0x2e8] sm:$0xff]
    %v2477 = vld [vmem:[#allocation17 + $0x2f0] sm:$0xff]
    %v2478 = vld [vmem:[#allocation17 + $0x2f8] sm:$0xff]
    %v2479 = vld [vmem:[#allocation17 + $0x300] sm:$0xff]
    %v2480 = vld [vmem:[#allocation17 + $0x308] sm:$0xff]
    %v2481 = vld [vmem:[#allocation17 + $0x310] sm:$0xff]
    %v2482 = vld [vmem:[#allocation17 + $0x318] sm:$0xff]
    %v2483 = vld [vmem:[#allocation17 + $0x320] sm:$0xff]
    %v2484 = vld [vmem:[#allocation17 + $0x328] sm:$0xff]
    %v2485 = vld [vmem:[#allocation17 + $0x330] sm:$0xff]
    %v2486 = vld [vmem:[#allocation17 + $0x338] sm:$0xff]
    %v2487 = vld [vmem:[#allocation17 + $0x340] sm:$0xff]
    %v2488 = vld [vmem:[#allocation17 + $0x348] sm:$0xff]
    %v2489 = vld [vmem:[#allocation17 + $0x350] sm:$0xff]
    %v2490 = vld [vmem:[#allocation17 + $0x358] sm:$0xff]
    %v2491 = vld [vmem:[#allocation17 + $0x360] sm:$0xff]
    %v2492 = vld [vmem:[#allocation17 + $0x368] sm:$0xff]
    %v2493 = vld [vmem:[#allocation17 + $0x370] sm:$0xff]
    %v2494 = vld [vmem:[#allocation17 + $0x378] sm:$0xff]
    %v2495 = vld [vmem:[#allocation17 + $0x380] sm:$0xff]
    %v2496 = vld [vmem:[#allocation17 + $0x388] sm:$0xff]
    %v2497 = vld [vmem:[#allocation17 + $0x390] sm:$0xff]
    %v2498 = vld [vmem:[#allocation17 + $0x398] sm:$0xff]
    %v2499 = vld [vmem:[#allocation17 + $0x3a0] sm:$0xff]
    %v2500 = vld [vmem:[#allocation17 + $0x3a8] sm:$0xff]
    %v2501 = vld [vmem:[#allocation17 + $0x3b0] sm:$0xff]
    %v2502 = vld [vmem:[#allocation17 + $0x3b8] sm:$0xff]
    %v2503 = vld [vmem:[#allocation17 + $0x3c0] sm:$0xff]
    %v2504 = vld [vmem:[#allocation17 + $0x3c8] sm:$0xff]
    %v2505 = vld [vmem:[#allocation17 + $0x3d0] sm:$0xff]
    %v2506 = vld [vmem:[#allocation17 + $0x3d8] sm:$0xff]
    %v2507 = vld [vmem:[#allocation17 + $0x3e0] sm:$0xff]
    %v2508 = vld [vmem:[#allocation17 + $0x3e8] sm:$0xff]
    %v2509 = vld [vmem:[#allocation17 + $0x3f0] sm:$0xff]
    %v2510 = vld [vmem:[#allocation17 + $0x3f8] sm:$0xff]
    %v2511 = vld [vmem:[#allocation19] sm:$0x3]
    %v2513 = vlaneseq
    %v2514 = vshrl.u32 %v2513, 7
    %v2515 = vsub.s32 0, %v2514
    %v2516 = vrot.slane %v2511, %v2515
    %v2517 = vlaneseq
    %v2518 = vshrl.u32 %v2517, 7
    %v2519 = vsub.s32 1, %v2518
    %v2520 = vrot.slane %v2511, %v2519
    %2523 = vmatprep.subr.mxu0 %v2384
    %2524 = vmatpush1.msra.mxu0 %v2383
    %2525 = vmatprep.subr.mxu0 %v2386
    %2526 = vmatpush1.msra.mxu0 %v2385
    %2527 = vmatprep.subr.mxu0 %v2388
    %2528 = vmatpush1.msra.mxu0 %v2387
    %2529 = vmatprep.subr.mxu0 %v2390
    %2530 = vmatpush1.msra.mxu0 %v2389
    %2531 = vmatprep.subr.mxu0 %v2392
    %2532 = vmatpush1.msra.mxu0 %v2391
    %2533 = vmatprep.subr.mxu0 %v2394
    %2534 = vmatpush1.msra.mxu0 %v2393
    %2535 = vmatprep.subr.mxu0 %v2396
    %2536 = vmatpush1.msra.mxu0 %v2395
    %2537 = vmatprep.subr.mxu0 %v2398
    %2538 = vmatpush1.msra.mxu0 %v2397
    %2539 = vmatprep.subr.mxu0 %v2400
    %2540 = vmatpush1.msra.mxu0 %v2399
    %2541 = vmatprep.subr.mxu0 %v2402
    %2542 = vmatpush1.msra.mxu0 %v2401
    %2543 = vmatprep.subr.mxu0 %v2404
    %2544 = vmatpush1.msra.mxu0 %v2403
    %2545 = vmatprep.subr.mxu0 %v2406
    %2546 = vmatpush1.msra.mxu0 %v2405
    %2547 = vmatprep.subr.mxu0 %v2408
    %2548 = vmatpush1.msra.mxu0 %v2407
    %2549 = vmatprep.subr.mxu0 %v2410
    %2550 = vmatpush1.msra.mxu0 %v2409
    %2551 = vmatprep.subr.mxu0 %v2412
    %2552 = vmatpush1.msra.mxu0 %v2411
    %2553 = vmatprep.subr.mxu0 %v2414
    %2554 = vmatpush1.msra.mxu0 %v2413
    %2555 = vmatprep.subr.mxu0 %v2416
    %2556 = vmatpush1.msra.mxu0 %v2415
    %2557 = vmatprep.subr.mxu0 %v2418
    %2558 = vmatpush1.msra.mxu0 %v2417
    %2559 = vmatprep.subr.mxu0 %v2420
    %2560 = vmatpush1.msra.mxu0 %v2419
    %2561 = vmatprep.subr.mxu0 %v2422
    %2562 = vmatpush1.msra.mxu0 %v2421
    %2563 = vmatprep.subr.mxu0 %v2424
    %2564 = vmatpush1.msra.mxu0 %v2423
    %2565 = vmatprep.subr.mxu0 %v2426
    %2566 = vmatpush1.msra.mxu0 %v2425
    %2567 = vmatprep.subr.mxu0 %v2428
    %2568 = vmatpush1.msra.mxu0 %v2427
    %2569 = vmatprep.subr.mxu0 %v2430
    %2570 = vmatpush1.msra.mxu0 %v2429
    %2571 = vmatprep.subr.mxu0 %v2432
    %2572 = vmatpush1.msra.mxu0 %v2431
    %2573 = vmatprep.subr.mxu0 %v2434
    %2574 = vmatpush1.msra.mxu0 %v2433
    %2575 = vmatprep.subr.mxu0 %v2436
    %2576 = vmatpush1.msra.mxu0 %v2435
    %2577 = vmatprep.subr.mxu0 %v2438
    %2578 = vmatpush1.msra.mxu0 %v2437
    %2579 = vmatprep.subr.mxu0 %v2440
    %2580 = vmatpush1.msra.mxu0 %v2439
    %2581 = vmatprep.subr.mxu0 %v2442
    %2582 = vmatpush1.msra.mxu0 %v2441
    %2583 = vmatprep.subr.mxu0 %v2444
    %2584 = vmatpush1.msra.mxu0 %v2443
    %2585 = vmatprep.subr.mxu0 %v2446
    %2586 = vmatpush1.msra.mxu0 %v2445
    %2587 = vmatprep.mubr.f32.mxu0 %v2380
    %2588 = vmatmul.mubr.f32.gmra.mrb[0].mxu0 %v2379
    %v2589 = vpop.f32.mrb[0].mxu0
    %v2590 = vadd.f32 %v2516, %v2589
    %v2591 = vpop.f32.mrb[0].mxu0
    %v2592 = vadd.f32 %v2520, %v2591
    %2593 = vdwg.mxu0
    %2594 = vmatprep.subr.mxu0 %v2448
    %2595 = vmatpush1.msra.mxu0 %v2447
    %2596 = vmatprep.subr.mxu0 %v2450
    %2597 = vmatpush1.msra.mxu0 %v2449
    %2598 = vmatprep.subr.mxu0 %v2452
    %2599 = vmatpush1.msra.mxu0 %v2451
    %2600 = vmatprep.subr.mxu0 %v2454
    %2601 = vmatpush1.msra.mxu0 %v2453
    %2602 = vmatprep.subr.mxu0 %v2456
    %2603 = vmatpush1.msra.mxu0 %v2455
    %2604 = vmatprep.subr.mxu0 %v2458
    %2605 = vmatpush1.msra.mxu0 %v2457
    %2606 = vmatprep.subr.mxu0 %v2460
    %2607 = vmatpush1.msra.mxu0 %v2459
    %2608 = vmatprep.subr.mxu0 %v2462
    %2609 = vmatpush1.msra.mxu0 %v2461
    %2610 = vmatprep.subr.mxu0 %v2464
    %2611 = vmatpush1.msra.mxu0 %v2463
    %2612 = vmatprep.subr.mxu0 %v2466
    %2613 = vmatpush1.msra.mxu0 %v2465
    %2614 = vmatprep.subr.mxu0 %v2468
    %2615 = vmatpush1.msra.mxu0 %v2467
    %2616 = vmatprep.subr.mxu0 %v2470
    %2617 = vmatpush1.msra.mxu0 %v2469
    %2618 = vmatprep.subr.mxu0 %v2472
    %2619 = vmatpush1.msra.mxu0 %v2471
    %2620 = vmatprep.subr.mxu0 %v2474
    %2621 = vmatpush1.msra.mxu0 %v2473
    %2622 = vmatprep.subr.mxu0 %v2476
    %2623 = vmatpush1.msra.mxu0 %v2475
    %2624 = vmatprep.subr.mxu0 %v2478
    %2625 = vmatpush1.msra.mxu0 %v2477
    %2626 = vmatprep.subr.mxu0 %v2480
    %2627 = vmatpush1.msra.mxu0 %v2479
    %2628 = vmatprep.subr.mxu0 %v2482
    %2629 = vmatpush1.msra.mxu0 %v2481
    %2630 = vmatprep.subr.mxu0 %v2484
    %2631 = vmatpush1.msra.mxu0 %v2483
    %2632 = vmatprep.subr.mxu0 %v2486
    %2633 = vmatpush1.msra.mxu0 %v2485
    %2634 = vmatprep.subr.mxu0 %v2488
    %2635 = vmatpush1.msra.mxu0 %v2487
    %2636 = vmatprep.subr.mxu0 %v2490
    %2637 = vmatpush1.msra.mxu0 %v2489
    %2638 = vmatprep.subr.mxu0 %v2492
    %2639 = vmatpush1.msra.mxu0 %v2491
    %2640 = vmatprep.subr.mxu0 %v2494
    %2641 = vmatpush1.msra.mxu0 %v2493
    %2642 = vmatprep.subr.mxu0 %v2496
    %2643 = vmatpush1.msra.mxu0 %v2495
    %2644 = vmatprep.subr.mxu0 %v2498
    %2645 = vmatpush1.msra.mxu0 %v2497
    %2646 = vmatprep.subr.mxu0 %v2500
    %2647 = vmatpush1.msra.mxu0 %v2499
    %2648 = vmatprep.subr.mxu0 %v2502
    %2649 = vmatpush1.msra.mxu0 %v2501
    %2650 = vmatprep.subr.mxu0 %v2504
    %2651 = vmatpush1.msra.mxu0 %v2503
    %2652 = vmatprep.subr.mxu0 %v2506
    %2653 = vmatpush1.msra.mxu0 %v2505
    %2654 = vmatprep.subr.mxu0 %v2508
    %2655 = vmatpush1.msra.mxu0 %v2507
    %2656 = vmatprep.subr.mxu0 %v2510
    %2657 = vmatpush1.msra.mxu0 %v2509
    %2658 = vmatprep.mubr.f32.mxu0 %v2382
    %2659 = vmatmul.mubr.f32.gmra.mrb[0].mxu0 %v2381
    %v2660 = vpop.f32.mrb[0].mxu0
    %v2661 = vadd.f32 %v2590, %v2660
    %v2662 = vpop.f32.mrb[0].mxu0
    %v2663 = vadd.f32 %v2592, %v2662
    %2664 = vdwg.mxu0
    %v2665 = vmax.f32 %v2661, 0.0
    %v2666 = vmax.f32 %v2663, 0.0
    %v2667 = vld [vmem:[#allocation20] sm:$0xff]
    %v2668 = vld [vmem:[#allocation20 + $0x8] sm:$0xff]
    %v2669 = vld [vmem:[#allocation20 + $0x10] sm:$0xff]
    %v2670 = vld [vmem:[#allocation20 + $0x18] sm:$0xff]
    %v2671 = vld [vmem:[#allocation20 + $0x20] sm:$0xff]
    %v2672 = vld [vmem:[#allocation20 + $0x28] sm:$0xff]
    %v2673 = vld [vmem:[#allocation20 + $0x30] sm:$0xff]
    %v2674 = vld [vmem:[#allocation20 + $0x38] sm:$0xff]
    %v2675 = vld [vmem:[#allocation20 + $0x40] sm:$0xff]
    %v2676 = vld [vmem:[#allocation20 + $0x48] sm:$0xff]
    %v2677 = vld [vmem:[#allocation20 + $0x50] sm:$0xff]
    %v2678 = vld [vmem:[#allocation20 + $0x58] sm:$0xff]
    %v2679 = vld [vmem:[#allocation20 + $0x60] sm:$0xff]
    %v2680 = vld [vmem:[#allocation20 + $0x68] sm:$0xff]
    %v2681 = vld [vmem:[#allocation20 + $0x70] sm:$0xff]
    %v2682 = vld [vmem:[#allocation20 + $0x78] sm:$0xff]
    %v2683 = vld [vmem:[#allocation20 + $0x80] sm:$0xff]
    %v2684 = vld [vmem:[#allocation20 + $0x88] sm:$0xff]
    %v2685 = vld [vmem:[#allocation20 + $0x90] sm:$0xff]
    %v2686 = vld [vmem:[#allocation20 + $0x98] sm:$0xff]
    %v2687 = vld [vmem:[#allocation20 + $0xa0] sm:$0xff]
    %v2688 = vld [vmem:[#allocation20 + $0xa8] sm:$0xff]
    %v2689 = vld [vmem:[#allocation20 + $0xb0] sm:$0xff]
    %v2690 = vld [vmem:[#allocation20 + $0xb8] sm:$0xff]
    %v2691 = vld [vmem:[#allocation20 + $0xc0] sm:$0xff]
    %v2692 = vld [vmem:[#allocation20 + $0xc8] sm:$0xff]
    %v2693 = vld [vmem:[#allocation20 + $0xd0] sm:$0xff]
    %v2694 = vld [vmem:[#allocation20 + $0xd8] sm:$0xff]
    %v2695 = vld [vmem:[#allocation20 + $0xe0] sm:$0xff]
    %v2696 = vld [vmem:[#allocation20 + $0xe8] sm:$0xff]
    %v2697 = vld [vmem:[#allocation20 + $0xf0] sm:$0xff]
    %v2698 = vld [vmem:[#allocation20 + $0xf8] sm:$0xff]
    %v2699 = vld [vmem:[#allocation22] sm:$0x1]
    %v2701 = vlaneseq
    %v2702 = vshrl.u32 %v2701, 7
    %v2703 = vsub.s32 0, %v2702
    %v2704 = vrot.slane %v2699, %v2703
    %2706 = vmatprep.subr.mxu0 0.0
    %2707 = vmatpush1.msra.mxu0 %v2667
    %2708 = vmatprep.subr.mxu0 0.0
    %2709 = vmatpush1.msra.mxu0 %v2668
    %2710 = vmatprep.subr.mxu0 0.0
    %2711 = vmatpush1.msra.mxu0 %v2669
    %2712 = vmatprep.subr.mxu0 0.0
    %2713 = vmatpush1.msra.mxu0 %v2670
    %2714 = vmatprep.subr.mxu0 0.0
    %2715 = vmatpush1.msra.mxu0 %v2671
    %2716 = vmatprep.subr.mxu0 0.0
    %2717 = vmatpush1.msra.mxu0 %v2672
    %2718 = vmatprep.subr.mxu0 0.0
    %2719 = vmatpush1.msra.mxu0 %v2673
    %2720 = vmatprep.subr.mxu0 0.0
    %2721 = vmatpush1.msra.mxu0 %v2674
    %2722 = vmatprep.subr.mxu0 0.0
    %2723 = vmatpush1.msra.mxu0 %v2675
    %2724 = vmatprep.subr.mxu0 0.0
    %2725 = vmatpush1.msra.mxu0 %v2676
    %2726 = vmatprep.subr.mxu0 0.0
    %2727 = vmatpush1.msra.mxu0 %v2677
    %2728 = vmatprep.subr.mxu0 0.0
    %2729 = vmatpush1.msra.mxu0 %v2678
    %2730 = vmatprep.subr.mxu0 0.0
    %2731 = vmatpush1.msra.mxu0 %v2679
    %2732 = vmatprep.subr.mxu0 0.0
    %2733 = vmatpush1.msra.mxu0 %v2680
    %2734 = vmatprep.subr.mxu0 0.0
    %2735 = vmatpush1.msra.mxu0 %v2681
    %2736 = vmatprep.subr.mxu0 0.0
    %2737 = vmatpush1.msra.mxu0 %v2682
    %2738 = vmatprep.subr.mxu0 0.0
    %2739 = vmatpush1.msra.mxu0 %v2683
    %2740 = vmatprep.subr.mxu0 0.0
    %2741 = vmatpush1.msra.mxu0 %v2684
    %2742 = vmatprep.subr.mxu0 0.0
    %2743 = vmatpush1.msra.mxu0 %v2685
    %2744 = vmatprep.subr.mxu0 0.0
    %2745 = vmatpush1.msra.mxu0 %v2686
    %2746 = vmatprep.subr.mxu0 0.0
    %2747 = vmatpush1.msra.mxu0 %v2687
    %2748 = vmatprep.subr.mxu0 0.0
    %2749 = vmatpush1.msra.mxu0 %v2688
    %2750 = vmatprep.subr.mxu0 0.0
    %2751 = vmatpush1.msra.mxu0 %v2689
    %2752 = vmatprep.subr.mxu0 0.0
    %2753 = vmatpush1.msra.mxu0 %v2690
    %2754 = vmatprep.subr.mxu0 0.0
    %2755 = vmatpush1.msra.mxu0 %v2691
    %2756 = vmatprep.subr.mxu0 0.0
    %2757 = vmatpush1.msra.mxu0 %v2692
    %2758 = vmatprep.subr.mxu0 0.0
    %2759 = vmatpush1.msra.mxu0 %v2693
    %2760 = vmatprep.subr.mxu0 0.0
    %2761 = vmatpush1.msra.mxu0 %v2694
    %2762 = vmatprep.subr.mxu0 0.0
    %2763 = vmatpush1.msra.mxu0 %v2695
    %2764 = vmatprep.subr.mxu0 0.0
    %2765 = vmatpush1.msra.mxu0 %v2696
    %2766 = vmatprep.subr.mxu0 0.0
    %2767 = vmatpush1.msra.mxu0 %v2697
    %2768 = vmatprep.subr.mxu0 0.0
    %2769 = vmatpush1.msra.mxu0 %v2698
    %2770 = vmatprep.mubr.f32.mxu0 %v2666
    %2771 = vmatmul.mubr.f32.gmra.mrb[0].mxu0 %v2665
    %v2772 = vpop.f32.mrb[0].mxu0
    %v2773 = vadd.f32 %v2704, %v2772
    %v2774 = vpop.f32.mrb[0].mxu0
    %2775 = vdwg.mxu0
    %v2776 = vtanh.pop %v2773
    %v2777 = vld [vmem:[#allocation23] sm:$0xff]
    %v2778 = vld [vmem:[#allocation23 + $0x8] sm:$0xff]
    %v2779 = vld [vmem:[#allocation23 + $0x10] sm:$0xff]
    %v2780 = vld [vmem:[#allocation23 + $0x18] sm:$0xff]
    %v2781 = vld [vmem:[#allocation23 + $0x20] sm:$0xff]
    %v2782 = vld [vmem:[#allocation23 + $0x28] sm:$0xff]
    %v2783 = vld [vmem:[#allocation23 + $0x30] sm:$0xff]
    %v2784 = vld [vmem:[#allocation23 + $0x38] sm:$0xff]
    %v2785 = vld [vmem:[#allocation23 + $0x40] sm:$0xff]
    %v2786 = vld [vmem:[#allocation23 + $0x48] sm:$0xff]
    %v2787 = vld [vmem:[#allocation23 + $0x50] sm:$0xff]
    %v2788 = vld [vmem:[#allocation23 + $0x58] sm:$0xff]
    %v2789 = vld [vmem:[#allocation23 + $0x60] sm:$0xff]
    %v2790 = vld [vmem:[#allocation23 + $0x68] sm:$0xff]
    %v2791 = vld [vmem:[#allocation23 + $0x70] sm:$0xff]
    %v2792 = vld [vmem:[#allocation23 + $0x78] sm:$0xff]
    %v2793 = vld [vmem:[#allocation23 + $0x80] sm:$0xff]
    %v2794 = vld [vmem:[#allocation23 + $0x88] sm:$0xff]
    %v2795 = vld [vmem:[#allocation23 + $0x90] sm:$0xff]
    %v2796 = vld [vmem:[#allocation23 + $0x98] sm:$0xff]
    %v2797 = vld [vmem:[#allocation23 + $0xa0] sm:$0xff]
    %v2798 = vld [vmem:[#allocation23 + $0xa8] sm:$0xff]
    %v2799 = vld [vmem:[#allocation23 + $0xb0] sm:$0xff]
    %v2800 = vld [vmem:[#allocation23 + $0xb8] sm:$0xff]
    %v2801 = vld [vmem:[#allocation23 + $0xc0] sm:$0xff]
    %v2802 = vld [vmem:[#allocation23 + $0xc8] sm:$0xff]
    %v2803 = vld [vmem:[#allocation23 + $0xd0] sm:$0xff]
    %v2804 = vld [vmem:[#allocation23 + $0xd8] sm:$0xff]
    %v2805 = vld [vmem:[#allocation23 + $0xe0] sm:$0xff]
    %v2806 = vld [vmem:[#allocation23 + $0xe8] sm:$0xff]
    %v2807 = vld [vmem:[#allocation23 + $0xf0] sm:$0xff]
    %v2808 = vld [vmem:[#allocation23 + $0xf8] sm:$0xff]
    %v2809 = vld [vmem:[#allocation23 + $0x100] sm:$0xff]
    %v2810 = vld [vmem:[#allocation23 + $0x108] sm:$0xff]
    %v2811 = vld [vmem:[#allocation23 + $0x110] sm:$0xff]
    %v2812 = vld [vmem:[#allocation23 + $0x118] sm:$0xff]
    %v2813 = vld [vmem:[#allocation23 + $0x120] sm:$0xff]
    %v2814 = vld [vmem:[#allocation23 + $0x128] sm:$0xff]
    %v2815 = vld [vmem:[#allocation23 + $0x130] sm:$0xff]
    %v2816 = vld [vmem:[#allocation23 + $0x138] sm:$0xff]
    %v2817 = vld [vmem:[#allocation23 + $0x140] sm:$0xff]
    %v2818 = vld [vmem:[#allocation23 + $0x148] sm:$0xff]
    %v2819 = vld [vmem:[#allocation23 + $0x150] sm:$0xff]
    %v2820 = vld [vmem:[#allocation23 + $0x158] sm:$0xff]
    %v2821 = vld [vmem:[#allocation23 + $0x160] sm:$0xff]
    %v2822 = vld [vmem:[#allocation23 + $0x168] sm:$0xff]
    %v2823 = vld [vmem:[#allocation23 + $0x170] sm:$0xff]
    %v2824 = vld [vmem:[#allocation23 + $0x178] sm:$0xff]
    %v2825 = vld [vmem:[#allocation23 + $0x180] sm:$0xff]
    %v2826 = vld [vmem:[#allocation23 + $0x188] sm:$0xff]
    %v2827 = vld [vmem:[#allocation23 + $0x190] sm:$0xff]
    %v2828 = vld [vmem:[#allocation23 + $0x198] sm:$0xff]
    %v2829 = vld [vmem:[#allocation23 + $0x1a0] sm:$0xff]
    %v2830 = vld [vmem:[#allocation23 + $0x1a8] sm:$0xff]
    %v2831 = vld [vmem:[#allocation23 + $0x1b0] sm:$0xff]
    %v2832 = vld [vmem:[#allocation23 + $0x1b8] sm:$0xff]
    %v2833 = vld [vmem:[#allocation23 + $0x1c0] sm:$0xff]
    %v2834 = vld [vmem:[#allocation23 + $0x1c8] sm:$0xff]
    %v2835 = vld [vmem:[#allocation23 + $0x1d0] sm:$0xff]
    %v2836 = vld [vmem:[#allocation23 + $0x1d8] sm:$0xff]
    %v2837 = vld [vmem:[#allocation23 + $0x1e0] sm:$0xff]
    %v2838 = vld [vmem:[#allocation23 + $0x1e8] sm:$0xff]
    %v2839 = vld [vmem:[#allocation23 + $0x1f0] sm:$0xff]
    %v2840 = vld [vmem:[#allocation23 + $0x1f8] sm:$0xff]
    %v2841 = vld [vmem:[#allocation23 + $0x200] sm:$0xff]
    %v2842 = vld [vmem:[#allocation23 + $0x208] sm:$0xff]
    %v2843 = vld [vmem:[#allocation23 + $0x210] sm:$0xff]
    %v2844 = vld [vmem:[#allocation23 + $0x218] sm:$0xff]
    %v2845 = vld [vmem:[#allocation23 + $0x220] sm:$0xff]
    %v2846 = vld [vmem:[#allocation23 + $0x228] sm:$0xff]
    %v2847 = vld [vmem:[#allocation23 + $0x230] sm:$0xff]
    %v2848 = vld [vmem:[#allocation23 + $0x238] sm:$0xff]
    %v2849 = vld [vmem:[#allocation23 + $0x240] sm:$0xff]
    %v2850 = vld [vmem:[#allocation23 + $0x248] sm:$0xff]
    %v2851 = vld [vmem:[#allocation23 + $0x250] sm:$0xff]
    %v2852 = vld [vmem:[#allocation23 + $0x258] sm:$0xff]
    %v2853 = vld [vmem:[#allocation23 + $0x260] sm:$0xff]
    %v2854 = vld [vmem:[#allocation23 + $0x268] sm:$0xff]
    %v2855 = vld [vmem:[#allocation23 + $0x270] sm:$0xff]
    %v2856 = vld [vmem:[#allocation23 + $0x278] sm:$0xff]
    %v2857 = vld [vmem:[#allocation23 + $0x280] sm:$0xff]
    %v2858 = vld [vmem:[#allocation23 + $0x288] sm:$0xff]
    %v2859 = vld [vmem:[#allocation23 + $0x290] sm:$0xff]
    %v2860 = vld [vmem:[#allocation23 + $0x298] sm:$0xff]
    %v2861 = vld [vmem:[#allocation23 + $0x2a0] sm:$0xff]
    %v2862 = vld [vmem:[#allocation23 + $0x2a8] sm:$0xff]
    %v2863 = vld [vmem:[#allocation23 + $0x2b0] sm:$0xff]
    %v2864 = vld [vmem:[#allocation23 + $0x2b8] sm:$0xff]
    %v2865 = vld [vmem:[#allocation23 + $0x2c0] sm:$0xff]
    %v2866 = vld [vmem:[#allocation23 + $0x2c8] sm:$0xff]
    %v2867 = vld [vmem:[#allocation23 + $0x2d0] sm:$0xff]
    %v2868 = vld [vmem:[#allocation23 + $0x2d8] sm:$0xff]
    %v2869 = vld [vmem:[#allocation23 + $0x2e0] sm:$0xff]
    %v2870 = vld [vmem:[#allocation23 + $0x2e8] sm:$0xff]
    %v2871 = vld [vmem:[#allocation23 + $0x2f0] sm:$0xff]
    %v2872 = vld [vmem:[#allocation23 + $0x2f8] sm:$0xff]
    %v2873 = vld [vmem:[#allocation23 + $0x300] sm:$0xff]
    %v2874 = vld [vmem:[#allocation23 + $0x308] sm:$0xff]
    %v2875 = vld [vmem:[#allocation23 + $0x310] sm:$0xff]
    %v2876 = vld [vmem:[#allocation23 + $0x318] sm:$0xff]
    %v2877 = vld [vmem:[#allocation23 + $0x320] sm:$0xff]
    %v2878 = vld [vmem:[#allocation23 + $0x328] sm:$0xff]
    %v2879 = vld [vmem:[#allocation23 + $0x330] sm:$0xff]
    %v2880 = vld [vmem:[#allocation23 + $0x338] sm:$0xff]
    %v2881 = vld [vmem:[#allocation23 + $0x340] sm:$0xff]
    %v2882 = vld [vmem:[#allocation23 + $0x348] sm:$0xff]
    %v2883 = vld [vmem:[#allocation23 + $0x350] sm:$0xff]
    %v2884 = vld [vmem:[#allocation23 + $0x358] sm:$0xff]
    %v2885 = vld [vmem:[#allocation23 + $0x360] sm:$0xff]
    %v2886 = vld [vmem:[#allocation23 + $0x368] sm:$0xff]
    %v2887 = vld [vmem:[#allocation23 + $0x370] sm:$0xff]
    %v2888 = vld [vmem:[#allocation23 + $0x378] sm:$0xff]
    %v2889 = vld [vmem:[#allocation23 + $0x380] sm:$0xff]
    %v2890 = vld [vmem:[#allocation23 + $0x388] sm:$0xff]
    %v2891 = vld [vmem:[#allocation23 + $0x390] sm:$0xff]
    %v2892 = vld [vmem:[#allocation23 + $0x398] sm:$0xff]
    %v2893 = vld [vmem:[#allocation23 + $0x3a0] sm:$0xff]
    %v2894 = vld [vmem:[#allocation23 + $0x3a8] sm:$0xff]
    %v2895 = vld [vmem:[#allocation23 + $0x3b0] sm:$0xff]
    %v2896 = vld [vmem:[#allocation23 + $0x3b8] sm:$0xff]
    %v2897 = vld [vmem:[#allocation23 + $0x3c0] sm:$0xff]
    %v2898 = vld [vmem:[#allocation23 + $0x3c8] sm:$0xff]
    %v2899 = vld [vmem:[#allocation23 + $0x3d0] sm:$0xff]
    %v2900 = vld [vmem:[#allocation23 + $0x3d8] sm:$0xff]
    %v2901 = vld [vmem:[#allocation23 + $0x3e0] sm:$0xff]
    %v2902 = vld [vmem:[#allocation23 + $0x3e8] sm:$0xff]
    %v2903 = vld [vmem:[#allocation23 + $0x3f0] sm:$0xff]
    %v2904 = vld [vmem:[#allocation23 + $0x3f8] sm:$0xff]
    %v2905 = vld [vmem:[#allocation25] sm:$0xff]
    %v2907 = vlaneseq
    %v2908 = vshrl.u32 %v2907, 7
    %v2909 = vsub.s32 0, %v2908
    %v2910 = vrot.slane %v2905, %v2909
    %v2911 = vlaneseq
    %v2912 = vshrl.u32 %v2911, 7
    %v2913 = vsub.s32 1, %v2912
    %v2914 = vrot.slane %v2905, %v2913
    %v2915 = vlaneseq
    %v2916 = vshrl.u32 %v2915, 7
    %v2917 = vsub.s32 2, %v2916
    %v2918 = vrot.slane %v2905, %v2917
    %v2919 = vlaneseq
    %v2920 = vshrl.u32 %v2919, 7
    %v2921 = vsub.s32 3, %v2920
    %v2922 = vrot.slane %v2905, %v2921
    %v2923 = vlaneseq
    %v2924 = vshrl.u32 %v2923, 7
    %v2925 = vsub.s32 4, %v2924
    %v2926 = vrot.slane %v2905, %v2925
    %v2927 = vlaneseq
    %v2928 = vshrl.u32 %v2927, 7
    %v2929 = vsub.s32 5, %v2928
    %v2930 = vrot.slane %v2905, %v2929
    %v2931 = vlaneseq
    %v2932 = vshrl.u32 %v2931, 7
    %v2933 = vsub.s32 6, %v2932
    %v2934 = vrot.slane %v2905, %v2933
    %v2935 = vlaneseq
    %v2936 = vshrl.u32 %v2935, 7
    %v2937 = vsub.s32 7, %v2936
    %v2938 = vrot.slane %v2905, %v2937
    %2947 = vmatprep.subr.mxu0 %v2778
    %2948 = vmatpush1.msra.mxu0 %v2777
    %2949 = vmatprep.subr.mxu0 %v2786
    %2950 = vmatpush1.msra.mxu0 %v2785
    %2951 = vmatprep.subr.mxu0 %v2794
    %2952 = vmatpush1.msra.mxu0 %v2793
    %2953 = vmatprep.subr.mxu0 %v2802
    %2954 = vmatpush1.msra.mxu0 %v2801
    %2955 = vmatprep.subr.mxu0 %v2810
    %2956 = vmatpush1.msra.mxu0 %v2809
    %2957 = vmatprep.subr.mxu0 %v2818
    %2958 = vmatpush1.msra.mxu0 %v2817
    %2959 = vmatprep.subr.mxu0 %v2826
    %2960 = vmatpush1.msra.mxu0 %v2825
    %2961 = vmatprep.subr.mxu0 %v2834
    %2962 = vmatpush1.msra.mxu0 %v2833
    %2963 = vmatprep.subr.mxu0 %v2842
    %2964 = vmatpush1.msra.mxu0 %v2841
    %2965 = vmatprep.subr.mxu0 %v2850
    %2966 = vmatpush1.msra.mxu0 %v2849
    %2967 = vmatprep.subr.mxu0 %v2858
    %2968 = vmatpush1.msra.mxu0 %v2857
    %2969 = vmatprep.subr.mxu0 %v2866
    %2970 = vmatpush1.msra.mxu0 %v2865
    %2971 = vmatprep.subr.mxu0 %v2874
    %2972 = vmatpush1.msra.mxu0 %v2873
    %2973 = vmatprep.subr.mxu0 %v2882
    %2974 = vmatpush1.msra.mxu0 %v2881
    %2975 = vmatprep.subr.mxu0 %v2890
    %2976 = vmatpush1.msra.mxu0 %v2889
    %2977 = vmatprep.subr.mxu0 %v2898
    %2978 = vmatpush1.msra.mxu0 %v2897
    %2979 = vmatprep.subr.mxu0 0.0
    %2980 = vmatpush1.msra.mxu0 0.0
    %2981 = vmatprep.subr.mxu0 0.0
    %2982 = vmatpush1.msra.mxu0 0.0
    %2983 = vmatprep.subr.mxu0 0.0
    %2984 = vmatpush1.msra.mxu0 0.0
    %2985 = vmatprep.subr.mxu0 0.0
    %2986 = vmatpush1.msra.mxu0 0.0
    %2987 = vmatprep.subr.mxu0 0.0
    %2988 = vmatpush1.msra.mxu0 0.0
    %2989 = vmatprep.subr.mxu0 0.0
    %2990 = vmatpush1.msra.mxu0 0.0
    %2991 = vmatprep.subr.mxu0 0.0
    %2992 = vmatpush1.msra.mxu0 0.0
    %2993 = vmatprep.subr.mxu0 0.0
    %2994 = vmatpush1.msra.mxu0 0.0
    %2995 = vmatprep.subr.mxu0 0.0
    %2996 = vmatpush1.msra.mxu0 0.0
    %2997 = vmatprep.subr.mxu0 0.0
    %2998 = vmatpush1.msra.mxu0 0.0
    %2999 = vmatprep.subr.mxu0 0.0
    %3000 = vmatpush1.msra.mxu0 0.0
    %3001 = vmatprep.subr.mxu0 0.0
    %3002 = vmatpush1.msra.mxu0 0.0
    %3003 = vmatprep.subr.mxu0 0.0
    %3004 = vmatpush1.msra.mxu0 0.0
    %3005 = vmatprep.subr.mxu0 0.0
    %3006 = vmatpush1.msra.mxu0 0.0
    %3007 = vmatprep.subr.mxu0 0.0
    %3008 = vmatpush1.msra.mxu0 0.0
    %3009 = vmatprep.subr.mxu0 0.0
    %3010 = vmatpush1.msra.mxu0 0.0
    %3011 = vmatprep.mubr.f32.mxu0 0.0
    %3012 = vmatmul.mubr.f32.gmra.mrb[0].mxu0 %v983
    %v3013 = vpop.f32.mrb[0].mxu0
    %v3014 = vadd.f32 %v2910, %v3013
    %v3015 = vpop.f32.mrb[0].mxu0
    %v3016 = vadd.f32 %v2914, %v3015
    %3017 = vdwg.mxu0
    %3018 = vmatprep.subr.mxu0 %v2780
    %3019 = vmatpush1.msra.mxu0 %v2779
    %3020 = vmatprep.subr.mxu0 %v2788
    %3021 = vmatpush1.msra.mxu0 %v2787
    %3022 = vmatprep.subr.mxu0 %v2796
    %3023 = vmatpush1.msra.mxu0 %v2795
    %3024 = vmatprep.subr.mxu0 %v2804
    %3025 = vmatpush1.msra.mxu0 %v2803
    %3026 = vmatprep.subr.mxu0 %v2812
    %3027 = vmatpush1.msra.mxu0 %v2811
    %3028 = vmatprep.subr.mxu0 %v2820
    %3029 = vmatpush1.msra.mxu0 %v2819
    %3030 = vmatprep.subr.mxu0 %v2828
    %3031 = vmatpush1.msra.mxu0 %v2827
    %3032 = vmatprep.subr.mxu0 %v2836
    %3033 = vmatpush1.msra.mxu0 %v2835
    %3034 = vmatprep.subr.mxu0 %v2844
    %3035 = vmatpush1.msra.mxu0 %v2843
    %3036 = vmatprep.subr.mxu0 %v2852
    %3037 = vmatpush1.msra.mxu0 %v2851
    %3038 = vmatprep.subr.mxu0 %v2860
    %3039 = vmatpush1.msra.mxu0 %v2859
    %3040 = vmatprep.subr.mxu0 %v2868
    %3041 = vmatpush1.msra.mxu0 %v2867
    %3042 = vmatprep.subr.mxu0 %v2876
    %3043 = vmatpush1.msra.mxu0 %v2875
    %3044 = vmatprep.subr.mxu0 %v2884
    %3045 = vmatpush1.msra.mxu0 %v2883
    %3046 = vmatprep.subr.mxu0 %v2892
    %3047 = vmatpush1.msra.mxu0 %v2891
    %3048 = vmatprep.subr.mxu0 %v2900
    %3049 = vmatpush1.msra.mxu0 %v2899
    %3050 = vmatprep.subr.mxu0 0.0
    %3051 = vmatpush1.msra.mxu0 0.0
    %3052 = vmatprep.subr.mxu0 0.0
    %3053 = vmatpush1.msra.mxu0 0.0
    %3054 = vmatprep.subr.mxu0 0.0
    %3055 = vmatpush1.msra.mxu0 0.0
    %3056 = vmatprep.subr.mxu0 0.0
    %3057 = vmatpush1.msra.mxu0 0.0
    %3058 = vmatprep.subr.mxu0 0.0
    %3059 = vmatpush1.msra.mxu0 0.0
    %3060 = vmatprep.subr.mxu0 0.0
    %3061 = vmatpush1.msra.mxu0 0.0
    %3062 = vmatprep.subr.mxu0 0.0
    %3063 = vmatpush1.msra.mxu0 0.0
    %3064 = vmatprep.subr.mxu0 0.0
    %3065 = vmatpush1.msra.mxu0 0.0
    %3066 = vmatprep.subr.mxu0 0.0
    %3067 = vmatpush1.msra.mxu0 0.0
    %3068 = vmatprep.subr.mxu0 0.0
    %3069 = vmatpush1.msra.mxu0 0.0
    %3070 = vmatprep.subr.mxu0 0.0
    %3071 = vmatpush1.msra.mxu0 0.0
    %3072 = vmatprep.subr.mxu0 0.0
    %3073 = vmatpush1.msra.mxu0 0.0
    %3074 = vmatprep.subr.mxu0 0.0
    %3075 = vmatpush1.msra.mxu0 0.0
    %3076 = vmatprep.subr.mxu0 0.0
    %3077 = vmatpush1.msra.mxu0 0.0
    %3078 = vmatprep.subr.mxu0 0.0
    %3079 = vmatpush1.msra.mxu0 0.0
    %3080 = vmatprep.subr.mxu0 0.0
    %3081 = vmatpush1.msra.mxu0 0.0
    %3082 = vmatprep.mubr.f32.mxu0 0.0
    %3083 = vmatmul.mubr.f32.gmra.mrb[0].mxu0 %v983
    %v3084 = vpop.f32.mrb[0].mxu0
    %v3085 = vadd.f32 %v2918, %v3084
    %v3086 = vpop.f32.mrb[0].mxu0
    %v3087 = vadd.f32 %v2922, %v3086
    %3088 = vdwg.mxu0
    %3089 = vmatprep.subr.mxu0 %v2782
    %3090 = vmatpush1.msra.mxu0 %v2781
    %3091 = vmatprep.subr.mxu0 %v2790
    %3092 = vmatpush1.msra.mxu0 %v2789
    %3093 = vmatprep.subr.mxu0 %v2798
    %3094 = vmatpush1.msra.mxu0 %v2797
    %3095 = vmatprep.subr.mxu0 %v2806
    %3096 = vmatpush1.msra.mxu0 %v2805
    %3097 = vmatprep.subr.mxu0 %v2814
    %3098 = vmatpush1.msra.mxu0 %v2813
    %3099 = vmatprep.subr.mxu0 %v2822
    %3100 = vmatpush1.msra.mxu0 %v2821
    %3101 = vmatprep.subr.mxu0 %v2830
    %3102 = vmatpush1.msra.mxu0 %v2829
    %3103 = vmatprep.subr.mxu0 %v2838
    %3104 = vmatpush1.msra.mxu0 %v2837
    %3105 = vmatprep.subr.mxu0 %v2846
    %3106 = vmatpush1.msra.mxu0 %v2845
    %3107 = vmatprep.subr.mxu0 %v2854
    %3108 = vmatpush1.msra.mxu0 %v2853
    %3109 = vmatprep.subr.mxu0 %v2862
    %3110 = vmatpush1.msra.mxu0 %v2861
    %3111 = vmatprep.subr.mxu0 %v2870
    %3112 = vmatpush1.msra.mxu0 %v2869
    %3113 = vmatprep.subr.mxu0 %v2878
    %3114 = vmatpush1.msra.mxu0 %v2877
    %3115 = vmatprep.subr.mxu0 %v2886
    %3116 = vmatpush1.msra.mxu0 %v2885
    %3117 = vmatprep.subr.mxu0 %v2894
    %3118 = vmatpush1.msra.mxu0 %v2893
    %3119 = vmatprep.subr.mxu0 %v2902
    %3120 = vmatpush1.msra.mxu0 %v2901
    %3121 = vmatprep.subr.mxu0 0.0
    %3122 = vmatpush1.msra.mxu0 0.0
    %3123 = vmatprep.subr.mxu0 0.0
    %3124 = vmatpush1.msra.mxu0 0.0
    %3125 = vmatprep.subr.mxu0 0.0
    %3126 = vmatpush1.msra.mxu0 0.0
    %3127 = vmatprep.subr.mxu0 0.0
    %3128 = vmatpush1.msra.mxu0 0.0
    %3129 = vmatprep.subr.mxu0 0.0
    %3130 = vmatpush1.msra.mxu0 0.0
    %3131 = vmatprep.subr.mxu0 0.0
    %3132 = vmatpush1.msra.mxu0 0.0
    %3133 = vmatprep.subr.mxu0 0.0
    %3134 = vmatpush1.msra.mxu0 0.0
    %3135 = vmatprep.subr.mxu0 0.0
    %3136 = vmatpush1.msra.mxu0 0.0
    %3137 = vmatprep.subr.mxu0 0.0
    %3138 = vmatpush1.msra.mxu0 0.0
    %3139 = vmatprep.subr.mxu0 0.0
    %3140 = vmatpush1.msra.mxu0 0.0
    %3141 = vmatprep.subr.mxu0 0.0
    %3142 = vmatpush1.msra.mxu0 0.0
    %3143 = vmatprep.subr.mxu0 0.0
    %3144 = vmatpush1.msra.mxu0 0.0
    %3145 = vmatprep.subr.mxu0 0.0
    %3146 = vmatpush1.msra.mxu0 0.0
    %3147 = vmatprep.subr.mxu0 0.0
    %3148 = vmatpush1.msra.mxu0 0.0
    %3149 = vmatprep.subr.mxu0 0.0
    %3150 = vmatpush1.msra.mxu0 0.0
    %3151 = vmatprep.subr.mxu0 0.0
    %3152 = vmatpush1.msra.mxu0 0.0
    %3153 = vmatprep.mubr.f32.mxu0 0.0
    %3154 = vmatmul.mubr.f32.gmra.mrb[0].mxu0 %v983
    %v3155 = vpop.f32.mrb[0].mxu0
    %v3156 = vadd.f32 %v2926, %v3155
    %v3157 = vpop.f32.mrb[0].mxu0
    %v3158 = vadd.f32 %v2930, %v3157
    %3159 = vdwg.mxu0
    %3160 = vmatprep.subr.mxu0 %v2784
    %3161 = vmatpush1.msra.mxu0 %v2783
    %3162 = vmatprep.subr.mxu0 %v2792
    %3163 = vmatpush1.msra.mxu0 %v2791
    %3164 = vmatprep.subr.mxu0 %v2800
    %3165 = vmatpush1.msra.mxu0 %v2799
    %3166 = vmatprep.subr.mxu0 %v2808
    %3167 = vmatpush1.msra.mxu0 %v2807
    %3168 = vmatprep.subr.mxu0 %v2816
    %3169 = vmatpush1.msra.mxu0 %v2815
    %3170 = vmatprep.subr.mxu0 %v2824
    %3171 = vmatpush1.msra.mxu0 %v2823
    %3172 = vmatprep.subr.mxu0 %v2832
    %3173 = vmatpush1.msra.mxu0 %v2831
    %3174 = vmatprep.subr.mxu0 %v2840
    %3175 = vmatpush1.msra.mxu0 %v2839
    %3176 = vmatprep.subr.mxu0 %v2848
    %3177 = vmatpush1.msra.mxu0 %v2847
    %3178 = vmatprep.subr.mxu0 %v2856
    %3179 = vmatpush1.msra.mxu0 %v2855
    %3180 = vmatprep.subr.mxu0 %v2864
    %3181 = vmatpush1.msra.mxu0 %v2863
    %3182 = vmatprep.subr.mxu0 %v2872
    %3183 = vmatpush1.msra.mxu0 %v2871
    %3184 = vmatprep.subr.mxu0 %v2880
    %3185 = vmatpush1.msra.mxu0 %v2879
    %3186 = vmatprep.subr.mxu0 %v2888
    %3187 = vmatpush1.msra.mxu0 %v2887
    %3188 = vmatprep.subr.mxu0 %v2896
    %3189 = vmatpush1.msra.mxu0 %v2895
    %3190 = vmatprep.subr.mxu0 %v2904
    %3191 = vmatpush1.msra.mxu0 %v2903
    %3192 = vmatprep.subr.mxu0 0.0
    %3193 = vmatpush1.msra.mxu0 0.0
    %3194 = vmatprep.subr.mxu0 0.0
    %3195 = vmatpush1.msra.mxu0 0.0
    %3196 = vmatprep.subr.mxu0 0.0
    %3197 = vmatpush1.msra.mxu0 0.0
    %3198 = vmatprep.subr.mxu0 0.0
    %3199 = vmatpush1.msra.mxu0 0.0
    %3200 = vmatprep.subr.mxu0 0.0
    %3201 = vmatpush1.msra.mxu0 0.0
    %3202 = vmatprep.subr.mxu0 0.0
    %3203 = vmatpush1.msra.mxu0 0.0
    %3204 = vmatprep.subr.mxu0 0.0
    %3205 = vmatpush1.msra.mxu0 0.0
    %3206 = vmatprep.subr.mxu0 0.0
    %3207 = vmatpush1.msra.mxu0 0.0
    %3208 = vmatprep.subr.mxu0 0.0
    %3209 = vmatpush1.msra.mxu0 0.0
    %3210 = vmatprep.subr.mxu0 0.0
    %3211 = vmatpush1.msra.mxu0 0.0
    %3212 = vmatprep.subr.mxu0 0.0
    %3213 = vmatpush1.msra.mxu0 0.0
    %3214 = vmatprep.subr.mxu0 0.0
    %3215 = vmatpush1.msra.mxu0 0.0
    %3216 = vmatprep.subr.mxu0 0.0
    %3217 = vmatpush1.msra.mxu0 0.0
    %3218 = vmatprep.subr.mxu0 0.0
    %3219 = vmatpush1.msra.mxu0 0.0
    %3220 = vmatprep.subr.mxu0 0.0
    %3221 = vmatpush1.msra.mxu0 0.0
    %3222 = vmatprep.subr.mxu0 0.0
    %3223 = vmatpush1.msra.mxu0 0.0
    %3224 = vmatprep.mubr.f32.mxu0 0.0
    %3225 = vmatmul.mubr.f32.gmra.mrb[0].mxu0 %v983
    %v3226 = vpop.f32.mrb[0].mxu0
    %v3227 = vadd.f32 %v2934, %v3226
    %v3228 = vpop.f32.mrb[0].mxu0
    %v3229 = vadd.f32 %v2938, %v3228
    %3230 = vdwg.mxu0
    %v3231 = vmax.f32 %v3014, 0.0
    %v3232 = vmax.f32 %v3016, 0.0
    %v3233 = vmax.f32 %v3085, 0.0
    %v3234 = vmax.f32 %v3087, 0.0
    %v3235 = vmax.f32 %v3156, 0.0
    %v3236 = vmax.f32 %v3158, 0.0
    %v3237 = vmax.f32 %v3227, 0.0
    %v3238 = vmax.f32 %v3229, 0.0
    %v3239 = vld [vmem:[#allocation26] sm:$0xff]
    %v3240 = vld [vmem:[#allocation26 + $0x8] sm:$0xff]
    %v3241 = vld [vmem:[#allocation26 + $0x10] sm:$0xff]
    %v3242 = vld [vmem:[#allocation26 + $0x18] sm:$0xff]
    %v3243 = vld [vmem:[#allocation26 + $0x20] sm:$0xff]
    %v3244 = vld [vmem:[#allocation26 + $0x28] sm:$0xff]
    %v3245 = vld [vmem:[#allocation26 + $0x30] sm:$0xff]
    %v3246 = vld [vmem:[#allocation26 + $0x38] sm:$0xff]
    %v3247 = vld [vmem:[#allocation26 + $0x40] sm:$0xff]
    %v3248 = vld [vmem:[#allocation26 + $0x48] sm:$0xff]
    %v3249 = vld [vmem:[#allocation26 + $0x50] sm:$0xff]
    %v3250 = vld [vmem:[#allocation26 + $0x58] sm:$0xff]
    %v3251 = vld [vmem:[#allocation26 + $0x60] sm:$0xff]
    %v3252 = vld [vmem:[#allocation26 + $0x68] sm:$0xff]
    %v3253 = vld [vmem:[#allocation26 + $0x70] sm:$0xff]
    %v3254 = vld [vmem:[#allocation26 + $0x78] sm:$0xff]
    %v3255 = vld [vmem:[#allocation26 + $0x80] sm:$0xff]
    %v3256 = vld [vmem:[#allocation26 + $0x88] sm:$0xff]
    %v3257 = vld [vmem:[#allocation26 + $0x90] sm:$0xff]
    %v3258 = vld [vmem:[#allocation26 + $0x98] sm:$0xff]
    %v3259 = vld [vmem:[#allocation26 + $0xa0] sm:$0xff]
    %v3260 = vld [vmem:[#allocation26 + $0xa8] sm:$0xff]
    %v3261 = vld [vmem:[#allocation26 + $0xb0] sm:$0xff]
    %v3262 = vld [vmem:[#allocation26 + $0xb8] sm:$0xff]
    %v3263 = vld [vmem:[#allocation26 + $0xc0] sm:$0xff]
    %v3264 = vld [vmem:[#allocation26 + $0xc8] sm:$0xff]
    %v3265 = vld [vmem:[#allocation26 + $0xd0] sm:$0xff]
    %v3266 = vld [vmem:[#allocation26 + $0xd8] sm:$0xff]
    %v3267 = vld [vmem:[#allocation26 + $0xe0] sm:$0xff]
    %v3268 = vld [vmem:[#allocation26 + $0xe8] sm:$0xff]
    %v3269 = vld [vmem:[#allocation26 + $0xf0] sm:$0xff]
    %v3270 = vld [vmem:[#allocation26 + $0xf8] sm:$0xff]
    %v3271 = vld [vmem:[#allocation26 + $0x100] sm:$0xff]
    %v3272 = vld [vmem:[#allocation26 + $0x108] sm:$0xff]
    %v3273 = vld [vmem:[#allocation26 + $0x110] sm:$0xff]
    %v3274 = vld [vmem:[#allocation26 + $0x118] sm:$0xff]
    %v3275 = vld [vmem:[#allocation26 + $0x120] sm:$0xff]
    %v3276 = vld [vmem:[#allocation26 + $0x128] sm:$0xff]
    %v3277 = vld [vmem:[#allocation26 + $0x130] sm:$0xff]
    %v3278 = vld [vmem:[#allocation26 + $0x138] sm:$0xff]
    %v3279 = vld [vmem:[#allocation26 + $0x140] sm:$0xff]
    %v3280 = vld [vmem:[#allocation26 + $0x148] sm:$0xff]
    %v3281 = vld [vmem:[#allocation26 + $0x150] sm:$0xff]
    %v3282 = vld [vmem:[#allocation26 + $0x158] sm:$0xff]
    %v3283 = vld [vmem:[#allocation26 + $0x160] sm:$0xff]
    %v3284 = vld [vmem:[#allocation26 + $0x168] sm:$0xff]
    %v3285 = vld [vmem:[#allocation26 + $0x170] sm:$0xff]
    %v3286 = vld [vmem:[#allocation26 + $0x178] sm:$0xff]
    %v3287 = vld [vmem:[#allocation26 + $0x180] sm:$0xff]
    %v3288 = vld [vmem:[#allocation26 + $0x188] sm:$0xff]
    %v3289 = vld [vmem:[#allocation26 + $0x190] sm:$0xff]
    %v3290 = vld [vmem:[#allocation26 + $0x198] sm:$0xff]
    %v3291 = vld [vmem:[#allocation26 + $0x1a0] sm:$0xff]
    %v3292 = vld [vmem:[#allocation26 + $0x1a8] sm:$0xff]
    %v3293 = vld [vmem:[#allocation26 + $0x1b0] sm:$0xff]
    %v3294 = vld [vmem:[#allocation26 + $0x1b8] sm:$0xff]
    %v3295 = vld [vmem:[#allocation26 + $0x1c0] sm:$0xff]
    %v3296 = vld [vmem:[#allocation26 + $0x1c8] sm:$0xff]
    %v3297 = vld [vmem:[#allocation26 + $0x1d0] sm:$0xff]
    %v3298 = vld [vmem:[#allocation26 + $0x1d8] sm:$0xff]
    %v3299 = vld [vmem:[#allocation26 + $0x1e0] sm:$0xff]
    %v3300 = vld [vmem:[#allocation26 + $0x1e8] sm:$0xff]
    %v3301 = vld [vmem:[#allocation26 + $0x1f0] sm:$0xff]
    %v3302 = vld [vmem:[#allocation26 + $0x1f8] sm:$0xff]
    %v3303 = vld [vmem:[#allocation26 + $0x200] sm:$0xff]
    %v3304 = vld [vmem:[#allocation26 + $0x208] sm:$0xff]
    %v3305 = vld [vmem:[#allocation26 + $0x210] sm:$0xff]
    %v3306 = vld [vmem:[#allocation26 + $0x218] sm:$0xff]
    %v3307 = vld [vmem:[#allocation26 + $0x220] sm:$0xff]
    %v3308 = vld [vmem:[#allocation26 + $0x228] sm:$0xff]
    %v3309 = vld [vmem:[#allocation26 + $0x230] sm:$0xff]
    %v3310 = vld [vmem:[#allocation26 + $0x238] sm:$0xff]
    %v3311 = vld [vmem:[#allocation26 + $0x240] sm:$0xff]
    %v3312 = vld [vmem:[#allocation26 + $0x248] sm:$0xff]
    %v3313 = vld [vmem:[#allocation26 + $0x250] sm:$0xff]
    %v3314 = vld [vmem:[#allocation26 + $0x258] sm:$0xff]
    %v3315 = vld [vmem:[#allocation26 + $0x260] sm:$0xff]
    %v3316 = vld [vmem:[#allocation26 + $0x268] sm:$0xff]
    %v3317 = vld [vmem:[#allocation26 + $0x270] sm:$0xff]
    %v3318 = vld [vmem:[#allocation26 + $0x278] sm:$0xff]
    %v3319 = vld [vmem:[#allocation26 + $0x280] sm:$0xff]
    %v3320 = vld [vmem:[#allocation26 + $0x288] sm:$0xff]
    %v3321 = vld [vmem:[#allocation26 + $0x290] sm:$0xff]
    %v3322 = vld [vmem:[#allocation26 + $0x298] sm:$0xff]
    %v3323 = vld [vmem:[#allocation26 + $0x2a0] sm:$0xff]
    %v3324 = vld [vmem:[#allocation26 + $0x2a8] sm:$0xff]
    %v3325 = vld [vmem:[#allocation26 + $0x2b0] sm:$0xff]
    %v3326 = vld [vmem:[#allocation26 + $0x2b8] sm:$0xff]
    %v3327 = vld [vmem:[#allocation26 + $0x2c0] sm:$0xff]
    %v3328 = vld [vmem:[#allocation26 + $0x2c8] sm:$0xff]
    %v3329 = vld [vmem:[#allocation26 + $0x2d0] sm:$0xff]
    %v3330 = vld [vmem:[#allocation26 + $0x2d8] sm:$0xff]
    %v3331 = vld [vmem:[#allocation26 + $0x2e0] sm:$0xff]
    %v3332 = vld [vmem:[#allocation26 + $0x2e8] sm:$0xff]
    %v3333 = vld [vmem:[#allocation26 + $0x2f0] sm:$0xff]
    %v3334 = vld [vmem:[#allocation26 + $0x2f8] sm:$0xff]
    %v3335 = vld [vmem:[#allocation26 + $0x300] sm:$0xff]
    %v3336 = vld [vmem:[#allocation26 + $0x308] sm:$0xff]
    %v3337 = vld [vmem:[#allocation26 + $0x310] sm:$0xff]
    %v3338 = vld [vmem:[#allocation26 + $0x318] sm:$0xff]
    %v3339 = vld [vmem:[#allocation26 + $0x320] sm:$0xff]
    %v3340 = vld [vmem:[#allocation26 + $0x328] sm:$0xff]
    %v3341 = vld [vmem:[#allocation26 + $0x330] sm:$0xff]
    %v3342 = vld [vmem:[#allocation26 + $0x338] sm:$0xff]
    %v3343 = vld [vmem:[#allocation26 + $0x340] sm:$0xff]
    %v3344 = vld [vmem:[#allocation26 + $0x348] sm:$0xff]
    %v3345 = vld [vmem:[#allocation26 + $0x350] sm:$0xff]
    %v3346 = vld [vmem:[#allocation26 + $0x358] sm:$0xff]
    %v3347 = vld [vmem:[#allocation26 + $0x360] sm:$0xff]
    %v3348 = vld [vmem:[#allocation26 + $0x368] sm:$0xff]
    %v3349 = vld [vmem:[#allocation26 + $0x370] sm:$0xff]
    %v3350 = vld [vmem:[#allocation26 + $0x378] sm:$0xff]
    %v3351 = vld [vmem:[#allocation26 + $0x380] sm:$0xff]
    %v3352 = vld [vmem:[#allocation26 + $0x388] sm:$0xff]
    %v3353 = vld [vmem:[#allocation26 + $0x390] sm:$0xff]
    %v3354 = vld [vmem:[#allocation26 + $0x398] sm:$0xff]
    %v3355 = vld [vmem:[#allocation26 + $0x3a0] sm:$0xff]
    %v3356 = vld [vmem:[#allocation26 + $0x3a8] sm:$0xff]
    %v3357 = vld [vmem:[#allocation26 + $0x3b0] sm:$0xff]
    %v3358 = vld [vmem:[#allocation26 + $0x3b8] sm:$0xff]
    %v3359 = vld [vmem:[#allocation26 + $0x3c0] sm:$0xff]
    %v3360 = vld [vmem:[#allocation26 + $0x3c8] sm:$0xff]
    %v3361 = vld [vmem:[#allocation26 + $0x3d0] sm:$0xff]
    %v3362 = vld [vmem:[#allocation26 + $0x3d8] sm:$0xff]
    %v3363 = vld [vmem:[#allocation26 + $0x3e0] sm:$0xff]
    %v3364 = vld [vmem:[#allocation26 + $0x3e8] sm:$0xff]
    %v3365 = vld [vmem:[#allocation26 + $0x3f0] sm:$0xff]
    %v3366 = vld [vmem:[#allocation26 + $0x3f8] sm:$0xff]
    %v3367 = vld [vmem:[#allocation26 + $0x400] sm:$0xff]
    %v3368 = vld [vmem:[#allocation26 + $0x408] sm:$0xff]
    %v3369 = vld [vmem:[#allocation26 + $0x410] sm:$0xff]
    %v3370 = vld [vmem:[#allocation26 + $0x418] sm:$0xff]
    %v3371 = vld [vmem:[#allocation26 + $0x420] sm:$0xff]
    %v3372 = vld [vmem:[#allocation26 + $0x428] sm:$0xff]
    %v3373 = vld [vmem:[#allocation26 + $0x430] sm:$0xff]
    %v3374 = vld [vmem:[#allocation26 + $0x438] sm:$0xff]
    %v3375 = vld [vmem:[#allocation26 + $0x440] sm:$0xff]
    %v3376 = vld [vmem:[#allocation26 + $0x448] sm:$0xff]
    %v3377 = vld [vmem:[#allocation26 + $0x450] sm:$0xff]
    %v3378 = vld [vmem:[#allocation26 + $0x458] sm:$0xff]
    %v3379 = vld [vmem:[#allocation26 + $0x460] sm:$0xff]
    %v3380 = vld [vmem:[#allocation26 + $0x468] sm:$0xff]
    %v3381 = vld [vmem:[#allocation26 + $0x470] sm:$0xff]
    %v3382 = vld [vmem:[#allocation26 + $0x478] sm:$0xff]
    %v3383 = vld [vmem:[#allocation26 + $0x480] sm:$0xff]
    %v3384 = vld [vmem:[#allocation26 + $0x488] sm:$0xff]
    %v3385 = vld [vmem:[#allocation26 + $0x490] sm:$0xff]
    %v3386 = vld [vmem:[#allocation26 + $0x498] sm:$0xff]
    %v3387 = vld [vmem:[#allocation26 + $0x4a0] sm:$0xff]
    %v3388 = vld [vmem:[#allocation26 + $0x4a8] sm:$0xff]
    %v3389 = vld [vmem:[#allocation26 + $0x4b0] sm:$0xff]
    %v3390 = vld [vmem:[#allocation26 + $0x4b8] sm:$0xff]
    %v3391 = vld [vmem:[#allocation26 + $0x4c0] sm:$0xff]
    %v3392 = vld [vmem:[#allocation26 + $0x4c8] sm:$0xff]
    %v3393 = vld [vmem:[#allocation26 + $0x4d0] sm:$0xff]
    %v3394 = vld [vmem:[#allocation26 + $0x4d8] sm:$0xff]
    %v3395 = vld [vmem:[#allocation26 + $0x4e0] sm:$0xff]
    %v3396 = vld [vmem:[#allocation26 + $0x4e8] sm:$0xff]
    %v3397 = vld [vmem:[#allocation26 + $0x4f0] sm:$0xff]
    %v3398 = vld [vmem:[#allocation26 + $0x4f8] sm:$0xff]
    %v3399 = vld [vmem:[#allocation26 + $0x500] sm:$0xff]
    %v3400 = vld [vmem:[#allocation26 + $0x508] sm:$0xff]
    %v3401 = vld [vmem:[#allocation26 + $0x510] sm:$0xff]
    %v3402 = vld [vmem:[#allocation26 + $0x518] sm:$0xff]
    %v3403 = vld [vmem:[#allocation26 + $0x520] sm:$0xff]
    %v3404 = vld [vmem:[#allocation26 + $0x528] sm:$0xff]
    %v3405 = vld [vmem:[#allocation26 + $0x530] sm:$0xff]
    %v3406 = vld [vmem:[#allocation26 + $0x538] sm:$0xff]
    %v3407 = vld [vmem:[#allocation26 + $0x540] sm:$0xff]
    %v3408 = vld [vmem:[#allocation26 + $0x548] sm:$0xff]
    %v3409 = vld [vmem:[#allocation26 + $0x550] sm:$0xff]
    %v3410 = vld [vmem:[#allocation26 + $0x558] sm:$0xff]
    %v3411 = vld [vmem:[#allocation26 + $0x560] sm:$0xff]
    %v3412 = vld [vmem:[#allocation26 + $0x568] sm:$0xff]
    %v3413 = vld [vmem:[#allocation26 + $0x570] sm:$0xff]
    %v3414 = vld [vmem:[#allocation26 + $0x578] sm:$0xff]
    %v3415 = vld [vmem:[#allocation26 + $0x580] sm:$0xff]
    %v3416 = vld [vmem:[#allocation26 + $0x588] sm:$0xff]
    %v3417 = vld [vmem:[#allocation26 + $0x590] sm:$0xff]
    %v3418 = vld [vmem:[#allocation26 + $0x598] sm:$0xff]
    %v3419 = vld [vmem:[#allocation26 + $0x5a0] sm:$0xff]
    %v3420 = vld [vmem:[#allocation26 + $0x5a8] sm:$0xff]
    %v3421 = vld [vmem:[#allocation26 + $0x5b0] sm:$0xff]
    %v3422 = vld [vmem:[#allocation26 + $0x5b8] sm:$0xff]
    %v3423 = vld [vmem:[#allocation26 + $0x5c0] sm:$0xff]
    %v3424 = vld [vmem:[#allocation26 + $0x5c8] sm:$0xff]
    %v3425 = vld [vmem:[#allocation26 + $0x5d0] sm:$0xff]
    %v3426 = vld [vmem:[#allocation26 + $0x5d8] sm:$0xff]
    %v3427 = vld [vmem:[#allocation26 + $0x5e0] sm:$0xff]
    %v3428 = vld [vmem:[#allocation26 + $0x5e8] sm:$0xff]
    %v3429 = vld [vmem:[#allocation26 + $0x5f0] sm:$0xff]
    %v3430 = vld [vmem:[#allocation26 + $0x5f8] sm:$0xff]
    %v3431 = vld [vmem:[#allocation26 + $0x600] sm:$0xff]
    %v3432 = vld [vmem:[#allocation26 + $0x608] sm:$0xff]
    %v3433 = vld [vmem:[#allocation26 + $0x610] sm:$0xff]
    %v3434 = vld [vmem:[#allocation26 + $0x618] sm:$0xff]
    %v3435 = vld [vmem:[#allocation26 + $0x620] sm:$0xff]
    %v3436 = vld [vmem:[#allocation26 + $0x628] sm:$0xff]
    %v3437 = vld [vmem:[#allocation26 + $0x630] sm:$0xff]
    %v3438 = vld [vmem:[#allocation26 + $0x638] sm:$0xff]
    %v3439 = vld [vmem:[#allocation26 + $0x640] sm:$0xff]
    %v3440 = vld [vmem:[#allocation26 + $0x648] sm:$0xff]
    %v3441 = vld [vmem:[#allocation26 + $0x650] sm:$0xff]
    %v3442 = vld [vmem:[#allocation26 + $0x658] sm:$0xff]
    %v3443 = vld [vmem:[#allocation26 + $0x660] sm:$0xff]
    %v3444 = vld [vmem:[#allocation26 + $0x668] sm:$0xff]
    %v3445 = vld [vmem:[#allocation26 + $0x670] sm:$0xff]
    %v3446 = vld [vmem:[#allocation26 + $0x678] sm:$0xff]
    %v3447 = vld [vmem:[#allocation26 + $0x680] sm:$0xff]
    %v3448 = vld [vmem:[#allocation26 + $0x688] sm:$0xff]
    %v3449 = vld [vmem:[#allocation26 + $0x690] sm:$0xff]
    %v3450 = vld [vmem:[#allocation26 + $0x698] sm:$0xff]
    %v3451 = vld [vmem:[#allocation26 + $0x6a0] sm:$0xff]
    %v3452 = vld [vmem:[#allocation26 + $0x6a8] sm:$0xff]
    %v3453 = vld [vmem:[#allocation26 + $0x6b0] sm:$0xff]
    %v3454 = vld [vmem:[#allocation26 + $0x6b8] sm:$0xff]
    %v3455 = vld [vmem:[#allocation26 + $0x6c0] sm:$0xff]
    %v3456 = vld [vmem:[#allocation26 + $0x6c8] sm:$0xff]
    %v3457 = vld [vmem:[#allocation26 + $0x6d0] sm:$0xff]
    %v3458 = vld [vmem:[#allocation26 + $0x6d8] sm:$0xff]
    %v3459 = vld [vmem:[#allocation26 + $0x6e0] sm:$0xff]
    %v3460 = vld [vmem:[#allocation26 + $0x6e8] sm:$0xff]
    %v3461 = vld [vmem:[#allocation26 + $0x6f0] sm:$0xff]
    %v3462 = vld [vmem:[#allocation26 + $0x6f8] sm:$0xff]
    %v3463 = vld [vmem:[#allocation26 + $0x700] sm:$0xff]
    %v3464 = vld [vmem:[#allocation26 + $0x708] sm:$0xff]
    %v3465 = vld [vmem:[#allocation26 + $0x710] sm:$0xff]
    %v3466 = vld [vmem:[#allocation26 + $0x718] sm:$0xff]
    %v3467 = vld [vmem:[#allocation26 + $0x720] sm:$0xff]
    %v3468 = vld [vmem:[#allocation26 + $0x728] sm:$0xff]
    %v3469 = vld [vmem:[#allocation26 + $0x730] sm:$0xff]
    %v3470 = vld [vmem:[#allocation26 + $0x738] sm:$0xff]
    %v3471 = vld [vmem:[#allocation26 + $0x740] sm:$0xff]
    %v3472 = vld [vmem:[#allocation26 + $0x748] sm:$0xff]
    %v3473 = vld [vmem:[#allocation26 + $0x750] sm:$0xff]
    %v3474 = vld [vmem:[#allocation26 + $0x758] sm:$0xff]
    %v3475 = vld [vmem:[#allocation26 + $0x760] sm:$0xff]
    %v3476 = vld [vmem:[#allocation26 + $0x768] sm:$0xff]
    %v3477 = vld [vmem:[#allocation26 + $0x770] sm:$0xff]
    %v3478 = vld [vmem:[#allocation26 + $0x778] sm:$0xff]
    %v3479 = vld [vmem:[#allocation26 + $0x780] sm:$0xff]
    %v3480 = vld [vmem:[#allocation26 + $0x788] sm:$0xff]
    %v3481 = vld [vmem:[#allocation26 + $0x790] sm:$0xff]
    %v3482 = vld [vmem:[#allocation26 + $0x798] sm:$0xff]
    %v3483 = vld [vmem:[#allocation26 + $0x7a0] sm:$0xff]
    %v3484 = vld [vmem:[#allocation26 + $0x7a8] sm:$0xff]
    %v3485 = vld [vmem:[#allocation26 + $0x7b0] sm:$0xff]
    %v3486 = vld [vmem:[#allocation26 + $0x7b8] sm:$0xff]
    %v3487 = vld [vmem:[#allocation26 + $0x7c0] sm:$0xff]
    %v3488 = vld [vmem:[#allocation26 + $0x7c8] sm:$0xff]
    %v3489 = vld [vmem:[#allocation26 + $0x7d0] sm:$0xff]
    %v3490 = vld [vmem:[#allocation26 + $0x7d8] sm:$0xff]
    %v3491 = vld [vmem:[#allocation26 + $0x7e0] sm:$0xff]
    %v3492 = vld [vmem:[#allocation26 + $0x7e8] sm:$0xff]
    %v3493 = vld [vmem:[#allocation26 + $0x7f0] sm:$0xff]
    %v3494 = vld [vmem:[#allocation26 + $0x7f8] sm:$0xff]
    %v3495 = vld [vmem:[#allocation26 + $0x800] sm:$0xff]
    %v3496 = vld [vmem:[#allocation26 + $0x808] sm:$0xff]
    %v3497 = vld [vmem:[#allocation26 + $0x810] sm:$0xff]
    %v3498 = vld [vmem:[#allocation26 + $0x818] sm:$0xff]
    %v3499 = vld [vmem:[#allocation26 + $0x820] sm:$0xff]
    %v3500 = vld [vmem:[#allocation26 + $0x828] sm:$0xff]
    %v3501 = vld [vmem:[#allocation26 + $0x830] sm:$0xff]
    %v3502 = vld [vmem:[#allocation26 + $0x838] sm:$0xff]
    %v3503 = vld [vmem:[#allocation26 + $0x840] sm:$0xff]
    %v3504 = vld [vmem:[#allocation26 + $0x848] sm:$0xff]
    %v3505 = vld [vmem:[#allocation26 + $0x850] sm:$0xff]
    %v3506 = vld [vmem:[#allocation26 + $0x858] sm:$0xff]
    %v3507 = vld [vmem:[#allocation26 + $0x860] sm:$0xff]
    %v3508 = vld [vmem:[#allocation26 + $0x868] sm:$0xff]
    %v3509 = vld [vmem:[#allocation26 + $0x870] sm:$0xff]
    %v3510 = vld [vmem:[#allocation26 + $0x878] sm:$0xff]
    %v3511 = vld [vmem:[#allocation26 + $0x880] sm:$0xff]
    %v3512 = vld [vmem:[#allocation26 + $0x888] sm:$0xff]
    %v3513 = vld [vmem:[#allocation26 + $0x890] sm:$0xff]
    %v3514 = vld [vmem:[#allocation26 + $0x898] sm:$0xff]
    %v3515 = vld [vmem:[#allocation26 + $0x8a0] sm:$0xff]
    %v3516 = vld [vmem:[#allocation26 + $0x8a8] sm:$0xff]
    %v3517 = vld [vmem:[#allocation26 + $0x8b0] sm:$0xff]
    %v3518 = vld [vmem:[#allocation26 + $0x8b8] sm:$0xff]
    %v3519 = vld [vmem:[#allocation26 + $0x8c0] sm:$0xff]
    %v3520 = vld [vmem:[#allocation26 + $0x8c8] sm:$0xff]
    %v3521 = vld [vmem:[#allocation26 + $0x8d0] sm:$0xff]
    %v3522 = vld [vmem:[#allocation26 + $0x8d8] sm:$0xff]
    %v3523 = vld [vmem:[#allocation26 + $0x8e0] sm:$0xff]
    %v3524 = vld [vmem:[#allocation26 + $0x8e8] sm:$0xff]
    %v3525 = vld [vmem:[#allocation26 + $0x8f0] sm:$0xff]
    %v3526 = vld [vmem:[#allocation26 + $0x8f8] sm:$0xff]
    %v3527 = vld [vmem:[#allocation26 + $0x900] sm:$0xff]
    %v3528 = vld [vmem:[#allocation26 + $0x908] sm:$0xff]
    %v3529 = vld [vmem:[#allocation26 + $0x910] sm:$0xff]
    %v3530 = vld [vmem:[#allocation26 + $0x918] sm:$0xff]
    %v3531 = vld [vmem:[#allocation26 + $0x920] sm:$0xff]
    %v3532 = vld [vmem:[#allocation26 + $0x928] sm:$0xff]
    %v3533 = vld [vmem:[#allocation26 + $0x930] sm:$0xff]
    %v3534 = vld [vmem:[#allocation26 + $0x938] sm:$0xff]
    %v3535 = vld [vmem:[#allocation26 + $0x940] sm:$0xff]
    %v3536 = vld [vmem:[#allocation26 + $0x948] sm:$0xff]
    %v3537 = vld [vmem:[#allocation26 + $0x950] sm:$0xff]
    %v3538 = vld [vmem:[#allocation26 + $0x958] sm:$0xff]
    %v3539 = vld [vmem:[#allocation26 + $0x960] sm:$0xff]
    %v3540 = vld [vmem:[#allocation26 + $0x968] sm:$0xff]
    %v3541 = vld [vmem:[#allocation26 + $0x970] sm:$0xff]
    %v3542 = vld [vmem:[#allocation26 + $0x978] sm:$0xff]
    %v3543 = vld [vmem:[#allocation26 + $0x980] sm:$0xff]
    %v3544 = vld [vmem:[#allocation26 + $0x988] sm:$0xff]
    %v3545 = vld [vmem:[#allocation26 + $0x990] sm:$0xff]
    %v3546 = vld [vmem:[#allocation26 + $0x998] sm:$0xff]
    %v3547 = vld [vmem:[#allocation26 + $0x9a0] sm:$0xff]
    %v3548 = vld [vmem:[#allocation26 + $0x9a8] sm:$0xff]
    %v3549 = vld [vmem:[#allocation26 + $0x9b0] sm:$0xff]
    %v3550 = vld [vmem:[#allocation26 + $0x9b8] sm:$0xff]
    %v3551 = vld [vmem:[#allocation26 + $0x9c0] sm:$0xff]
    %v3552 = vld [vmem:[#allocation26 + $0x9c8] sm:$0xff]
    %v3553 = vld [vmem:[#allocation26 + $0x9d0] sm:$0xff]
    %v3554 = vld [vmem:[#allocation26 + $0x9d8] sm:$0xff]
    %v3555 = vld [vmem:[#allocation26 + $0x9e0] sm:$0xff]
    %v3556 = vld [vmem:[#allocation26 + $0x9e8] sm:$0xff]
    %v3557 = vld [vmem:[#allocation26 + $0x9f0] sm:$0xff]
    %v3558 = vld [vmem:[#allocation26 + $0x9f8] sm:$0xff]
    %v3559 = vld [vmem:[#allocation26 + $0xa00] sm:$0xff]
    %v3560 = vld [vmem:[#allocation26 + $0xa08] sm:$0xff]
    %v3561 = vld [vmem:[#allocation26 + $0xa10] sm:$0xff]
    %v3562 = vld [vmem:[#allocation26 + $0xa18] sm:$0xff]
    %v3563 = vld [vmem:[#allocation26 + $0xa20] sm:$0xff]
    %v3564 = vld [vmem:[#allocation26 + $0xa28] sm:$0xff]
    %v3565 = vld [vmem:[#allocation26 + $0xa30] sm:$0xff]
    %v3566 = vld [vmem:[#allocation26 + $0xa38] sm:$0xff]
    %v3567 = vld [vmem:[#allocation26 + $0xa40] sm:$0xff]
    %v3568 = vld [vmem:[#allocation26 + $0xa48] sm:$0xff]
    %v3569 = vld [vmem:[#allocation26 + $0xa50] sm:$0xff]
    %v3570 = vld [vmem:[#allocation26 + $0xa58] sm:$0xff]
    %v3571 = vld [vmem:[#allocation26 + $0xa60] sm:$0xff]
    %v3572 = vld [vmem:[#allocation26 + $0xa68] sm:$0xff]
    %v3573 = vld [vmem:[#allocation26 + $0xa70] sm:$0xff]
    %v3574 = vld [vmem:[#allocation26 + $0xa78] sm:$0xff]
    %v3575 = vld [vmem:[#allocation26 + $0xa80] sm:$0xff]
    %v3576 = vld [vmem:[#allocation26 + $0xa88] sm:$0xff]
    %v3577 = vld [vmem:[#allocation26 + $0xa90] sm:$0xff]
    %v3578 = vld [vmem:[#allocation26 + $0xa98] sm:$0xff]
    %v3579 = vld [vmem:[#allocation26 + $0xaa0] sm:$0xff]
    %v3580 = vld [vmem:[#allocation26 + $0xaa8] sm:$0xff]
    %v3581 = vld [vmem:[#allocation26 + $0xab0] sm:$0xff]
    %v3582 = vld [vmem:[#allocation26 + $0xab8] sm:$0xff]
    %v3583 = vld [vmem:[#allocation26 + $0xac0] sm:$0xff]
    %v3584 = vld [vmem:[#allocation26 + $0xac8] sm:$0xff]
    %v3585 = vld [vmem:[#allocation26 + $0xad0] sm:$0xff]
    %v3586 = vld [vmem:[#allocation26 + $0xad8] sm:$0xff]
    %v3587 = vld [vmem:[#allocation26 + $0xae0] sm:$0xff]
    %v3588 = vld [vmem:[#allocation26 + $0xae8] sm:$0xff]
    %v3589 = vld [vmem:[#allocation26 + $0xaf0] sm:$0xff]
    %v3590 = vld [vmem:[#allocation26 + $0xaf8] sm:$0xff]
    %v3591 = vld [vmem:[#allocation26 + $0xb00] sm:$0xff]
    %v3592 = vld [vmem:[#allocation26 + $0xb08] sm:$0xff]
    %v3593 = vld [vmem:[#allocation26 + $0xb10] sm:$0xff]
    %v3594 = vld [vmem:[#allocation26 + $0xb18] sm:$0xff]
    %v3595 = vld [vmem:[#allocation26 + $0xb20] sm:$0xff]
    %v3596 = vld [vmem:[#allocation26 + $0xb28] sm:$0xff]
    %v3597 = vld [vmem:[#allocation26 + $0xb30] sm:$0xff]
    %v3598 = vld [vmem:[#allocation26 + $0xb38] sm:$0xff]
    %v3599 = vld [vmem:[#allocation26 + $0xb40] sm:$0xff]
    %v3600 = vld [vmem:[#allocation26 + $0xb48] sm:$0xff]
    %v3601 = vld [vmem:[#allocation26 + $0xb50] sm:$0xff]
    %v3602 = vld [vmem:[#allocation26 + $0xb58] sm:$0xff]
    %v3603 = vld [vmem:[#allocation26 + $0xb60] sm:$0xff]
    %v3604 = vld [vmem:[#allocation26 + $0xb68] sm:$0xff]
    %v3605 = vld [vmem:[#allocation26 + $0xb70] sm:$0xff]
    %v3606 = vld [vmem:[#allocation26 + $0xb78] sm:$0xff]
    %v3607 = vld [vmem:[#allocation26 + $0xb80] sm:$0xff]
    %v3608 = vld [vmem:[#allocation26 + $0xb88] sm:$0xff]
    %v3609 = vld [vmem:[#allocation26 + $0xb90] sm:$0xff]
    %v3610 = vld [vmem:[#allocation26 + $0xb98] sm:$0xff]
    %v3611 = vld [vmem:[#allocation26 + $0xba0] sm:$0xff]
    %v3612 = vld [vmem:[#allocation26 + $0xba8] sm:$0xff]
    %v3613 = vld [vmem:[#allocation26 + $0xbb0] sm:$0xff]
    %v3614 = vld [vmem:[#allocation26 + $0xbb8] sm:$0xff]
    %v3615 = vld [vmem:[#allocation26 + $0xbc0] sm:$0xff]
    %v3616 = vld [vmem:[#allocation26 + $0xbc8] sm:$0xff]
    %v3617 = vld [vmem:[#allocation26 + $0xbd0] sm:$0xff]
    %v3618 = vld [vmem:[#allocation26 + $0xbd8] sm:$0xff]
    %v3619 = vld [vmem:[#allocation26 + $0xbe0] sm:$0xff]
    %v3620 = vld [vmem:[#allocation26 + $0xbe8] sm:$0xff]
    %v3621 = vld [vmem:[#allocation26 + $0xbf0] sm:$0xff]
    %v3622 = vld [vmem:[#allocation26 + $0xbf8] sm:$0xff]
    %v3623 = vld [vmem:[#allocation26 + $0xc00] sm:$0xff]
    %v3624 = vld [vmem:[#allocation26 + $0xc08] sm:$0xff]
    %v3625 = vld [vmem:[#allocation26 + $0xc10] sm:$0xff]
    %v3626 = vld [vmem:[#allocation26 + $0xc18] sm:$0xff]
    %v3627 = vld [vmem:[#allocation26 + $0xc20] sm:$0xff]
    %v3628 = vld [vmem:[#allocation26 + $0xc28] sm:$0xff]
    %v3629 = vld [vmem:[#allocation26 + $0xc30] sm:$0xff]
    %v3630 = vld [vmem:[#allocation26 + $0xc38] sm:$0xff]
    %v3631 = vld [vmem:[#allocation26 + $0xc40] sm:$0xff]
    %v3632 = vld [vmem:[#allocation26 + $0xc48] sm:$0xff]
    %v3633 = vld [vmem:[#allocation26 + $0xc50] sm:$0xff]
    %v3634 = vld [vmem:[#allocation26 + $0xc58] sm:$0xff]
    %v3635 = vld [vmem:[#allocation26 + $0xc60] sm:$0xff]
    %v3636 = vld [vmem:[#allocation26 + $0xc68] sm:$0xff]
    %v3637 = vld [vmem:[#allocation26 + $0xc70] sm:$0xff]
    %v3638 = vld [vmem:[#allocation26 + $0xc78] sm:$0xff]
    %v3639 = vld [vmem:[#allocation26 + $0xc80] sm:$0xff]
    %v3640 = vld [vmem:[#allocation26 + $0xc88] sm:$0xff]
    %v3641 = vld [vmem:[#allocation26 + $0xc90] sm:$0xff]
    %v3642 = vld [vmem:[#allocation26 + $0xc98] sm:$0xff]
    %v3643 = vld [vmem:[#allocation26 + $0xca0] sm:$0xff]
    %v3644 = vld [vmem:[#allocation26 + $0xca8] sm:$0xff]
    %v3645 = vld [vmem:[#allocation26 + $0xcb0] sm:$0xff]
    %v3646 = vld [vmem:[#allocation26 + $0xcb8] sm:$0xff]
    %v3647 = vld [vmem:[#allocation26 + $0xcc0] sm:$0xff]
    %v3648 = vld [vmem:[#allocation26 + $0xcc8] sm:$0xff]
    %v3649 = vld [vmem:[#allocation26 + $0xcd0] sm:$0xff]
    %v3650 = vld [vmem:[#allocation26 + $0xcd8] sm:$0xff]
    %v3651 = vld [vmem:[#allocation26 + $0xce0] sm:$0xff]
    %v3652 = vld [vmem:[#allocation26 + $0xce8] sm:$0xff]
    %v3653 = vld [vmem:[#allocation26 + $0xcf0] sm:$0xff]
    %v3654 = vld [vmem:[#allocation26 + $0xcf8] sm:$0xff]
    %v3655 = vld [vmem:[#allocation26 + $0xd00] sm:$0xff]
    %v3656 = vld [vmem:[#allocation26 + $0xd08] sm:$0xff]
    %v3657 = vld [vmem:[#allocation26 + $0xd10] sm:$0xff]
    %v3658 = vld [vmem:[#allocation26 + $0xd18] sm:$0xff]
    %v3659 = vld [vmem:[#allocation26 + $0xd20] sm:$0xff]
    %v3660 = vld [vmem:[#allocation26 + $0xd28] sm:$0xff]
    %v3661 = vld [vmem:[#allocation26 + $0xd30] sm:$0xff]
    %v3662 = vld [vmem:[#allocation26 + $0xd38] sm:$0xff]
    %v3663 = vld [vmem:[#allocation26 + $0xd40] sm:$0xff]
    %v3664 = vld [vmem:[#allocation26 + $0xd48] sm:$0xff]
    %v3665 = vld [vmem:[#allocation26 + $0xd50] sm:$0xff]
    %v3666 = vld [vmem:[#allocation26 + $0xd58] sm:$0xff]
    %v3667 = vld [vmem:[#allocation26 + $0xd60] sm:$0xff]
    %v3668 = vld [vmem:[#allocation26 + $0xd68] sm:$0xff]
    %v3669 = vld [vmem:[#allocation26 + $0xd70] sm:$0xff]
    %v3670 = vld [vmem:[#allocation26 + $0xd78] sm:$0xff]
    %v3671 = vld [vmem:[#allocation26 + $0xd80] sm:$0xff]
    %v3672 = vld [vmem:[#allocation26 + $0xd88] sm:$0xff]
    %v3673 = vld [vmem:[#allocation26 + $0xd90] sm:$0xff]
    %v3674 = vld [vmem:[#allocation26 + $0xd98] sm:$0xff]
    %v3675 = vld [vmem:[#allocation26 + $0xda0] sm:$0xff]
    %v3676 = vld [vmem:[#allocation26 + $0xda8] sm:$0xff]
    %v3677 = vld [vmem:[#allocation26 + $0xdb0] sm:$0xff]
    %v3678 = vld [vmem:[#allocation26 + $0xdb8] sm:$0xff]
    %v3679 = vld [vmem:[#allocation26 + $0xdc0] sm:$0xff]
    %v3680 = vld [vmem:[#allocation26 + $0xdc8] sm:$0xff]
    %v3681 = vld [vmem:[#allocation26 + $0xdd0] sm:$0xff]
    %v3682 = vld [vmem:[#allocation26 + $0xdd8] sm:$0xff]
    %v3683 = vld [vmem:[#allocation26 + $0xde0] sm:$0xff]
    %v3684 = vld [vmem:[#allocation26 + $0xde8] sm:$0xff]
    %v3685 = vld [vmem:[#allocation26 + $0xdf0] sm:$0xff]
    %v3686 = vld [vmem:[#allocation26 + $0xdf8] sm:$0xff]
    %v3687 = vld [vmem:[#allocation26 + $0xe00] sm:$0xff]
    %v3688 = vld [vmem:[#allocation26 + $0xe08] sm:$0xff]
    %v3689 = vld [vmem:[#allocation26 + $0xe10] sm:$0xff]
    %v3690 = vld [vmem:[#allocation26 + $0xe18] sm:$0xff]
    %v3691 = vld [vmem:[#allocation26 + $0xe20] sm:$0xff]
    %v3692 = vld [vmem:[#allocation26 + $0xe28] sm:$0xff]
    %v3693 = vld [vmem:[#allocation26 + $0xe30] sm:$0xff]
    %v3694 = vld [vmem:[#allocation26 + $0xe38] sm:$0xff]
    %v3695 = vld [vmem:[#allocation26 + $0xe40] sm:$0xff]
    %v3696 = vld [vmem:[#allocation26 + $0xe48] sm:$0xff]
    %v3697 = vld [vmem:[#allocation26 + $0xe50] sm:$0xff]
    %v3698 = vld [vmem:[#allocation26 + $0xe58] sm:$0xff]
    %v3699 = vld [vmem:[#allocation26 + $0xe60] sm:$0xff]
    %v3700 = vld [vmem:[#allocation26 + $0xe68] sm:$0xff]
    %v3701 = vld [vmem:[#allocation26 + $0xe70] sm:$0xff]
    %v3702 = vld [vmem:[#allocation26 + $0xe78] sm:$0xff]
    %v3703 = vld [vmem:[#allocation26 + $0xe80] sm:$0xff]
    %v3704 = vld [vmem:[#allocation26 + $0xe88] sm:$0xff]
    %v3705 = vld [vmem:[#allocation26 + $0xe90] sm:$0xff]
    %v3706 = vld [vmem:[#allocation26 + $0xe98] sm:$0xff]
    %v3707 = vld [vmem:[#allocation26 + $0xea0] sm:$0xff]
    %v3708 = vld [vmem:[#allocation26 + $0xea8] sm:$0xff]
    %v3709 = vld [vmem:[#allocation26 + $0xeb0] sm:$0xff]
    %v3710 = vld [vmem:[#allocation26 + $0xeb8] sm:$0xff]
    %v3711 = vld [vmem:[#allocation26 + $0xec0] sm:$0xff]
    %v3712 = vld [vmem:[#allocation26 + $0xec8] sm:$0xff]
    %v3713 = vld [vmem:[#allocation26 + $0xed0] sm:$0xff]
    %v3714 = vld [vmem:[#allocation26 + $0xed8] sm:$0xff]
    %v3715 = vld [vmem:[#allocation26 + $0xee0] sm:$0xff]
    %v3716 = vld [vmem:[#allocation26 + $0xee8] sm:$0xff]
    %v3717 = vld [vmem:[#allocation26 + $0xef0] sm:$0xff]
    %v3718 = vld [vmem:[#allocation26 + $0xef8] sm:$0xff]
    %v3719 = vld [vmem:[#allocation26 + $0xf00] sm:$0xff]
    %v3720 = vld [vmem:[#allocation26 + $0xf08] sm:$0xff]
    %v3721 = vld [vmem:[#allocation26 + $0xf10] sm:$0xff]
    %v3722 = vld [vmem:[#allocation26 + $0xf18] sm:$0xff]
    %v3723 = vld [vmem:[#allocation26 + $0xf20] sm:$0xff]
    %v3724 = vld [vmem:[#allocation26 + $0xf28] sm:$0xff]
    %v3725 = vld [vmem:[#allocation26 + $0xf30] sm:$0xff]
    %v3726 = vld [vmem:[#allocation26 + $0xf38] sm:$0xff]
    %v3727 = vld [vmem:[#allocation26 + $0xf40] sm:$0xff]
    %v3728 = vld [vmem:[#allocation26 + $0xf48] sm:$0xff]
    %v3729 = vld [vmem:[#allocation26 + $0xf50] sm:$0xff]
    %v3730 = vld [vmem:[#allocation26 + $0xf58] sm:$0xff]
    %v3731 = vld [vmem:[#allocation26 + $0xf60] sm:$0xff]
    %v3732 = vld [vmem:[#allocation26 + $0xf68] sm:$0xff]
    %v3733 = vld [vmem:[#allocation26 + $0xf70] sm:$0xff]
    %v3734 = vld [vmem:[#allocation26 + $0xf78] sm:$0xff]
    %v3735 = vld [vmem:[#allocation26 + $0xf80] sm:$0xff]
    %v3736 = vld [vmem:[#allocation26 + $0xf88] sm:$0xff]
    %v3737 = vld [vmem:[#allocation26 + $0xf90] sm:$0xff]
    %v3738 = vld [vmem:[#allocation26 + $0xf98] sm:$0xff]
    %v3739 = vld [vmem:[#allocation26 + $0xfa0] sm:$0xff]
    %v3740 = vld [vmem:[#allocation26 + $0xfa8] sm:$0xff]
    %v3741 = vld [vmem:[#allocation26 + $0xfb0] sm:$0xff]
    %v3742 = vld [vmem:[#allocation26 + $0xfb8] sm:$0xff]
    %v3743 = vld [vmem:[#allocation26 + $0xfc0] sm:$0xff]
    %v3744 = vld [vmem:[#allocation26 + $0xfc8] sm:$0xff]
    %v3745 = vld [vmem:[#allocation26 + $0xfd0] sm:$0xff]
    %v3746 = vld [vmem:[#allocation26 + $0xfd8] sm:$0xff]
    %v3747 = vld [vmem:[#allocation26 + $0xfe0] sm:$0xff]
    %v3748 = vld [vmem:[#allocation26 + $0xfe8] sm:$0xff]
    %v3749 = vld [vmem:[#allocation26 + $0xff0] sm:$0xff]
    %v3750 = vld [vmem:[#allocation26 + $0xff8] sm:$0xff]
    %v3751 = vld [vmem:[#allocation28] sm:$0xf]
    %v3753 = vlaneseq
    %v3754 = vshrl.u32 %v3753, 7
    %v3755 = vsub.s32 0, %v3754
    %v3756 = vrot.slane %v3751, %v3755
    %v3757 = vlaneseq
    %v3758 = vshrl.u32 %v3757, 7
    %v3759 = vsub.s32 1, %v3758
    %v3760 = vrot.slane %v3751, %v3759
    %v3761 = vlaneseq
    %v3762 = vshrl.u32 %v3761, 7
    %v3763 = vsub.s32 2, %v3762
    %v3764 = vrot.slane %v3751, %v3763
    %v3765 = vlaneseq
    %v3766 = vshrl.u32 %v3765, 7
    %v3767 = vsub.s32 3, %v3766
    %v3768 = vrot.slane %v3751, %v3767
    %3773 = vmatprep.subr.mxu0 %v3240
    %3774 = vmatpush1.msra.mxu0 %v3239
    %3775 = vmatprep.subr.mxu0 %v3244
    %3776 = vmatpush1.msra.mxu0 %v3243
    %3777 = vmatprep.subr.mxu0 %v3248
    %3778 = vmatpush1.msra.mxu0 %v3247
    %3779 = vmatprep.subr.mxu0 %v3252
    %3780 = vmatpush1.msra.mxu0 %v3251
    %3781 = vmatprep.subr.mxu0 %v3256
    %3782 = vmatpush1.msra.mxu0 %v3255
    %3783 = vmatprep.subr.mxu0 %v3260
    %3784 = vmatpush1.msra.mxu0 %v3259
    %3785 = vmatprep.subr.mxu0 %v3264
    %3786 = vmatpush1.msra.mxu0 %v3263
    %3787 = vmatprep.subr.mxu0 %v3268
    %3788 = vmatpush1.msra.mxu0 %v3267
    %3789 = vmatprep.subr.mxu0 %v3272
    %3790 = vmatpush1.msra.mxu0 %v3271
    %3791 = vmatprep.subr.mxu0 %v3276
    %3792 = vmatpush1.msra.mxu0 %v3275
    %3793 = vmatprep.subr.mxu0 %v3280
    %3794 = vmatpush1.msra.mxu0 %v3279
    %3795 = vmatprep.subr.mxu0 %v3284
    %3796 = vmatpush1.msra.mxu0 %v3283
    %3797 = vmatprep.subr.mxu0 %v3288
    %3798 = vmatpush1.msra.mxu0 %v3287
    %3799 = vmatprep.subr.mxu0 %v3292
    %3800 = vmatpush1.msra.mxu0 %v3291
    %3801 = vmatprep.subr.mxu0 %v3296
    %3802 = vmatpush1.msra.mxu0 %v3295
    %3803 = vmatprep.subr.mxu0 %v3300
    %3804 = vmatpush1.msra.mxu0 %v3299
    %3805 = vmatprep.subr.mxu0 %v3304
    %3806 = vmatpush1.msra.mxu0 %v3303
    %3807 = vmatprep.subr.mxu0 %v3308
    %3808 = vmatpush1.msra.mxu0 %v3307
    %3809 = vmatprep.subr.mxu0 %v3312
    %3810 = vmatpush1.msra.mxu0 %v3311
    %3811 = vmatprep.subr.mxu0 %v3316
    %3812 = vmatpush1.msra.mxu0 %v3315
    %3813 = vmatprep.subr.mxu0 %v3320
    %3814 = vmatpush1.msra.mxu0 %v3319
    %3815 = vmatprep.subr.mxu0 %v3324
    %3816 = vmatpush1.msra.mxu0 %v3323
    %3817 = vmatprep.subr.mxu0 %v3328
    %3818 = vmatpush1.msra.mxu0 %v3327
    %3819 = vmatprep.subr.mxu0 %v3332
    %3820 = vmatpush1.msra.mxu0 %v3331
    %3821 = vmatprep.subr.mxu0 %v3336
    %3822 = vmatpush1.msra.mxu0 %v3335
    %3823 = vmatprep.subr.mxu0 %v3340
    %3824 = vmatpush1.msra.mxu0 %v3339
    %3825 = vmatprep.subr.mxu0 %v3344
    %3826 = vmatpush1.msra.mxu0 %v3343
    %3827 = vmatprep.subr.mxu0 %v3348
    %3828 = vmatpush1.msra.mxu0 %v3347
    %3829 = vmatprep.subr.mxu0 %v3352
    %3830 = vmatpush1.msra.mxu0 %v3351
    %3831 = vmatprep.subr.mxu0 %v3356
    %3832 = vmatpush1.msra.mxu0 %v3355
    %3833 = vmatprep.subr.mxu0 %v3360
    %3834 = vmatpush1.msra.mxu0 %v3359
    %3835 = vmatprep.subr.mxu0 %v3364
    %3836 = vmatpush1.msra.mxu0 %v3363
    %3837 = vmatprep.mubr.f32.mxu0 %v3232
    %3838 = vmatmul.mubr.f32.gmra.mrb[0].mxu0 %v3231
    %v3839 = vpop.f32.mrb[0].mxu0
    %v3840 = vadd.f32 %v3756, %v3839
    %v3841 = vpop.f32.mrb[0].mxu0
    %v3842 = vadd.f32 %v3760, %v3841
    %3843 = vdwg.mxu0
    %3844 = vmatprep.subr.mxu0 %v3368
    %3845 = vmatpush1.msra.mxu0 %v3367
    %3846 = vmatprep.subr.mxu0 %v3372
    %3847 = vmatpush1.msra.mxu0 %v3371
    %3848 = vmatprep.subr.mxu0 %v3376
    %3849 = vmatpush1.msra.mxu0 %v3375
    %3850 = vmatprep.subr.mxu0 %v3380
    %3851 = vmatpush1.msra.mxu0 %v3379
    %3852 = vmatprep.subr.mxu0 %v3384
    %3853 = vmatpush1.msra.mxu0 %v3383
    %3854 = vmatprep.subr.mxu0 %v3388
    %3855 = vmatpush1.msra.mxu0 %v3387
    %3856 = vmatprep.subr.mxu0 %v3392
    %3857 = vmatpush1.msra.mxu0 %v3391
    %3858 = vmatprep.subr.mxu0 %v3396
    %3859 = vmatpush1.msra.mxu0 %v3395
    %3860 = vmatprep.subr.mxu0 %v3400
    %3861 = vmatpush1.msra.mxu0 %v3399
    %3862 = vmatprep.subr.mxu0 %v3404
    %3863 = vmatpush1.msra.mxu0 %v3403
    %3864 = vmatprep.subr.mxu0 %v3408
    %3865 = vmatpush1.msra.mxu0 %v3407
    %3866 = vmatprep.subr.mxu0 %v3412
    %3867 = vmatpush1.msra.mxu0 %v3411
    %3868 = vmatprep.subr.mxu0 %v3416
    %3869 = vmatpush1.msra.mxu0 %v3415
    %3870 = vmatprep.subr.mxu0 %v3420
    %3871 = vmatpush1.msra.mxu0 %v3419
    %3872 = vmatprep.subr.mxu0 %v3424
    %3873 = vmatpush1.msra.mxu0 %v3423
    %3874 = vmatprep.subr.mxu0 %v3428
    %3875 = vmatpush1.msra.mxu0 %v3427
    %3876 = vmatprep.subr.mxu0 %v3432
    %3877 = vmatpush1.msra.mxu0 %v3431
    %3878 = vmatprep.subr.mxu0 %v3436
    %3879 = vmatpush1.msra.mxu0 %v3435
    %3880 = vmatprep.subr.mxu0 %v3440
    %3881 = vmatpush1.msra.mxu0 %v3439
    %3882 = vmatprep.subr.mxu0 %v3444
    %3883 = vmatpush1.msra.mxu0 %v3443
    %3884 = vmatprep.subr.mxu0 %v3448
    %3885 = vmatpush1.msra.mxu0 %v3447
    %3886 = vmatprep.subr.mxu0 %v3452
    %3887 = vmatpush1.msra.mxu0 %v3451
    %3888 = vmatprep.subr.mxu0 %v3456
    %3889 = vmatpush1.msra.mxu0 %v3455
    %3890 = vmatprep.subr.mxu0 %v3460
    %3891 = vmatpush1.msra.mxu0 %v3459
    %3892 = vmatprep.subr.mxu0 %v3464
    %3893 = vmatpush1.msra.mxu0 %v3463
    %3894 = vmatprep.subr.mxu0 %v3468
    %3895 = vmatpush1.msra.mxu0 %v3467
    %3896 = vmatprep.subr.mxu0 %v3472
    %3897 = vmatpush1.msra.mxu0 %v3471
    %3898 = vmatprep.subr.mxu0 %v3476
    %3899 = vmatpush1.msra.mxu0 %v3475
    %3900 = vmatprep.subr.mxu0 %v3480
    %3901 = vmatpush1.msra.mxu0 %v3479
    %3902 = vmatprep.subr.mxu0 %v3484
    %3903 = vmatpush1.msra.mxu0 %v3483
    %3904 = vmatprep.subr.mxu0 %v3488
    %3905 = vmatpush1.msra.mxu0 %v3487
    %3906 = vmatprep.subr.mxu0 %v3492
    %3907 = vmatpush1.msra.mxu0 %v3491
    %3908 = vmatprep.mubr.f32.mxu0 %v3234
    %3909 = vmatmul.mubr.f32.gmra.mrb[0].mxu0 %v3233
    %v3910 = vpop.f32.mrb[0].mxu0
    %v3911 = vadd.f32 %v3840, %v3910
    %v3912 = vpop.f32.mrb[0].mxu0
    %v3913 = vadd.f32 %v3842, %v3912
    %3914 = vdwg.mxu0
    %3915 = vmatprep.subr.mxu0 %v3496
    %3916 = vmatpush1.msra.mxu0 %v3495
    %3917 = vmatprep.subr.mxu0 %v3500
    %3918 = vmatpush1.msra.mxu0 %v3499
    %3919 = vmatprep.subr.mxu0 %v3504
    %3920 = vmatpush1.msra.mxu0 %v3503
    %3921 = vmatprep.subr.mxu0 %v3508
    %3922 = vmatpush1.msra.mxu0 %v3507
    %3923 = vmatprep.subr.mxu0 %v3512
    %3924 = vmatpush1.msra.mxu0 %v3511
    %3925 = vmatprep.subr.mxu0 %v3516
    %3926 = vmatpush1.msra.mxu0 %v3515
    %3927 = vmatprep.subr.mxu0 %v3520
    %3928 = vmatpush1.msra.mxu0 %v3519
    %3929 = vmatprep.subr.mxu0 %v3524
    %3930 = vmatpush1.msra.mxu0 %v3523
    %3931 = vmatprep.subr.mxu0 %v3528
    %3932 = vmatpush1.msra.mxu0 %v3527
    %3933 = vmatprep.subr.mxu0 %v3532
    %3934 = vmatpush1.msra.mxu0 %v3531
    %3935 = vmatprep.subr.mxu0 %v3536
    %3936 = vmatpush1.msra.mxu0 %v3535
    %3937 = vmatprep.subr.mxu0 %v3540
    %3938 = vmatpush1.msra.mxu0 %v3539
    %3939 = vmatprep.subr.mxu0 %v3544
    %3940 = vmatpush1.msra.mxu0 %v3543
    %3941 = vmatprep.subr.mxu0 %v3548
    %3942 = vmatpush1.msra.mxu0 %v3547
    %3943 = vmatprep.subr.mxu0 %v3552
    %3944 = vmatpush1.msra.mxu0 %v3551
    %3945 = vmatprep.subr.mxu0 %v3556
    %3946 = vmatpush1.msra.mxu0 %v3555
    %3947 = vmatprep.subr.mxu0 %v3560
    %3948 = vmatpush1.msra.mxu0 %v3559
    %3949 = vmatprep.subr.mxu0 %v3564
    %3950 = vmatpush1.msra.mxu0 %v3563
    %3951 = vmatprep.subr.mxu0 %v3568
    %3952 = vmatpush1.msra.mxu0 %v3567
    %3953 = vmatprep.subr.mxu0 %v3572
    %3954 = vmatpush1.msra.mxu0 %v3571
    %3955 = vmatprep.subr.mxu0 %v3576
    %3956 = vmatpush1.msra.mxu0 %v3575
    %3957 = vmatprep.subr.mxu0 %v3580
    %3958 = vmatpush1.msra.mxu0 %v3579
    %3959 = vmatprep.subr.mxu0 %v3584
    %3960 = vmatpush1.msra.mxu0 %v3583
    %3961 = vmatprep.subr.mxu0 %v3588
    %3962 = vmatpush1.msra.mxu0 %v3587
    %3963 = vmatprep.subr.mxu0 %v3592
    %3964 = vmatpush1.msra.mxu0 %v3591
    %3965 = vmatprep.subr.mxu0 %v3596
    %3966 = vmatpush1.msra.mxu0 %v3595
    %3967 = vmatprep.subr.mxu0 %v3600
    %3968 = vmatpush1.msra.mxu0 %v3599
    %3969 = vmatprep.subr.mxu0 %v3604
    %3970 = vmatpush1.msra.mxu0 %v3603
    %3971 = vmatprep.subr.mxu0 %v3608
    %3972 = vmatpush1.msra.mxu0 %v3607
    %3973 = vmatprep.subr.mxu0 %v3612
    %3974 = vmatpush1.msra.mxu0 %v3611
    %3975 = vmatprep.subr.mxu0 %v3616
    %3976 = vmatpush1.msra.mxu0 %v3615
    %3977 = vmatprep.subr.mxu0 %v3620
    %3978 = vmatpush1.msra.mxu0 %v3619
    %3979 = vmatprep.mubr.f32.mxu0 %v3236
    %3980 = vmatmul.mubr.f32.gmra.mrb[0].mxu0 %v3235
    %v3981 = vpop.f32.mrb[0].mxu0
    %v3982 = vadd.f32 %v3911, %v3981
    %v3983 = vpop.f32.mrb[0].mxu0
    %v3984 = vadd.f32 %v3913, %v3983
    %3985 = vdwg.mxu0
    %3986 = vmatprep.subr.mxu0 %v3624
    %3987 = vmatpush1.msra.mxu0 %v3623
    %3988 = vmatprep.subr.mxu0 %v3628
    %3989 = vmatpush1.msra.mxu0 %v3627
    %3990 = vmatprep.subr.mxu0 %v3632
    %3991 = vmatpush1.msra.mxu0 %v3631
    %3992 = vmatprep.subr.mxu0 %v3636
    %3993 = vmatpush1.msra.mxu0 %v3635
    %3994 = vmatprep.subr.mxu0 %v3640
    %3995 = vmatpush1.msra.mxu0 %v3639
    %3996 = vmatprep.subr.mxu0 %v3644
    %3997 = vmatpush1.msra.mxu0 %v3643
    %3998 = vmatprep.subr.mxu0 %v3648
    %3999 = vmatpush1.msra.mxu0 %v3647
    %4000 = vmatprep.subr.mxu0 %v3652
    %4001 = vmatpush1.msra.mxu0 %v3651
    %4002 = vmatprep.subr.mxu0 %v3656
    %4003 = vmatpush1.msra.mxu0 %v3655
    %4004 = vmatprep.subr.mxu0 %v3660
    %4005 = vmatpush1.msra.mxu0 %v3659
    %4006 = vmatprep.subr.mxu0 %v3664
    %4007 = vmatpush1.msra.mxu0 %v3663
    %4008 = vmatprep.subr.mxu0 %v3668
    %4009 = vmatpush1.msra.mxu0 %v3667
    %4010 = vmatprep.subr.mxu0 %v3672
    %4011 = vmatpush1.msra.mxu0 %v3671
    %4012 = vmatprep.subr.mxu0 %v3676
    %4013 = vmatpush1.msra.mxu0 %v3675
    %4014 = vmatprep.subr.mxu0 %v3680
    %4015 = vmatpush1.msra.mxu0 %v3679
    %4016 = vmatprep.subr.mxu0 %v3684
    %4017 = vmatpush1.msra.mxu0 %v3683
    %4018 = vmatprep.subr.mxu0 %v3688
    %4019 = vmatpush1.msra.mxu0 %v3687
    %4020 = vmatprep.subr.mxu0 %v3692
    %4021 = vmatpush1.msra.mxu0 %v3691
    %4022 = vmatprep.subr.mxu0 %v3696
    %4023 = vmatpush1.msra.mxu0 %v3695
    %4024 = vmatprep.subr.mxu0 %v3700
    %4025 = vmatpush1.msra.mxu0 %v3699
    %4026 = vmatprep.subr.mxu0 %v3704
    %4027 = vmatpush1.msra.mxu0 %v3703
    %4028 = vmatprep.subr.mxu0 %v3708
    %4029 = vmatpush1.msra.mxu0 %v3707
    %4030 = vmatprep.subr.mxu0 %v3712
    %4031 = vmatpush1.msra.mxu0 %v3711
    %4032 = vmatprep.subr.mxu0 %v3716
    %4033 = vmatpush1.msra.mxu0 %v3715
    %4034 = vmatprep.subr.mxu0 %v3720
    %4035 = vmatpush1.msra.mxu0 %v3719
    %4036 = vmatprep.subr.mxu0 %v3724
    %4037 = vmatpush1.msra.mxu0 %v3723
    %4038 = vmatprep.subr.mxu0 %v3728
    %4039 = vmatpush1.msra.mxu0 %v3727
    %4040 = vmatprep.subr.mxu0 %v3732
    %4041 = vmatpush1.msra.mxu0 %v3731
    %4042 = vmatprep.subr.mxu0 %v3736
    %4043 = vmatpush1.msra.mxu0 %v3735
    %4044 = vmatprep.subr.mxu0 %v3740
    %4045 = vmatpush1.msra.mxu0 %v3739
    %4046 = vmatprep.subr.mxu0 %v3744
    %4047 = vmatpush1.msra.mxu0 %v3743
    %4048 = vmatprep.subr.mxu0 %v3748
    %4049 = vmatpush1.msra.mxu0 %v3747
    %4050 = vmatprep.mubr.f32.mxu0 %v3238
    %4051 = vmatmul.mubr.f32.gmra.mrb[0].mxu0 %v3237
    %v4052 = vpop.f32.mrb[0].mxu0
    %v4053 = vadd.f32 %v3982, %v4052
    %v4054 = vpop.f32.mrb[0].mxu0
    %v4055 = vadd.f32 %v3984, %v4054
    %4056 = vdwg.mxu0
    %4057 = vmatprep.subr.mxu0 %v3242
    %4058 = vmatpush1.msra.mxu0 %v3241
    %4059 = vmatprep.subr.mxu0 %v3246
    %4060 = vmatpush1.msra.mxu0 %v3245
    %4061 = vmatprep.subr.mxu0 %v3250
    %4062 = vmatpush1.msra.mxu0 %v3249
    %4063 = vmatprep.subr.mxu0 %v3254
    %4064 = vmatpush1.msra.mxu0 %v3253
    %4065 = vmatprep.subr.mxu0 %v3258
    %4066 = vmatpush1.msra.mxu0 %v3257
    %4067 = vmatprep.subr.mxu0 %v3262
    %4068 = vmatpush1.msra.mxu0 %v3261
    %4069 = vmatprep.subr.mxu0 %v3266
    %4070 = vmatpush1.msra.mxu0 %v3265
    %4071 = vmatprep.subr.mxu0 %v3270
    %4072 = vmatpush1.msra.mxu0 %v3269
    %4073 = vmatprep.subr.mxu0 %v3274
    %4074 = vmatpush1.msra.mxu0 %v3273
    %4075 = vmatprep.subr.mxu0 %v3278
    %4076 = vmatpush1.msra.mxu0 %v3277
    %4077 = vmatprep.subr.mxu0 %v3282
    %4078 = vmatpush1.msra.mxu0 %v3281
    %4079 = vmatprep.subr.mxu0 %v3286
    %4080 = vmatpush1.msra.mxu0 %v3285
    %4081 = vmatprep.subr.mxu0 %v3290
    %4082 = vmatpush1.msra.mxu0 %v3289
    %4083 = vmatprep.subr.mxu0 %v3294
    %4084 = vmatpush1.msra.mxu0 %v3293
    %4085 = vmatprep.subr.mxu0 %v3298
    %4086 = vmatpush1.msra.mxu0 %v3297
    %4087 = vmatprep.subr.mxu0 %v3302
    %4088 = vmatpush1.msra.mxu0 %v3301
    %4089 = vmatprep.subr.mxu0 %v3306
    %4090 = vmatpush1.msra.mxu0 %v3305
    %4091 = vmatprep.subr.mxu0 %v3310
    %4092 = vmatpush1.msra.mxu0 %v3309
    %4093 = vmatprep.subr.mxu0 %v3314
    %4094 = vmatpush1.msra.mxu0 %v3313
    %4095 = vmatprep.subr.mxu0 %v3318
    %4096 = vmatpush1.msra.mxu0 %v3317
    %4097 = vmatprep.subr.mxu0 %v3322
    %4098 = vmatpush1.msra.mxu0 %v3321
    %4099 = vmatprep.subr.mxu0 %v3326
    %4100 = vmatpush1.msra.mxu0 %v3325
    %4101 = vmatprep.subr.mxu0 %v3330
    %4102 = vmatpush1.msra.mxu0 %v3329
    %4103 = vmatprep.subr.mxu0 %v3334
    %4104 = vmatpush1.msra.mxu0 %v3333
    %4105 = vmatprep.subr.mxu0 %v3338
    %4106 = vmatpush1.msra.mxu0 %v3337
    %4107 = vmatprep.subr.mxu0 %v3342
    %4108 = vmatpush1.msra.mxu0 %v3341
    %4109 = vmatprep.subr.mxu0 %v3346
    %4110 = vmatpush1.msra.mxu0 %v3345
    %4111 = vmatprep.subr.mxu0 %v3350
    %4112 = vmatpush1.msra.mxu0 %v3349
    %4113 = vmatprep.subr.mxu0 %v3354
    %4114 = vmatpush1.msra.mxu0 %v3353
    %4115 = vmatprep.subr.mxu0 %v3358
    %4116 = vmatpush1.msra.mxu0 %v3357
    %4117 = vmatprep.subr.mxu0 %v3362
    %4118 = vmatpush1.msra.mxu0 %v3361
    %4119 = vmatprep.subr.mxu0 %v3366
    %4120 = vmatpush1.msra.mxu0 %v3365
    %4121 = vmatprep.mubr.f32.mxu0 %v3232
    %4122 = vmatmul.mubr.f32.gmra.mrb[0].mxu0 %v3231
    %v4123 = vpop.f32.mrb[0].mxu0
    %v4124 = vadd.f32 %v3764, %v4123
    %v4125 = vpop.f32.mrb[0].mxu0
    %v4126 = vadd.f32 %v3768, %v4125
    %4127 = vdwg.mxu0
    %4128 = vmatprep.subr.mxu0 %v3370
    %4129 = vmatpush1.msra.mxu0 %v3369
    %4130 = vmatprep.subr.mxu0 %v3374
    %4131 = vmatpush1.msra.mxu0 %v3373
    %4132 = vmatprep.subr.mxu0 %v3378
    %4133 = vmatpush1.msra.mxu0 %v3377
    %4134 = vmatprep.subr.mxu0 %v3382
    %4135 = vmatpush1.msra.mxu0 %v3381
    %4136 = vmatprep.subr.mxu0 %v3386
    %4137 = vmatpush1.msra.mxu0 %v3385
    %4138 = vmatprep.subr.mxu0 %v3390
    %4139 = vmatpush1.msra.mxu0 %v3389
    %4140 = vmatprep.subr.mxu0 %v3394
    %4141 = vmatpush1.msra.mxu0 %v3393
    %4142 = vmatprep.subr.mxu0 %v3398
    %4143 = vmatpush1.msra.mxu0 %v3397
    %4144 = vmatprep.subr.mxu0 %v3402
    %4145 = vmatpush1.msra.mxu0 %v3401
    %4146 = vmatprep.subr.mxu0 %v3406
    %4147 = vmatpush1.msra.mxu0 %v3405
    %4148 = vmatprep.subr.mxu0 %v3410
    %4149 = vmatpush1.msra.mxu0 %v3409
    %4150 = vmatprep.subr.mxu0 %v3414
    %4151 = vmatpush1.msra.mxu0 %v3413
    %4152 = vmatprep.subr.mxu0 %v3418
    %4153 = vmatpush1.msra.mxu0 %v3417
    %4154 = vmatprep.subr.mxu0 %v3422
    %4155 = vmatpush1.msra.mxu0 %v3421
    %4156 = vmatprep.subr.mxu0 %v3426
    %4157 = vmatpush1.msra.mxu0 %v3425
    %4158 = vmatprep.subr.mxu0 %v3430
    %4159 = vmatpush1.msra.mxu0 %v3429
    %4160 = vmatprep.subr.mxu0 %v3434
    %4161 = vmatpush1.msra.mxu0 %v3433
    %4162 = vmatprep.subr.mxu0 %v3438
    %4163 = vmatpush1.msra.mxu0 %v3437
    %4164 = vmatprep.subr.mxu0 %v3442
    %4165 = vmatpush1.msra.mxu0 %v3441
    %4166 = vmatprep.subr.mxu0 %v3446
    %4167 = vmatpush1.msra.mxu0 %v3445
    %4168 = vmatprep.subr.mxu0 %v3450
    %4169 = vmatpush1.msra.mxu0 %v3449
    %4170 = vmatprep.subr.mxu0 %v3454
    %4171 = vmatpush1.msra.mxu0 %v3453
    %4172 = vmatprep.subr.mxu0 %v3458
    %4173 = vmatpush1.msra.mxu0 %v3457
    %4174 = vmatprep.subr.mxu0 %v3462
    %4175 = vmatpush1.msra.mxu0 %v3461
    %4176 = vmatprep.subr.mxu0 %v3466
    %4177 = vmatpush1.msra.mxu0 %v3465
    %4178 = vmatprep.subr.mxu0 %v3470
    %4179 = vmatpush1.msra.mxu0 %v3469
    %4180 = vmatprep.subr.mxu0 %v3474
    %4181 = vmatpush1.msra.mxu0 %v3473
    %4182 = vmatprep.subr.mxu0 %v3478
    %4183 = vmatpush1.msra.mxu0 %v3477
    %4184 = vmatprep.subr.mxu0 %v3482
    %4185 = vmatpush1.msra.mxu0 %v3481
    %4186 = vmatprep.subr.mxu0 %v3486
    %4187 = vmatpush1.msra.mxu0 %v3485
    %4188 = vmatprep.subr.mxu0 %v3490
    %4189 = vmatpush1.msra.mxu0 %v3489
    %4190 = vmatprep.subr.mxu0 %v3494
    %4191 = vmatpush1.msra.mxu0 %v3493
    %4192 = vmatprep.mubr.f32.mxu0 %v3234
    %4193 = vmatmul.mubr.f32.gmra.mrb[0].mxu0 %v3233
    %v4194 = vpop.f32.mrb[0].mxu0
    %v4195 = vadd.f32 %v4124, %v4194
    %v4196 = vpop.f32.mrb[0].mxu0
    %v4197 = vadd.f32 %v4126, %v4196
    %4198 = vdwg.mxu0
    %4199 = vmatprep.subr.mxu0 %v3498
    %4200 = vmatpush1.msra.mxu0 %v3497
    %4201 = vmatprep.subr.mxu0 %v3502
    %4202 = vmatpush1.msra.mxu0 %v3501
    %4203 = vmatprep.subr.mxu0 %v3506
    %4204 = vmatpush1.msra.mxu0 %v3505
    %4205 = vmatprep.subr.mxu0 %v3510
    %4206 = vmatpush1.msra.mxu0 %v3509
    %4207 = vmatprep.subr.mxu0 %v3514
    %4208 = vmatpush1.msra.mxu0 %v3513
    %4209 = vmatprep.subr.mxu0 %v3518
    %4210 = vmatpush1.msra.mxu0 %v3517
    %4211 = vmatprep.subr.mxu0 %v3522
    %4212 = vmatpush1.msra.mxu0 %v3521
    %4213 = vmatprep.subr.mxu0 %v3526
    %4214 = vmatpush1.msra.mxu0 %v3525
    %4215 = vmatprep.subr.mxu0 %v3530
    %4216 = vmatpush1.msra.mxu0 %v3529
    %4217 = vmatprep.subr.mxu0 %v3534
    %4218 = vmatpush1.msra.mxu0 %v3533
    %4219 = vmatprep.subr.mxu0 %v3538
    %4220 = vmatpush1.msra.mxu0 %v3537
    %4221 = vmatprep.subr.mxu0 %v3542
    %4222 = vmatpush1.msra.mxu0 %v3541
    %4223 = vmatprep.subr.mxu0 %v3546
    %4224 = vmatpush1.msra.mxu0 %v3545
    %4225 = vmatprep.subr.mxu0 %v3550
    %4226 = vmatpush1.msra.mxu0 %v3549
    %4227 = vmatprep.subr.mxu0 %v3554
    %4228 = vmatpush1.msra.mxu0 %v3553
    %4229 = vmatprep.subr.mxu0 %v3558
    %4230 = vmatpush1.msra.mxu0 %v3557
    %4231 = vmatprep.subr.mxu0 %v3562
    %4232 = vmatpush1.msra.mxu0 %v3561
    %4233 = vmatprep.subr.mxu0 %v3566
    %4234 = vmatpush1.msra.mxu0 %v3565
    %4235 = vmatprep.subr.mxu0 %v3570
    %4236 = vmatpush1.msra.mxu0 %v3569
    %4237 = vmatprep.subr.mxu0 %v3574
    %4238 = vmatpush1.msra.mxu0 %v3573
    %4239 = vmatprep.subr.mxu0 %v3578
    %4240 = vmatpush1.msra.mxu0 %v3577
    %4241 = vmatprep.subr.mxu0 %v3582
    %4242 = vmatpush1.msra.mxu0 %v3581
    %4243 = vmatprep.subr.mxu0 %v3586
    %4244 = vmatpush1.msra.mxu0 %v3585
    %4245 = vmatprep.subr.mxu0 %v3590
    %4246 = vmatpush1.msra.mxu0 %v3589
    %4247 = vmatprep.subr.mxu0 %v3594
    %4248 = vmatpush1.msra.mxu0 %v3593
    %4249 = vmatprep.subr.mxu0 %v3598
    %4250 = vmatpush1.msra.mxu0 %v3597
    %4251 = vmatprep.subr.mxu0 %v3602
    %4252 = vmatpush1.msra.mxu0 %v3601
    %4253 = vmatprep.subr.mxu0 %v3606
    %4254 = vmatpush1.msra.mxu0 %v3605
    %4255 = vmatprep.subr.mxu0 %v3610
    %4256 = vmatpush1.msra.mxu0 %v3609
    %4257 = vmatprep.subr.mxu0 %v3614
    %4258 = vmatpush1.msra.mxu0 %v3613
    %4259 = vmatprep.subr.mxu0 %v3618
    %4260 = vmatpush1.msra.mxu0 %v3617
    %4261 = vmatprep.subr.mxu0 %v3622
    %4262 = vmatpush1.msra.mxu0 %v3621
    %4263 = vmatprep.mubr.f32.mxu0 %v3236
    %4264 = vmatmul.mubr.f32.gmra.mrb[0].mxu0 %v3235
    %v4265 = vpop.f32.mrb[0].mxu0
    %v4266 = vadd.f32 %v4195, %v4265
    %v4267 = vpop.f32.mrb[0].mxu0
    %v4268 = vadd.f32 %v4197, %v4267
    %4269 = vdwg.mxu0
    %4270 = vmatprep.subr.mxu0 %v3626
    %4271 = vmatpush1.msra.mxu0 %v3625
    %4272 = vmatprep.subr.mxu0 %v3630
    %4273 = vmatpush1.msra.mxu0 %v3629
    %4274 = vmatprep.subr.mxu0 %v3634
    %4275 = vmatpush1.msra.mxu0 %v3633
    %4276 = vmatprep.subr.mxu0 %v3638
    %4277 = vmatpush1.msra.mxu0 %v3637
    %4278 = vmatprep.subr.mxu0 %v3642
    %4279 = vmatpush1.msra.mxu0 %v3641
    %4280 = vmatprep.subr.mxu0 %v3646
    %4281 = vmatpush1.msra.mxu0 %v3645
    %4282 = vmatprep.subr.mxu0 %v3650
    %4283 = vmatpush1.msra.mxu0 %v3649
    %4284 = vmatprep.subr.mxu0 %v3654
    %4285 = vmatpush1.msra.mxu0 %v3653
    %4286 = vmatprep.subr.mxu0 %v3658
    %4287 = vmatpush1.msra.mxu0 %v3657
    %4288 = vmatprep.subr.mxu0 %v3662
    %4289 = vmatpush1.msra.mxu0 %v3661
    %4290 = vmatprep.subr.mxu0 %v3666
    %4291 = vmatpush1.msra.mxu0 %v3665
    %4292 = vmatprep.subr.mxu0 %v3670
    %4293 = vmatpush1.msra.mxu0 %v3669
    %4294 = vmatprep.subr.mxu0 %v3674
    %4295 = vmatpush1.msra.mxu0 %v3673
    %4296 = vmatprep.subr.mxu0 %v3678
    %4297 = vmatpush1.msra.mxu0 %v3677
    %4298 = vmatprep.subr.mxu0 %v3682
    %4299 = vmatpush1.msra.mxu0 %v3681
    %4300 = vmatprep.subr.mxu0 %v3686
    %4301 = vmatpush1.msra.mxu0 %v3685
    %4302 = vmatprep.subr.mxu0 %v3690
    %4303 = vmatpush1.msra.mxu0 %v3689
    %4304 = vmatprep.subr.mxu0 %v3694
    %4305 = vmatpush1.msra.mxu0 %v3693
    %4306 = vmatprep.subr.mxu0 %v3698
    %4307 = vmatpush1.msra.mxu0 %v3697
    %4308 = vmatprep.subr.mxu0 %v3702
    %4309 = vmatpush1.msra.mxu0 %v3701
    %4310 = vmatprep.subr.mxu0 %v3706
    %4311 = vmatpush1.msra.mxu0 %v3705
    %4312 = vmatprep.subr.mxu0 %v3710
    %4313 = vmatpush1.msra.mxu0 %v3709
    %4314 = vmatprep.subr.mxu0 %v3714
    %4315 = vmatpush1.msra.mxu0 %v3713
    %4316 = vmatprep.subr.mxu0 %v3718
    %4317 = vmatpush1.msra.mxu0 %v3717
    %4318 = vmatprep.subr.mxu0 %v3722
    %4319 = vmatpush1.msra.mxu0 %v3721
    %4320 = vmatprep.subr.mxu0 %v3726
    %4321 = vmatpush1.msra.mxu0 %v3725
    %4322 = vmatprep.subr.mxu0 %v3730
    %4323 = vmatpush1.msra.mxu0 %v3729
    %4324 = vmatprep.subr.mxu0 %v3734
    %4325 = vmatpush1.msra.mxu0 %v3733
    %4326 = vmatprep.subr.mxu0 %v3738
    %4327 = vmatpush1.msra.mxu0 %v3737
    %4328 = vmatprep.subr.mxu0 %v3742
    %4329 = vmatpush1.msra.mxu0 %v3741
    %4330 = vmatprep.subr.mxu0 %v3746
    %4331 = vmatpush1.msra.mxu0 %v3745
    %4332 = vmatprep.subr.mxu0 %v3750
    %4333 = vmatpush1.msra.mxu0 %v3749
    %4334 = vmatprep.mubr.f32.mxu0 %v3238
    %4335 = vmatmul.mubr.f32.gmra.mrb[0].mxu0 %v3237
    %v4336 = vpop.f32.mrb[0].mxu0
    %v4337 = vadd.f32 %v4266, %v4336
    %v4338 = vpop.f32.mrb[0].mxu0
    %v4339 = vadd.f32 %v4268, %v4338
    %4340 = vdwg.mxu0
    %v4341 = vmax.f32 %v4053, 0.0
    %v4342 = vmax.f32 %v4055, 0.0
    %v4343 = vmax.f32 %v4337, 0.0
    %v4344 = vmax.f32 %v4339, 0.0
    %v4345 = vld [vmem:[#allocation29] sm:$0xff]
    %v4346 = vld [vmem:[#allocation29 + $0x8] sm:$0xff]
    %v4347 = vld [vmem:[#allocation29 + $0x10] sm:$0xff]
    %v4348 = vld [vmem:[#allocation29 + $0x18] sm:$0xff]
    %v4349 = vld [vmem:[#allocation29 + $0x20] sm:$0xff]
    %v4350 = vld [vmem:[#allocation29 + $0x28] sm:$0xff]
    %v4351 = vld [vmem:[#allocation29 + $0x30] sm:$0xff]
    %v4352 = vld [vmem:[#allocation29 + $0x38] sm:$0xff]
    %v4353 = vld [vmem:[#allocation29 + $0x40] sm:$0xff]
    %v4354 = vld [vmem:[#allocation29 + $0x48] sm:$0xff]
    %v4355 = vld [vmem:[#allocation29 + $0x50] sm:$0xff]
    %v4356 = vld [vmem:[#allocation29 + $0x58] sm:$0xff]
    %v4357 = vld [vmem:[#allocation29 + $0x60] sm:$0xff]
    %v4358 = vld [vmem:[#allocation29 + $0x68] sm:$0xff]
    %v4359 = vld [vmem:[#allocation29 + $0x70] sm:$0xff]
    %v4360 = vld [vmem:[#allocation29 + $0x78] sm:$0xff]
    %v4361 = vld [vmem:[#allocation29 + $0x80] sm:$0xff]
    %v4362 = vld [vmem:[#allocation29 + $0x88] sm:$0xff]
    %v4363 = vld [vmem:[#allocation29 + $0x90] sm:$0xff]
    %v4364 = vld [vmem:[#allocation29 + $0x98] sm:$0xff]
    %v4365 = vld [vmem:[#allocation29 + $0xa0] sm:$0xff]
    %v4366 = vld [vmem:[#allocation29 + $0xa8] sm:$0xff]
    %v4367 = vld [vmem:[#allocation29 + $0xb0] sm:$0xff]
    %v4368 = vld [vmem:[#allocation29 + $0xb8] sm:$0xff]
    %v4369 = vld [vmem:[#allocation29 + $0xc0] sm:$0xff]
    %v4370 = vld [vmem:[#allocation29 + $0xc8] sm:$0xff]
    %v4371 = vld [vmem:[#allocation29 + $0xd0] sm:$0xff]
    %v4372 = vld [vmem:[#allocation29 + $0xd8] sm:$0xff]
    %v4373 = vld [vmem:[#allocation29 + $0xe0] sm:$0xff]
    %v4374 = vld [vmem:[#allocation29 + $0xe8] sm:$0xff]
    %v4375 = vld [vmem:[#allocation29 + $0xf0] sm:$0xff]
    %v4376 = vld [vmem:[#allocation29 + $0xf8] sm:$0xff]
    %v4377 = vld [vmem:[#allocation29 + $0x100] sm:$0xff]
    %v4378 = vld [vmem:[#allocation29 + $0x108] sm:$0xff]
    %v4379 = vld [vmem:[#allocation29 + $0x110] sm:$0xff]
    %v4380 = vld [vmem:[#allocation29 + $0x118] sm:$0xff]
    %v4381 = vld [vmem:[#allocation29 + $0x120] sm:$0xff]
    %v4382 = vld [vmem:[#allocation29 + $0x128] sm:$0xff]
    %v4383 = vld [vmem:[#allocation29 + $0x130] sm:$0xff]
    %v4384 = vld [vmem:[#allocation29 + $0x138] sm:$0xff]
    %v4385 = vld [vmem:[#allocation29 + $0x140] sm:$0xff]
    %v4386 = vld [vmem:[#allocation29 + $0x148] sm:$0xff]
    %v4387 = vld [vmem:[#allocation29 + $0x150] sm:$0xff]
    %v4388 = vld [vmem:[#allocation29 + $0x158] sm:$0xff]
    %v4389 = vld [vmem:[#allocation29 + $0x160] sm:$0xff]
    %v4390 = vld [vmem:[#allocation29 + $0x168] sm:$0xff]
    %v4391 = vld [vmem:[#allocation29 + $0x170] sm:$0xff]
    %v4392 = vld [vmem:[#allocation29 + $0x178] sm:$0xff]
    %v4393 = vld [vmem:[#allocation29 + $0x180] sm:$0xff]
    %v4394 = vld [vmem:[#allocation29 + $0x188] sm:$0xff]
    %v4395 = vld [vmem:[#allocation29 + $0x190] sm:$0xff]
    %v4396 = vld [vmem:[#allocation29 + $0x198] sm:$0xff]
    %v4397 = vld [vmem:[#allocation29 + $0x1a0] sm:$0xff]
    %v4398 = vld [vmem:[#allocation29 + $0x1a8] sm:$0xff]
    %v4399 = vld [vmem:[#allocation29 + $0x1b0] sm:$0xff]
    %v4400 = vld [vmem:[#allocation29 + $0x1b8] sm:$0xff]
    %v4401 = vld [vmem:[#allocation29 + $0x1c0] sm:$0xff]
    %v4402 = vld [vmem:[#allocation29 + $0x1c8] sm:$0xff]
    %v4403 = vld [vmem:[#allocation29 + $0x1d0] sm:$0xff]
    %v4404 = vld [vmem:[#allocation29 + $0x1d8] sm:$0xff]
    %v4405 = vld [vmem:[#allocation29 + $0x1e0] sm:$0xff]
    %v4406 = vld [vmem:[#allocation29 + $0x1e8] sm:$0xff]
    %v4407 = vld [vmem:[#allocation29 + $0x1f0] sm:$0xff]
    %v4408 = vld [vmem:[#allocation29 + $0x1f8] sm:$0xff]
    %v4409 = vld [vmem:[#allocation29 + $0x200] sm:$0xff]
    %v4410 = vld [vmem:[#allocation29 + $0x208] sm:$0xff]
    %v4411 = vld [vmem:[#allocation29 + $0x210] sm:$0xff]
    %v4412 = vld [vmem:[#allocation29 + $0x218] sm:$0xff]
    %v4413 = vld [vmem:[#allocation29 + $0x220] sm:$0xff]
    %v4414 = vld [vmem:[#allocation29 + $0x228] sm:$0xff]
    %v4415 = vld [vmem:[#allocation29 + $0x230] sm:$0xff]
    %v4416 = vld [vmem:[#allocation29 + $0x238] sm:$0xff]
    %v4417 = vld [vmem:[#allocation29 + $0x240] sm:$0xff]
    %v4418 = vld [vmem:[#allocation29 + $0x248] sm:$0xff]
    %v4419 = vld [vmem:[#allocation29 + $0x250] sm:$0xff]
    %v4420 = vld [vmem:[#allocation29 + $0x258] sm:$0xff]
    %v4421 = vld [vmem:[#allocation29 + $0x260] sm:$0xff]
    %v4422 = vld [vmem:[#allocation29 + $0x268] sm:$0xff]
    %v4423 = vld [vmem:[#allocation29 + $0x270] sm:$0xff]
    %v4424 = vld [vmem:[#allocation29 + $0x278] sm:$0xff]
    %v4425 = vld [vmem:[#allocation29 + $0x280] sm:$0xff]
    %v4426 = vld [vmem:[#allocation29 + $0x288] sm:$0xff]
    %v4427 = vld [vmem:[#allocation29 + $0x290] sm:$0xff]
    %v4428 = vld [vmem:[#allocation29 + $0x298] sm:$0xff]
    %v4429 = vld [vmem:[#allocation29 + $0x2a0] sm:$0xff]
    %v4430 = vld [vmem:[#allocation29 + $0x2a8] sm:$0xff]
    %v4431 = vld [vmem:[#allocation29 + $0x2b0] sm:$0xff]
    %v4432 = vld [vmem:[#allocation29 + $0x2b8] sm:$0xff]
    %v4433 = vld [vmem:[#allocation29 + $0x2c0] sm:$0xff]
    %v4434 = vld [vmem:[#allocation29 + $0x2c8] sm:$0xff]
    %v4435 = vld [vmem:[#allocation29 + $0x2d0] sm:$0xff]
    %v4436 = vld [vmem:[#allocation29 + $0x2d8] sm:$0xff]
    %v4437 = vld [vmem:[#allocation29 + $0x2e0] sm:$0xff]
    %v4438 = vld [vmem:[#allocation29 + $0x2e8] sm:$0xff]
    %v4439 = vld [vmem:[#allocation29 + $0x2f0] sm:$0xff]
    %v4440 = vld [vmem:[#allocation29 + $0x2f8] sm:$0xff]
    %v4441 = vld [vmem:[#allocation29 + $0x300] sm:$0xff]
    %v4442 = vld [vmem:[#allocation29 + $0x308] sm:$0xff]
    %v4443 = vld [vmem:[#allocation29 + $0x310] sm:$0xff]
    %v4444 = vld [vmem:[#allocation29 + $0x318] sm:$0xff]
    %v4445 = vld [vmem:[#allocation29 + $0x320] sm:$0xff]
    %v4446 = vld [vmem:[#allocation29 + $0x328] sm:$0xff]
    %v4447 = vld [vmem:[#allocation29 + $0x330] sm:$0xff]
    %v4448 = vld [vmem:[#allocation29 + $0x338] sm:$0xff]
    %v4449 = vld [vmem:[#allocation29 + $0x340] sm:$0xff]
    %v4450 = vld [vmem:[#allocation29 + $0x348] sm:$0xff]
    %v4451 = vld [vmem:[#allocation29 + $0x350] sm:$0xff]
    %v4452 = vld [vmem:[#allocation29 + $0x358] sm:$0xff]
    %v4453 = vld [vmem:[#allocation29 + $0x360] sm:$0xff]
    %v4454 = vld [vmem:[#allocation29 + $0x368] sm:$0xff]
    %v4455 = vld [vmem:[#allocation29 + $0x370] sm:$0xff]
    %v4456 = vld [vmem:[#allocation29 + $0x378] sm:$0xff]
    %v4457 = vld [vmem:[#allocation29 + $0x380] sm:$0xff]
    %v4458 = vld [vmem:[#allocation29 + $0x388] sm:$0xff]
    %v4459 = vld [vmem:[#allocation29 + $0x390] sm:$0xff]
    %v4460 = vld [vmem:[#allocation29 + $0x398] sm:$0xff]
    %v4461 = vld [vmem:[#allocation29 + $0x3a0] sm:$0xff]
    %v4462 = vld [vmem:[#allocation29 + $0x3a8] sm:$0xff]
    %v4463 = vld [vmem:[#allocation29 + $0x3b0] sm:$0xff]
    %v4464 = vld [vmem:[#allocation29 + $0x3b8] sm:$0xff]
    %v4465 = vld [vmem:[#allocation29 + $0x3c0] sm:$0xff]
    %v4466 = vld [vmem:[#allocation29 + $0x3c8] sm:$0xff]
    %v4467 = vld [vmem:[#allocation29 + $0x3d0] sm:$0xff]
    %v4468 = vld [vmem:[#allocation29 + $0x3d8] sm:$0xff]
    %v4469 = vld [vmem:[#allocation29 + $0x3e0] sm:$0xff]
    %v4470 = vld [vmem:[#allocation29 + $0x3e8] sm:$0xff]
    %v4471 = vld [vmem:[#allocation29 + $0x3f0] sm:$0xff]
    %v4472 = vld [vmem:[#allocation29 + $0x3f8] sm:$0xff]
    %v4473 = vld [vmem:[#allocation31] sm:$0x3]
    %v4475 = vlaneseq
    %v4476 = vshrl.u32 %v4475, 7
    %v4477 = vsub.s32 0, %v4476
    %v4478 = vrot.slane %v4473, %v4477
    %v4479 = vlaneseq
    %v4480 = vshrl.u32 %v4479, 7
    %v4481 = vsub.s32 1, %v4480
    %v4482 = vrot.slane %v4473, %v4481
    %4485 = vmatprep.subr.mxu0 %v4346
    %4486 = vmatpush1.msra.mxu0 %v4345
    %4487 = vmatprep.subr.mxu0 %v4348
    %4488 = vmatpush1.msra.mxu0 %v4347
    %4489 = vmatprep.subr.mxu0 %v4350
    %4490 = vmatpush1.msra.mxu0 %v4349
    %4491 = vmatprep.subr.mxu0 %v4352
    %4492 = vmatpush1.msra.mxu0 %v4351
    %4493 = vmatprep.subr.mxu0 %v4354
    %4494 = vmatpush1.msra.mxu0 %v4353
    %4495 = vmatprep.subr.mxu0 %v4356
    %4496 = vmatpush1.msra.mxu0 %v4355
    %4497 = vmatprep.subr.mxu0 %v4358
    %4498 = vmatpush1.msra.mxu0 %v4357
    %4499 = vmatprep.subr.mxu0 %v4360
    %4500 = vmatpush1.msra.mxu0 %v4359
    %4501 = vmatprep.subr.mxu0 %v4362
    %4502 = vmatpush1.msra.mxu0 %v4361
    %4503 = vmatprep.subr.mxu0 %v4364
    %4504 = vmatpush1.msra.mxu0 %v4363
    %4505 = vmatprep.subr.mxu0 %v4366
    %4506 = vmatpush1.msra.mxu0 %v4365
    %4507 = vmatprep.subr.mxu0 %v4368
    %4508 = vmatpush1.msra.mxu0 %v4367
    %4509 = vmatprep.subr.mxu0 %v4370
    %4510 = vmatpush1.msra.mxu0 %v4369
    %4511 = vmatprep.subr.mxu0 %v4372
    %4512 = vmatpush1.msra.mxu0 %v4371
    %4513 = vmatprep.subr.mxu0 %v4374
    %4514 = vmatpush1.msra.mxu0 %v4373
    %4515 = vmatprep.subr.mxu0 %v4376
    %4516 = vmatpush1.msra.mxu0 %v4375
    %4517 = vmatprep.subr.mxu0 %v4378
    %4518 = vmatpush1.msra.mxu0 %v4377
    %4519 = vmatprep.subr.mxu0 %v4380
    %4520 = vmatpush1.msra.mxu0 %v4379
    %4521 = vmatprep.subr.mxu0 %v4382
    %4522 = vmatpush1.msra.mxu0 %v4381
    %4523 = vmatprep.subr.mxu0 %v4384
    %4524 = vmatpush1.msra.mxu0 %v4383
    %4525 = vmatprep.subr.mxu0 %v4386
    %4526 = vmatpush1.msra.mxu0 %v4385
    %4527 = vmatprep.subr.mxu0 %v4388
    %4528 = vmatpush1.msra.mxu0 %v4387
    %4529 = vmatprep.subr.mxu0 %v4390
    %4530 = vmatpush1.msra.mxu0 %v4389
    %4531 = vmatprep.subr.mxu0 %v4392
    %4532 = vmatpush1.msra.mxu0 %v4391
    %4533 = vmatprep.subr.mxu0 %v4394
    %4534 = vmatpush1.msra.mxu0 %v4393
    %4535 = vmatprep.subr.mxu0 %v4396
    %4536 = vmatpush1.msra.mxu0 %v4395
    %4537 = vmatprep.subr.mxu0 %v4398
    %4538 = vmatpush1.msra.mxu0 %v4397
    %4539 = vmatprep.subr.mxu0 %v4400
    %4540 = vmatpush1.msra.mxu0 %v4399
    %4541 = vmatprep.subr.mxu0 %v4402
    %4542 = vmatpush1.msra.mxu0 %v4401
    %4543 = vmatprep.subr.mxu0 %v4404
    %4544 = vmatpush1.msra.mxu0 %v4403
    %4545 = vmatprep.subr.mxu0 %v4406
    %4546 = vmatpush1.msra.mxu0 %v4405
    %4547 = vmatprep.subr.mxu0 %v4408
    %4548 = vmatpush1.msra.mxu0 %v4407
    %4549 = vmatprep.mubr.f32.mxu0 %v4342
    %4550 = vmatmul.mubr.f32.gmra.mrb[0].mxu0 %v4341
    %v4551 = vpop.f32.mrb[0].mxu0
    %v4552 = vadd.f32 %v4478, %v4551
    %v4553 = vpop.f32.mrb[0].mxu0
    %v4554 = vadd.f32 %v4482, %v4553
    %4555 = vdwg.mxu0
    %4556 = vmatprep.subr.mxu0 %v4410
    %4557 = vmatpush1.msra.mxu0 %v4409
    %4558 = vmatprep.subr.mxu0 %v4412
    %4559 = vmatpush1.msra.mxu0 %v4411
    %4560 = vmatprep.subr.mxu0 %v4414
    %4561 = vmatpush1.msra.mxu0 %v4413
    %4562 = vmatprep.subr.mxu0 %v4416
    %4563 = vmatpush1.msra.mxu0 %v4415
    %4564 = vmatprep.subr.mxu0 %v4418
    %4565 = vmatpush1.msra.mxu0 %v4417
    %4566 = vmatprep.subr.mxu0 %v4420
    %4567 = vmatpush1.msra.mxu0 %v4419
    %4568 = vmatprep.subr.mxu0 %v4422
    %4569 = vmatpush1.msra.mxu0 %v4421
    %4570 = vmatprep.subr.mxu0 %v4424
    %4571 = vmatpush1.msra.mxu0 %v4423
    %4572 = vmatprep.subr.mxu0 %v4426
    %4573 = vmatpush1.msra.mxu0 %v4425
    %4574 = vmatprep.subr.mxu0 %v4428
    %4575 = vmatpush1.msra.mxu0 %v4427
    %4576 = vmatprep.subr.mxu0 %v4430
    %4577 = vmatpush1.msra.mxu0 %v4429
    %4578 = vmatprep.subr.mxu0 %v4432
    %4579 = vmatpush1.msra.mxu0 %v4431
    %4580 = vmatprep.subr.mxu0 %v4434
    %4581 = vmatpush1.msra.mxu0 %v4433
    %4582 = vmatprep.subr.mxu0 %v4436
    %4583 = vmatpush1.msra.mxu0 %v4435
    %4584 = vmatprep.subr.mxu0 %v4438
    %4585 = vmatpush1.msra.mxu0 %v4437
    %4586 = vmatprep.subr.mxu0 %v4440
    %4587 = vmatpush1.msra.mxu0 %v4439
    %4588 = vmatprep.subr.mxu0 %v4442
    %4589 = vmatpush1.msra.mxu0 %v4441
    %4590 = vmatprep.subr.mxu0 %v4444
    %4591 = vmatpush1.msra.mxu0 %v4443
    %4592 = vmatprep.subr.mxu0 %v4446
    %4593 = vmatpush1.msra.mxu0 %v4445
    %4594 = vmatprep.subr.mxu0 %v4448
    %4595 = vmatpush1.msra.mxu0 %v4447
    %4596 = vmatprep.subr.mxu0 %v4450
    %4597 = vmatpush1.msra.mxu0 %v4449
    %4598 = vmatprep.subr.mxu0 %v4452
    %4599 = vmatpush1.msra.mxu0 %v4451
    %4600 = vmatprep.subr.mxu0 %v4454
    %4601 = vmatpush1.msra.mxu0 %v4453
    %4602 = vmatprep.subr.mxu0 %v4456
    %4603 = vmatpush1.msra.mxu0 %v4455
    %4604 = vmatprep.subr.mxu0 %v4458
    %4605 = vmatpush1.msra.mxu0 %v4457
    %4606 = vmatprep.subr.mxu0 %v4460
    %4607 = vmatpush1.msra.mxu0 %v4459
    %4608 = vmatprep.subr.mxu0 %v4462
    %4609 = vmatpush1.msra.mxu0 %v4461
    %4610 = vmatprep.subr.mxu0 %v4464
    %4611 = vmatpush1.msra.mxu0 %v4463
    %4612 = vmatprep.subr.mxu0 %v4466
    %4613 = vmatpush1.msra.mxu0 %v4465
    %4614 = vmatprep.subr.mxu0 %v4468
    %4615 = vmatpush1.msra.mxu0 %v4467
    %4616 = vmatprep.subr.mxu0 %v4470
    %4617 = vmatpush1.msra.mxu0 %v4469
    %4618 = vmatprep.subr.mxu0 %v4472
    %4619 = vmatpush1.msra.mxu0 %v4471
    %4620 = vmatprep.mubr.f32.mxu0 %v4344
    %4621 = vmatmul.mubr.f32.gmra.mrb[0].mxu0 %v4343
    %v4622 = vpop.f32.mrb[0].mxu0
    %v4623 = vadd.f32 %v4552, %v4622
    %v4624 = vpop.f32.mrb[0].mxu0
    %v4625 = vadd.f32 %v4554, %v4624
    %4626 = vdwg.mxu0
    %v4627 = vmax.f32 %v4623, 0.0
    %v4628 = vmax.f32 %v4625, 0.0
    %v4629 = vld [vmem:[#allocation32] sm:$0xff]
    %v4630 = vld [vmem:[#allocation32 + $0x8] sm:$0xff]
    %v4631 = vld [vmem:[#allocation32 + $0x10] sm:$0xff]
    %v4632 = vld [vmem:[#allocation32 + $0x18] sm:$0xff]
    %v4633 = vld [vmem:[#allocation32 + $0x20] sm:$0xff]
    %v4634 = vld [vmem:[#allocation32 + $0x28] sm:$0xff]
    %v4635 = vld [vmem:[#allocation32 + $0x30] sm:$0xff]
    %v4636 = vld [vmem:[#allocation32 + $0x38] sm:$0xff]
    %v4637 = vld [vmem:[#allocation32 + $0x40] sm:$0xff]
    %v4638 = vld [vmem:[#allocation32 + $0x48] sm:$0xff]
    %v4639 = vld [vmem:[#allocation32 + $0x50] sm:$0xff]
    %v4640 = vld [vmem:[#allocation32 + $0x58] sm:$0xff]
    %v4641 = vld [vmem:[#allocation32 + $0x60] sm:$0xff]
    %v4642 = vld [vmem:[#allocation32 + $0x68] sm:$0xff]
    %v4643 = vld [vmem:[#allocation32 + $0x70] sm:$0xff]
    %v4644 = vld [vmem:[#allocation32 + $0x78] sm:$0xff]
    %v4645 = vld [vmem:[#allocation32 + $0x80] sm:$0xff]
    %v4646 = vld [vmem:[#allocation32 + $0x88] sm:$0xff]
    %v4647 = vld [vmem:[#allocation32 + $0x90] sm:$0xff]
    %v4648 = vld [vmem:[#allocation32 + $0x98] sm:$0xff]
    %v4649 = vld [vmem:[#allocation32 + $0xa0] sm:$0xff]
    %v4650 = vld [vmem:[#allocation32 + $0xa8] sm:$0xff]
    %v4651 = vld [vmem:[#allocation32 + $0xb0] sm:$0xff]
    %v4652 = vld [vmem:[#allocation32 + $0xb8] sm:$0xff]
    %v4653 = vld [vmem:[#allocation32 + $0xc0] sm:$0xff]
    %v4654 = vld [vmem:[#allocation32 + $0xc8] sm:$0xff]
    %v4655 = vld [vmem:[#allocation32 + $0xd0] sm:$0xff]
    %v4656 = vld [vmem:[#allocation32 + $0xd8] sm:$0xff]
    %v4657 = vld [vmem:[#allocation32 + $0xe0] sm:$0xff]
    %v4658 = vld [vmem:[#allocation32 + $0xe8] sm:$0xff]
    %v4659 = vld [vmem:[#allocation32 + $0xf0] sm:$0xff]
    %v4660 = vld [vmem:[#allocation32 + $0xf8] sm:$0xff]
    %v4661 = vld [vmem:[#allocation34] sm:$0x1]
    %v4663 = vlaneseq
    %v4664 = vshrl.u32 %v4663, 7
    %v4665 = vsub.s32 0, %v4664
    %v4666 = vrot.slane %v4661, %v4665
    %4668 = vmatprep.subr.mxu0 0.0
    %4669 = vmatpush1.msra.mxu0 %v4629
    %4670 = vmatprep.subr.mxu0 0.0
    %4671 = vmatpush1.msra.mxu0 %v4630
    %4672 = vmatprep.subr.mxu0 0.0
    %4673 = vmatpush1.msra.mxu0 %v4631
    %4674 = vmatprep.subr.mxu0 0.0
    %4675 = vmatpush1.msra.mxu0 %v4632
    %4676 = vmatprep.subr.mxu0 0.0
    %4677 = vmatpush1.msra.mxu0 %v4633
    %4678 = vmatprep.subr.mxu0 0.0
    %4679 = vmatpush1.msra.mxu0 %v4634
    %4680 = vmatprep.subr.mxu0 0.0
    %4681 = vmatpush1.msra.mxu0 %v4635
    %4682 = vmatprep.subr.mxu0 0.0
    %4683 = vmatpush1.msra.mxu0 %v4636
    %4684 = vmatprep.subr.mxu0 0.0
    %4685 = vmatpush1.msra.mxu0 %v4637
    %4686 = vmatprep.subr.mxu0 0.0
    %4687 = vmatpush1.msra.mxu0 %v4638
    %4688 = vmatprep.subr.mxu0 0.0
    %4689 = vmatpush1.msra.mxu0 %v4639
    %4690 = vmatprep.subr.mxu0 0.0
    %4691 = vmatpush1.msra.mxu0 %v4640
    %4692 = vmatprep.subr.mxu0 0.0
    %4693 = vmatpush1.msra.mxu0 %v4641
    %4694 = vmatprep.subr.mxu0 0.0
    %4695 = vmatpush1.msra.mxu0 %v4642
    %4696 = vmatprep.subr.mxu0 0.0
    %4697 = vmatpush1.msra.mxu0 %v4643
    %4698 = vmatprep.subr.mxu0 0.0
    %4699 = vmatpush1.msra.mxu0 %v4644
    %4700 = vmatprep.subr.mxu0 0.0
    %4701 = vmatpush1.msra.mxu0 %v4645
    %4702 = vmatprep.subr.mxu0 0.0
    %4703 = vmatpush1.msra.mxu0 %v4646
    %4704 = vmatprep.subr.mxu0 0.0
    %4705 = vmatpush1.msra.mxu0 %v4647
    %4706 = vmatprep.subr.mxu0 0.0
    %4707 = vmatpush1.msra.mxu0 %v4648
    %4708 = vmatprep.subr.mxu0 0.0
    %4709 = vmatpush1.msra.mxu0 %v4649
    %4710 = vmatprep.subr.mxu0 0.0
    %4711 = vmatpush1.msra.mxu0 %v4650
    %4712 = vmatprep.subr.mxu0 0.0
    %4713 = vmatpush1.msra.mxu0 %v4651
    %4714 = vmatprep.subr.mxu0 0.0
    %4715 = vmatpush1.msra.mxu0 %v4652
    %4716 = vmatprep.subr.mxu0 0.0
    %4717 = vmatpush1.msra.mxu0 %v4653
    %4718 = vmatprep.subr.mxu0 0.0
    %4719 = vmatpush1.msra.mxu0 %v4654
    %4720 = vmatprep.subr.mxu0 0.0
    %4721 = vmatpush1.msra.mxu0 %v4655
    %4722 = vmatprep.subr.mxu0 0.0
    %4723 = vmatpush1.msra.mxu0 %v4656
    %4724 = vmatprep.subr.mxu0 0.0
    %4725 = vmatpush1.msra.mxu0 %v4657
    %4726 = vmatprep.subr.mxu0 0.0
    %4727 = vmatpush1.msra.mxu0 %v4658
    %4728 = vmatprep.subr.mxu0 0.0
    %4729 = vmatpush1.msra.mxu0 %v4659
    %4730 = vmatprep.subr.mxu0 0.0
    %4731 = vmatpush1.msra.mxu0 %v4660
    %4732 = vmatprep.mubr.f32.mxu0 %v4628
    %4733 = vmatmul.mubr.f32.gmra.mrb[0].mxu0 %v4627
    %v4734 = vpop.f32.mrb[0].mxu0
    %v4735 = vadd.f32 %v4666, %v4734
    %v4736 = vpop.f32.mrb[0].mxu0
    %4737 = vdwg.mxu0
    %v4738 = vxor.u32 %v4735, 2147483648
    %v4739 = vmul.f32 %v4738, 1.442695
    %v4740 = vpow.pop %v4739
    %v4741 = vadd.f32 %v4740, 1.0
    %v4742 = vrcp.pop %v4741
    %v4743 = vmul.f32 1.0, %v4742
    %4744 = vst [vmem:[#allocation35] sm:$0xff] %v2776
    %4745 = vst [vmem:[#allocation36] sm:$0xff] %v4743
    // Predicated region
    $region170: #{tpu_custom_call.1} parent=1 // pred_check
      _
    $region171: #{tpu_custom_call.1} parent=1 // pred_check_branch
      %4747 = sbr.rel (0) target = $region173
    $region172: #{tpu_custom_call.1} parent=1 // pred_region
      %s4749 = ssub.s32 128, 128
      %4750 = vsyncadd [#allocation4], %s4749
      %s4752 = sshll.u32 [#allocation35], 4
      %s4753 = int_to_ptr.vmem [resolvable:$true] %s4752
      %4755 = dma.vmem_to_hbm [thread:$0]  %s4753, 128, %s21, [#allocation4]
    $region173: #{tpu_custom_call.1} parent=1 // pred_fallthru
      _
    // Predicated region
    $region174: #{tpu_custom_call.1} parent=1 // pred_check
      _
    $region175: #{tpu_custom_call.1} parent=1 // pred_check_branch
      %4757 = sbr.rel (0) target = $region177
    $region176: #{tpu_custom_call.1} parent=1 // pred_region
      %s4759 = ssub.s32 128, 128
      %4760 = vsyncadd [#allocation37], %s4759
      %s4762 = sshll.u32 [#allocation36], 4
      %s4763 = int_to_ptr.vmem [resolvable:$true] %s4762
      %4765 = dma.vmem_to_hbm [thread:$0]  %s4763, 128, %s22, [#allocation37]
    $region177: #{tpu_custom_call.1} parent=1 // pred_fallthru
      _
    // Predicated region
    $region178: #{tpu_custom_call.1} parent=1 // pred_check
      _
    $region179: #{tpu_custom_call.1} parent=1 // pred_check_branch
      %4767 = sbr.rel (0) target = $region181
    $region180: #{tpu_custom_call.1} parent=1 // pred_region
      %4768 = dma.done [#allocation4], 128
    $region181: #{tpu_custom_call.1} parent=1 // pred_fallthru
      _
    // Predicated region
    $region182: #{tpu_custom_call.1} parent=1 // pred_check
      _
    $region183: #{tpu_custom_call.1} parent=1 // pred_check_branch
      %4770 = sbr.rel (0) target = $region185
    $region184: #{tpu_custom_call.1} parent=1 // pred_region
      %4771 = dma.done [#allocation37], 128
    $region185: #{tpu_custom_call.1} parent=1 // pred_fallthru
      _
    %4772 = vsyncpa [#allocation3], 1
    %4773 = vsyncpa [#allocation6], 1
    %4774 = vsyncpa [#allocation9], 1
    %4775 = vsyncpa [#allocation12], 1
    %4776 = vsyncpa [#allocation15], 1
    %4777 = vsyncpa [#allocation18], 1
    %4778 = vsyncpa [#allocation21], 1
    %4779 = vsyncpa [#allocation24], 1
    %4780 = vsyncpa [#allocation27], 1
    %4781 = vsyncpa [#allocation30], 1
    %4782 = vsyncpa [#allocation33], 1
    %4783 = vsyncpa [#allocation4], 1
    %4784 = vsyncpa [#allocation37], 1

</llo_original>
